<compile_context>
chip_gen: v7x
topology: tpu7x:2x2x1
jax: 0.10.0
libtpu: 0.0.40
codegen_flags: <defaults>
</compile_context>

<pallas_src>
import functools

import jax
import jax.numpy as jnp
from jax.experimental import pallas as pl
from jax.experimental.pallas import tpu as pltpu


# ----------------------------------------------------------------------------
# Kernel 1: bidirectional GRU with fused gates (PyTorch gate order [r, z, n]).
# grid=(2,): d=0 forward, d=1 backward.  x is passed time-major flattened
# (row = t*N + n) so every per-step slice is a static, sublane-aligned row
# block of N rows.
# ----------------------------------------------------------------------------
def _bigru_kernel(x_ref, len_ref, wih_ref, bih_ref, whh_ref, bhh_ref,
                  out_ref, xp_ref):
    d = pl.program_id(0)                       # 0 = forward, 1 = backward
    R, _ = x_ref.shape                         # R = T * N (time-major rows)
    N = len_ref.shape[0]
    T = R // N
    H = out_ref.shape[-1]

    # Hoisted input projection for ALL timesteps (no serial dependency):
    # one (T*N, E) x (E, 3H) MXU matmul instead of T tiny ones.
    xp_ref[...] = (
        jnp.dot(x_ref[...].astype(jnp.bfloat16),
                wih_ref[0].astype(jnp.bfloat16),
                preferred_element_type=jnp.float32)
        + bih_ref[0]
    )

    whh = whh_ref[0].astype(jnp.bfloat16)      # (H, 3H); cast hoisted out of loop
    bhh = bhh_ref[0]                           # (1, 3H)
    lengths = len_ref[...]                     # (N, 1) int32

    def cell(t, h):
        gi = xp_ref[t * N:(t + 1) * N, :]      # (N, 3H) precomputed x@Wih + bih
        gh = jnp.dot(h.astype(jnp.bfloat16), whh,
                     preferred_element_type=jnp.float32) + bhh         # (N, 3H)
        r = jax.nn.sigmoid(gi[:, :H] + gh[:, :H])
        z = jax.nn.sigmoid(gi[:, H:2 * H] + gh[:, H:2 * H])
        n = jnp.tanh(gi[:, 2 * H:] + r * gh[:, 2 * H:])
        h_new = (1.0 - z) * n + z * h
        valid = lengths > t                    # (N, 1): packed-sequence emulation
        out_ref[0, t * N:(t + 1) * N, :] = jnp.where(valid, h_new, 0.0)
        return jnp.where(valid, h_new, h)

    def run(time_order):
        h = jnp.zeros((N, H), jnp.float32)
        for t in time_order:                   # static, fully unrolled (T small)
            h = cell(t, h)

    @pl.when(d == 0)
    def _():
        run(range(T))                          # forward direction

    @pl.when(d == 1)
    def _():
        run(range(T - 1, -1, -1))              # backward (packed reverse folded in)


def bigru(x, lengths, p):
    """Packed-equivalent bidirectional GRU.  x: (N, T, E) -> (N, T, 2H)."""
    N, T, E = x.shape
    H = p["whh"].shape[-1] // 3
    Np = ((N + 7) // 8) * 8                    # pad batch to a sublane multiple
    if Np != N:
        x = jnp.pad(x, ((0, Np - N), (0, 0), (0, 0)))
        lengths = jnp.pad(lengths, (0, Np - N))   # padded sequences get length 0
    xflat = jnp.transpose(x, (1, 0, 2)).reshape(T * Np, E)   # time-major rows
    out = pl.pallas_call(
        _bigru_kernel,
        out_shape=jax.ShapeDtypeStruct((2, T * Np, H), jnp.float32),
        grid=(2,),                              # the two directions are independent
        in_specs=[
            pl.BlockSpec((T * Np, E), lambda d: (0, 0)),
            pl.BlockSpec((Np, 1), lambda d: (0, 0)),
            pl.BlockSpec((1, E, 3 * H), lambda d: (d, 0, 0)),
            pl.BlockSpec((1, 1, 3 * H), lambda d: (d, 0, 0)),
            pl.BlockSpec((1, H, 3 * H), lambda d: (d, 0, 0)),
            pl.BlockSpec((1, 1, 3 * H), lambda d: (d, 0, 0)),
        ],
        out_specs=pl.BlockSpec((1, T * Np, H), lambda d: (d, 0, 0)),
        scratch_shapes=[pltpu.VMEM((T * Np, 3 * H), jnp.float32)],
        compiler_params=pltpu.CompilerParams(
            dimension_semantics=("parallel",)),   # one direction per TC on v7x
    )(xflat, lengths.reshape(Np, 1).astype(jnp.int32),
      p["wih"], p["bih"], p["whh"], p["bhh"])
    # (2, T, Np, H) -> (Np, T, 2H) with [forward | backward] along features.
    h = out.reshape(2, T, Np, H).transpose(2, 1, 0, 3).reshape(Np, T, 2 * H)
    return h[:N]


# ----------------------------------------------------------------------------
# Kernel 2: fused LayerNorm + tanh(Linear) + context score + masked softmax +
# attention-weighted sum for ALL sequences in a single invocation.
# h is passed batch-major flattened: row = n*T + t.
# ----------------------------------------------------------------------------
def _attn_kernel(h_ref, mask_ref, gamma_ref, beta_ref, watt_ref, batt_ref,
                 wcv_ref, a_ref, s_ref):
    R, _ = h_ref.shape
    N, T = a_ref.shape
    h = h_ref[...]                             # (R, D) raw GRU outputs
    maskf = mask_ref[...]                      # (R, 1) in {0, 1}

    # LayerNorm over features (torch default eps = 1e-5).
    mu = jnp.mean(h, axis=-1, keepdims=True)
    var = jnp.mean(jnp.square(h - mu), axis=-1, keepdims=True)
    hn = (h - mu) * jax.lax.rsqrt(var + 1e-5) * gamma_ref[...] + beta_ref[...]

    # Attention MLP: one (R, D) x (D, A) MXU matmul; context score on VPU/XLU.
    u = jnp.tanh(jnp.dot(hn.astype(jnp.bfloat16),
                         watt_ref[...].astype(jnp.bfloat16),
                         preferred_element_type=jnp.float32) + batt_ref[...])
    sc = jnp.sum(u * wcv_ref[...], axis=-1, keepdims=True)             # (R, 1)

    # Masked softmax.  Global max subtraction (as in the reference; it cancels);
    # masked rows compute exp(0) and are zeroed by the mask, so no inf is made.
    sc_m = jnp.where(maskf > 0.0, sc, -3.4e38)
    m = jnp.max(sc_m, axis=0, keepdims=True)                           # (1, 1)
    e = jnp.exp(jnp.where(maskf > 0.0, sc, m) - m) * maskf             # (R, 1)

    # 0/1 selector matrices from iotas (reshape-free segment reductions):
    #   Gn[n, r] = 1 iff row r belongs to sequence n
    #   Et[r, t] = 1 iff row r is timestep t within its sequence
    ri = jax.lax.broadcasted_iota(jnp.int32, (N, R), 1)
    ni = jax.lax.broadcasted_iota(jnp.int32, (N, R), 0)
    Gn = ((ri >= ni * T) & (ri < ni * T + T)).astype(jnp.float32)      # (N, R)
    rc = jax.lax.broadcasted_iota(jnp.int32, (R, N), 0)
    nc = jax.lax.broadcasted_iota(jnp.int32, (R, N), 1)
    n_of_r = jnp.sum((rc >= nc * T).astype(jnp.float32),
                     axis=-1, keepdims=True) - 1.0                     # (R, 1)
    rt = jax.lax.broadcasted_iota(jnp.int32, (R, T), 0).astype(jnp.float32)
    tt = jax.lax.broadcasted_iota(jnp.int32, (R, T), 1).astype(jnp.float32)
    Et = ((rt - jnp.float32(T) * n_of_r) == tt).astype(jnp.float32)    # (R, T)

    e_mat = jnp.dot(Gn, e * Et, preferred_element_type=jnp.float32)    # (N, T)
    num = jnp.dot(Gn, e * h, preferred_element_type=jnp.float32)       # (N, D)
    denom = jnp.sum(e_mat, axis=-1, keepdims=True)                     # (N, 1)
    inv = jnp.where(denom > 0.0, 1.0 / jnp.maximum(denom, 1e-30), 0.0)
    a_ref[...] = e_mat * inv                                           # (N, T) lane-dense
    s_ref[...] = num * inv                                             # (N, D) lane-dense


def han_attention(h, mask, gamma, beta, w_att, b_att, w_cv):
    """h: (N, T, D) raw GRU outputs, mask: (N, T) -> (a: (N, T), s: (N, D))."""
    N, T, D = h.shape
    A = w_att.shape[-1]
    R = N * T
    a, s = pl.pallas_call(
        _attn_kernel,
        out_shape=(jax.ShapeDtypeStruct((N, T), jnp.float32),
                   jax.ShapeDtypeStruct((N, D), jnp.float32)),
        grid=(1,),                              # all sequences in one grid step
        in_specs=[
            pl.BlockSpec((R, D), lambda i: (0, 0)),
            pl.BlockSpec((R, 1), lambda i: (0, 0)),
            pl.BlockSpec((1, D), lambda i: (0, 0)),
            pl.BlockSpec((1, D), lambda i: (0, 0)),
            pl.BlockSpec((D, A), lambda i: (0, 0)),
            pl.BlockSpec((1, A), lambda i: (0, 0)),
            pl.BlockSpec((1, A), lambda i: (0, 0)),
        ],
        out_specs=(pl.BlockSpec((N, T), lambda i: (0, 0)),
                   pl.BlockSpec((N, D), lambda i: (0, 0))),
        compiler_params=pltpu.CompilerParams(
            dimension_semantics=("arbitrary",)),
    )(h.reshape(R, D), mask.reshape(R, 1), gamma, beta, w_att, b_att, w_cv)
    return a, s


# ----------------------------------------------------------------------------
# Parameter init and model glue.
# ----------------------------------------------------------------------------
def init_params(key, params_dict):
    E = params_dict["embed_dim"]
    Hw = params_dict["word_gru_h_dim"]
    Hs = params_dict["sent_gru_h_dim"]
    Aw = params_dict["word_att_dim"]
    As = params_dict["sent_att_dim"]

    def gru_params(k, in_dim, h_dim):
        # Fused gate layout [r | z | n] (PyTorch order) along the last dim,
        # directions stacked [forward, backward] along the first dim.
        ks = jax.random.split(k, 4)
        sc = 0.1
        return {
            "wih": sc * jax.random.normal(ks[0], (2, in_dim, 3 * h_dim), jnp.float32),
            "whh": sc * jax.random.normal(ks[1], (2, h_dim, 3 * h_dim), jnp.float32),
            "bih": sc * jax.random.normal(ks[2], (2, 1, 3 * h_dim), jnp.float32),
            "bhh": sc * jax.random.normal(ks[3], (2, 1, 3 * h_dim), jnp.float32),
        }

    k = jax.random.split(key, 8)
    return {
        "word_gru": gru_params(k[0], E, Hw),
        "sent_gru": gru_params(k[1], 2 * Hw, Hs),
        "word_ln_gamma": jnp.ones((1, 2 * Hw), jnp.float32),
        "word_ln_beta": jnp.zeros((1, 2 * Hw), jnp.float32),
        "sent_ln_gamma": jnp.ones((1, 2 * Hs), jnp.float32),
        "sent_ln_beta": jnp.zeros((1, 2 * Hs), jnp.float32),
        "w_word_att": 0.1 * jax.random.normal(k[2], (2 * Hw, Aw), jnp.float32),
        "b_word_att": 0.1 * jax.random.normal(k[3], (1, Aw), jnp.float32),
        "w_word_cv": 0.1 * jax.random.normal(k[4], (1, Aw), jnp.float32),
        "w_sent_att": 0.1 * jax.random.normal(k[5], (2 * Hs, As), jnp.float32),
        "b_sent_att": 0.1 * jax.random.normal(k[6], (1, As), jnp.float32),
        "w_sent_cv": 0.1 * jax.random.normal(k[7], (1, As), jnp.float32),
    }


def review_han_forward(params, docs, doc_lengths, sent_lengths):
    # docs: (B, S, W, E) f32; doc_lengths: (B,) i32; sent_lengths: (B, S) i32
    # returns (v: (B, 2*Hs), a_it: (B, S, W), a_i: (B, S))
    B, S, W, E = docs.shape
    Hw = params["word_gru"]["whh"].shape[-1] // 3

    # ---- word level --------------------------------------------------------
    sents = docs.reshape(B * S, W, E)
    sent_valid = (jnp.arange(S)[None, :] < doc_lengths[:, None]).reshape(B * S)
    word_len = jnp.where(sent_valid, sent_lengths.reshape(B * S), 0)
    h_it = bigru(sents, word_len, params["word_gru"])                  # (B*S, W, 2Hw)
    word_mask = (jnp.arange(W)[None, :] < word_len[:, None]).astype(jnp.float32)
    a_it, s_i = han_attention(h_it, word_mask,
                              params["word_ln_gamma"], params["word_ln_beta"],
                              params["w_word_att"], params["b_word_att"],
                              params["w_word_cv"])                     # (B*S, W), (B*S, 2Hw)

    # ---- sentence level ----------------------------------------------------
    s_i = s_i.reshape(B, S, 2 * Hw)
    h_i = bigru(s_i, doc_lengths, params["sent_gru"])                  # (B, S, 2Hs)
    sent_mask = (jnp.arange(S)[None, :] < doc_lengths[:, None]).astype(jnp.float32)
    a_i, v = han_attention(h_i, sent_mask,
                           params["sent_ln_gamma"], params["sent_ln_beta"],
                           params["w_sent_att"], params["b_sent_att"],
                           params["w_sent_cv"])                        # (B, S), (B, 2Hs)

    return v, a_it.reshape(B, S, W), a_i


if __name__ == "__main__":
    params_dict = {
        "embed_dim": 32,
        "word_gru_h_dim": 16,
        "sent_gru_h_dim": 16,
        "word_gru_n_layers": 1,   # TODO(synk): multi-layer stacked GRU (and inter-layer GRU dropout) not implemented; n_layers=1.
        "sent_gru_n_layers": 1,
        "word_att_dim": 16,
        "sent_att_dim": 16,
        "dropgru_s": 0.0,
        "dropgru_w": 0.0,
        "dropval": 0.0,           # self.Dropout is never applied in forward()
        "attention": "softmax",   # TODO(synk): 'tanh' and 'de_attention' variants not ported; only softmax attention.
    }
    B, S, W = 2, 4, 6
    E = params_dict["embed_dim"]

    key = jax.random.PRNGKey(0)
    kp, kd = jax.random.split(key)
    params = init_params(kp, params_dict)

    docs = jax.random.normal(kd, (B, S, W, E), jnp.float32)
    doc_lengths = jnp.array([4, 2], jnp.int32)
    sent_lengths = jnp.array([[6, 3, 2, 5],
                              [4, 6, 1, 1]], jnp.int32)
    # Zero padded positions (like pad-token embeddings); values there never
    # influence valid outputs anyway.
    word_valid = jnp.arange(W)[None, None, :] < sent_lengths[:, :, None]
    sent_valid = jnp.arange(S)[None, :, None] < doc_lengths[:, None, None]
    docs = docs * (word_valid & sent_valid).astype(jnp.float32)[..., None]

    fwd = jax.jit(functools.partial(review_han_forward, params))
    v, a_it, a_i = fwd(docs, doc_lengths, sent_lengths)
    jax.block_until_ready((v, a_it, a_i))

    assert v.shape == (B, 2 * params_dict["sent_gru_h_dim"])
    assert a_it.shape == (B, S, W)
    assert a_i.shape == (B, S)
    assert bool(jnp.all(jnp.isfinite(v)))
    assert bool(jnp.all(jnp.isfinite(a_it)))
    assert bool(jnp.all(jnp.isfinite(a_i)))
    # Attention weights of valid sentences / docs sum to 1; padded sentences to 0.
    sent_ok = jnp.arange(S)[None, :] < doc_lengths[:, None]
    word_sums = a_it.sum(-1)
    assert bool(jnp.all(jnp.abs(jnp.where(sent_ok, word_sums - 1.0, word_sums)) < 1e-4))
    assert bool(jnp.all(jnp.abs(a_i.sum(-1) - 1.0) < 1e-4))
    print("KERNEL_OK")
</pallas_src>

<mosaic_0001>
module attributes {stable_mosaic.version = 11 : i64} {
  func.func @_bigru_kernel(%arg0: i32, %arg1: memref<48x32xf32, #tpu.memory_space<vmem>>, %arg2: memref<8x1xi32, #tpu.memory_space<vmem>>, %arg3: memref<1x32x48xf32, #tpu.memory_space<vmem>>, %arg4: memref<1x1x48xf32, #tpu.memory_space<vmem>>, %arg5: memref<1x16x48xf32, #tpu.memory_space<vmem>>, %arg6: memref<1x1x48xf32, #tpu.memory_space<vmem>>, %arg7: memref<1x48x16xf32, #tpu.memory_space<vmem>>, %arg8: memref<48x48xf32, #tpu.memory_space<vmem>>) attributes {dimension_semantics = [#tpu.dimension_semantics<parallel>], iteration_bounds = array<i64: 2>, scalar_prefetch = 0 : i64, scratch_operands = 1 : i64, tpu.core_type = #tpu.core_type<tc>, window_params = [{pipeline_mode = #tpu.pipeline_mode<synchronous>, transform_indices = @transform_0, window_bounds = array<i64: 48, 32>}, {pipeline_mode = #tpu.pipeline_mode<synchronous>, transform_indices = @transform_1, window_bounds = array<i64: 8, 1>}, {transform_indices = @transform_2, window_bounds = array<i64: 1, 32, 48>}, {transform_indices = @transform_3, window_bounds = array<i64: 1, 1, 48>}, {transform_indices = @transform_4, window_bounds = array<i64: 1, 16, 48>}, {transform_indices = @transform_5, window_bounds = array<i64: 1, 1, 48>}, {transform_indices = @transform_6, window_bounds = array<i64: 1, 48, 16>}]} {
    %c0 = arith.constant 0 : index
    %c0_0 = arith.constant 0 : index
    %0 = vector.load %arg1[%c0, %c0_0] : memref<48x32xf32, #tpu.memory_space<vmem>>, vector<48x32xf32>
    %1 = arith.truncf %0 : vector<48x32xf32> to vector<48x32xbf16>
    %c0_1 = arith.constant 0 : index
    %c0_2 = arith.constant 0 : index
    %c0_3 = arith.constant 0 : index
    %2 = vector.load %arg3[%c0_1, %c0_2, %c0_3] : memref<1x32x48xf32, #tpu.memory_space<vmem>>, vector<1x32x48xf32>
    %3 = vector.shape_cast %2 : vector<1x32x48xf32> to vector<32x48xf32>
    %4 = arith.truncf %3 : vector<32x48xf32> to vector<32x48xbf16>
    %cst = arith.constant dense<0.000000e+00> : vector<48x48xf32>
    %5 = tpu.matmul %1, %4, %cst {dimension_numbers = #tpu.dot_dimension_numbers<[1], [0], [0], [1], [0, 0, 1, 1], [], []>} : vector<48x32xbf16>, vector<32x48xbf16>, vector<48x48xf32> -> vector<48x48xf32>
    %c0_4 = arith.constant 0 : index
    %c0_5 = arith.constant 0 : index
    %c0_6 = arith.constant 0 : index
    %6 = vector.load %arg4[%c0_4, %c0_5, %c0_6] : memref<1x1x48xf32, #tpu.memory_space<vmem>>, vector<1x1x48xf32>
    %7 = vector.shape_cast %6 : vector<1x1x48xf32> to vector<1x48xf32>
    %8 = vector.broadcast %7 : vector<1x48xf32> to vector<48x48xf32>
    %9 = arith.addf %5, %8 : vector<48x48xf32>
    %c0_7 = arith.constant 0 : index
    %c0_8 = arith.constant 0 : index
    %10 = vector.load %arg8[%c0_7, %c0_8] : memref<48x48xf32, #tpu.memory_space<vmem>>, vector<48x48xf32>
    tpu.vector_store %arg8[%c0_7, %c0_8], %9 {strides = array<i32>} : memref<48x48xf32, #tpu.memory_space<vmem>>, vector<48x48xf32>,
    %c0_9 = arith.constant 0 : index
    %c0_10 = arith.constant 0 : index
    %c0_11 = arith.constant 0 : index
    %11 = vector.load %arg5[%c0_9, %c0_10, %c0_11] : memref<1x16x48xf32, #tpu.memory_space<vmem>>, vector<1x16x48xf32>
    %12 = vector.shape_cast %11 : vector<1x16x48xf32> to vector<16x48xf32>
    %13 = arith.truncf %12 : vector<16x48xf32> to vector<16x48xbf16>
    %c0_12 = arith.constant 0 : index
    %c0_13 = arith.constant 0 : index
    %c0_14 = arith.constant 0 : index
    %14 = vector.load %arg6[%c0_12, %c0_13, %c0_14] : memref<1x1x48xf32, #tpu.memory_space<vmem>>, vector<1x1x48xf32>
    %15 = vector.shape_cast %14 : vector<1x1x48xf32> to vector<1x48xf32>
    %c0_15 = arith.constant 0 : index
    %c0_16 = arith.constant 0 : index
    %16 = vector.load %arg2[%c0_15, %c0_16] : memref<8x1xi32, #tpu.memory_space<vmem>>, vector<8x1xi32>
    %c0_i32 = arith.constant 0 : i32
    %17 = arith.cmpi eq, %arg0, %c0_i32 : i32
    %18 = arith.extui %17 : i1 to i32
    %c0_i32_17 = arith.constant 0 : i32
    %19 = arith.cmpi ne, %18, %c0_i32_17 : i32
    scf.if %19 {
      %cst_19 = arith.constant 0.000000e+00 : f32
      %23 = vector.broadcast %cst_19 : f32 to vector<8x16xf32>
      %c0_20 = arith.constant 0 : index
      %c0_21 = arith.constant 0 : index
      %24 = vector.load %arg8[%c0_20, %c0_21] : memref<48x48xf32, #tpu.memory_space<vmem>>, vector<8x48xf32>
      %25 = arith.truncf %23 : vector<8x16xf32> to vector<8x16xbf16>
      %cst_22 = arith.constant dense<0.000000e+00> : vector<8x48xf32>
      %26 = tpu.matmul %25, %13, %cst_22 {dimension_numbers = #tpu.dot_dimension_numbers<[1], [0], [0], [1], [0, 0, 1, 1], [], []>} : vector<8x16xbf16>, vector<16x48xbf16>, vector<8x48xf32> -> vector<8x48xf32>
      %27 = vector.broadcast %15 : vector<1x48xf32> to vector<8x48xf32>
      %28 = arith.addf %26, %27 : vector<8x48xf32>
      %29 = vector.extract_strided_slice %24 {offsets = [0, 0], sizes = [8, 16], strides = [1, 1]} : vector<8x48xf32> to vector<8x16xf32>
      %30 = vector.extract_strided_slice %28 {offsets = [0, 0], sizes = [8, 16], strides = [1, 1]} : vector<8x48xf32> to vector<8x16xf32>
      %31 = arith.addf %29, %30 : vector<8x16xf32>
      %32 = arith.negf %31 : vector<8x16xf32>
      %33 = math.exp %32 : vector<8x16xf32>
      %cst_23 = arith.constant 1.000000e+00 : f32
      %34 = vector.broadcast %cst_23 : f32 to vector<8x16xf32>
      %35 = arith.addf %34, %33 : vector<8x16xf32>
      %36 = arith.divf %34, %35 : vector<8x16xf32>
      %37 = vector.extract_strided_slice %24 {offsets = [0, 16], sizes = [8, 16], strides = [1, 1]} : vector<8x48xf32> to vector<8x16xf32>
      %38 = vector.extract_strided_slice %28 {offsets = [0, 16], sizes = [8, 16], strides = [1, 1]} : vector<8x48xf32> to vector<8x16xf32>
      %39 = arith.addf %37, %38 : vector<8x16xf32>
      %40 = arith.negf %39 : vector<8x16xf32>
      %41 = math.exp %40 : vector<8x16xf32>
      %cst_24 = arith.constant 1.000000e+00 : f32
      %42 = vector.broadcast %cst_24 : f32 to vector<8x16xf32>
      %43 = arith.addf %42, %41 : vector<8x16xf32>
      %44 = arith.divf %42, %43 : vector<8x16xf32>
      %45 = vector.extract_strided_slice %24 {offsets = [0, 32], sizes = [8, 16], strides = [1, 1]} : vector<8x48xf32> to vector<8x16xf32>
      %46 = vector.extract_strided_slice %28 {offsets = [0, 32], sizes = [8, 16], strides = [1, 1]} : vector<8x48xf32> to vector<8x16xf32>
      %47 = arith.mulf %36, %46 : vector<8x16xf32>
      %48 = arith.addf %45, %47 : vector<8x16xf32>
      %49 = math.tanh %48 : vector<8x16xf32>
      %cst_25 = arith.constant 1.000000e+00 : f32
      %50 = vector.broadcast %cst_25 : f32 to vector<8x16xf32>
      %51 = arith.subf %50, %44 : vector<8x16xf32>
      %52 = arith.mulf %51, %49 : vector<8x16xf32>
      %53 = arith.mulf %44, %23 : vector<8x16xf32>
      %54 = arith.addf %52, %53 : vector<8x16xf32>
      %c0_i32_26 = arith.constant 0 : i32
      %55 = vector.broadcast %c0_i32_26 : i32 to vector<8x1xi32>
      %56 = arith.cmpi sgt, %16, %55 : vector<8x1xi32>
      %cst_27 = arith.constant 0.000000e+00 : f32
      %57 = vector.shape_cast %56 : vector<8x1xi1> to vector<8x1xi1>
      %58 = vector.broadcast %57 : vector<8x1xi1> to vector<8x16xi1>
      %59 = vector.broadcast %cst_27 : f32 to vector<8x16xf32>
      %60 = arith.select %58, %54, %59 : vector<8x16xi1>, vector<8x16xf32>
      %c0_28 = arith.constant 0 : index
      %c0_29 = arith.constant 0 : index
      %c0_30 = arith.constant 0 : index
      %61 = vector.load %arg7[%c0_28, %c0_29, %c0_30] : memref<1x48x16xf32, #tpu.memory_space<vmem>>, vector<1x8x16xf32>
      %62 = vector.shape_cast %61 : vector<1x8x16xf32> to vector<8x16xf32>
      %63 = vector.shape_cast %60 : vector<8x16xf32> to vector<1x8x16xf32>
      tpu.vector_store %arg7[%c0_28, %c0_29, %c0_30], %63 {strides = array<i32>} : memref<1x48x16xf32, #tpu.memory_space<vmem>>, vector<1x8x16xf32>,
      %64 = vector.shape_cast %56 : vector<8x1xi1> to vector<8x1xi1>
      %65 = vector.broadcast %64 : vector<8x1xi1> to vector<8x16xi1>
      %66 = arith.select %65, %54, %23 : vector<8x16xi1>, vector<8x16xf32>
      %c8 = arith.constant 8 : index
      %c0_31 = arith.constant 0 : index
      %67 = vector.load %arg8[%c8, %c0_31] : memref<48x48xf32, #tpu.memory_space<vmem>>, vector<8x48xf32>
      %68 = arith.truncf %66 : vector<8x16xf32> to vector<8x16xbf16>
      %cst_32 = arith.constant dense<0.000000e+00> : vector<8x48xf32>
      %69 = tpu.matmul %68, %13, %cst_32 {dimension_numbers = #tpu.dot_dimension_numbers<[1], [0], [0], [1], [0, 0, 1, 1], [], []>} : vector<8x16xbf16>, vector<16x48xbf16>, vector<8x48xf32> -> vector<8x48xf32>
      %70 = vector.broadcast %15 : vector<1x48xf32> to vector<8x48xf32>
      %71 = arith.addf %69, %70 : vector<8x48xf32>
      %72 = vector.extract_strided_slice %67 {offsets = [0, 0], sizes = [8, 16], strides = [1, 1]} : vector<8x48xf32> to vector<8x16xf32>
      %73 = vector.extract_strided_slice %71 {offsets = [0, 0], sizes = [8, 16], strides = [1, 1]} : vector<8x48xf32> to vector<8x16xf32>
      %74 = arith.addf %72, %73 : vector<8x16xf32>
      %75 = arith.negf %74 : vector<8x16xf32>
      %76 = math.exp %75 : vector<8x16xf32>
      %cst_33 = arith.constant 1.000000e+00 : f32
      %77 = vector.broadcast %cst_33 : f32 to vector<8x16xf32>
      %78 = arith.addf %77, %76 : vector<8x16xf32>
      %79 = arith.divf %77, %78 : vector<8x16xf32>
      %80 = vector.extract_strided_slice %67 {offsets = [0, 16], sizes = [8, 16], strides = [1, 1]} : vector<8x48xf32> to vector<8x16xf32>
      %81 = vector.extract_strided_slice %71 {offsets = [0, 16], sizes = [8, 16], strides = [1, 1]} : vector<8x48xf32> to vector<8x16xf32>
      %82 = arith.addf %80, %81 : vector<8x16xf32>
      %83 = arith.negf %82 : vector<8x16xf32>
      %84 = math.exp %83 : vector<8x16xf32>
      %cst_34 = arith.constant 1.000000e+00 : f32
      %85 = vector.broadcast %cst_34 : f32 to vector<8x16xf32>
      %86 = arith.addf %85, %84 : vector<8x16xf32>
      %87 = arith.divf %85, %86 : vector<8x16xf32>
      %88 = vector.extract_strided_slice %67 {offsets = [0, 32], sizes = [8, 16], strides = [1, 1]} : vector<8x48xf32> to vector<8x16xf32>
      %89 = vector.extract_strided_slice %71 {offsets = [0, 32], sizes = [8, 16], strides = [1, 1]} : vector<8x48xf32> to vector<8x16xf32>
      %90 = arith.mulf %79, %89 : vector<8x16xf32>
      %91 = arith.addf %88, %90 : vector<8x16xf32>
      %92 = math.tanh %91 : vector<8x16xf32>
      %cst_35 = arith.constant 1.000000e+00 : f32
      %93 = vector.broadcast %cst_35 : f32 to vector<8x16xf32>
      %94 = arith.subf %93, %87 : vector<8x16xf32>
      %95 = arith.mulf %94, %92 : vector<8x16xf32>
      %96 = arith.mulf %87, %66 : vector<8x16xf32>
      %97 = arith.addf %95, %96 : vector<8x16xf32>
      %c1_i32_36 = arith.constant 1 : i32
      %98 = vector.broadcast %c1_i32_36 : i32 to vector<8x1xi32>
      %99 = arith.cmpi sgt, %16, %98 : vector<8x1xi32>
      %cst_37 = arith.constant 0.000000e+00 : f32
      %100 = vector.shape_cast %99 : vector<8x1xi1> to vector<8x1xi1>
      %101 = vector.broadcast %100 : vector<8x1xi1> to vector<8x16xi1>
      %102 = vector.broadcast %cst_37 : f32 to vector<8x16xf32>
      %103 = arith.select %101, %97, %102 : vector<8x16xi1>, vector<8x16xf32>
      %c0_38 = arith.constant 0 : index
      %c8_39 = arith.constant 8 : index
      %c0_40 = arith.constant 0 : index
      %104 = vector.load %arg7[%c0_38, %c8_39, %c0_40] : memref<1x48x16xf32, #tpu.memory_space<vmem>>, vector<1x8x16xf32>
      %105 = vector.shape_cast %104 : vector<1x8x16xf32> to vector<8x16xf32>
      %106 = vector.shape_cast %103 : vector<8x16xf32> to vector<1x8x16xf32>
      tpu.vector_store %arg7[%c0_38, %c8_39, %c0_40], %106 {strides = array<i32>} : memref<1x48x16xf32, #tpu.memory_space<vmem>>, vector<1x8x16xf32>,
      %107 = vector.shape_cast %99 : vector<8x1xi1> to vector<8x1xi1>
      %108 = vector.broadcast %107 : vector<8x1xi1> to vector<8x16xi1>
      %109 = arith.select %108, %97, %66 : vector<8x16xi1>, vector<8x16xf32>
      %c16 = arith.constant 16 : index
      %c0_41 = arith.constant 0 : index
      %110 = vector.load %arg8[%c16, %c0_41] : memref<48x48xf32, #tpu.memory_space<vmem>>, vector<8x48xf32>
      %111 = arith.truncf %109 : vector<8x16xf32> to vector<8x16xbf16>
      %cst_42 = arith.constant dense<0.000000e+00> : vector<8x48xf32>
      %112 = tpu.matmul %111, %13, %cst_42 {dimension_numbers = #tpu.dot_dimension_numbers<[1], [0], [0], [1], [0, 0, 1, 1], [], []>} : vector<8x16xbf16>, vector<16x48xbf16>, vector<8x48xf32> -> vector<8x48xf32>
      %113 = vector.broadcast %15 : vector<1x48xf32> to vector<8x48xf32>
      %114 = arith.addf %112, %113 : vector<8x48xf32>
      %115 = vector.extract_strided_slice %110 {offsets = [0, 0], sizes = [8, 16], strides = [1, 1]} : vector<8x48xf32> to vector<8x16xf32>
      %116 = vector.extract_strided_slice %114 {offsets = [0, 0], sizes = [8, 16], strides = [1, 1]} : vector<8x48xf32> to vector<8x16xf32>
      %117 = arith.addf %115, %116 : vector<8x16xf32>
      %118 = arith.negf %117 : vector<8x16xf32>
      %119 = math.exp %118 : vector<8x16xf32>
      %cst_43 = arith.constant 1.000000e+00 : f32
      %120 = vector.broadcast %cst_43 : f32 to vector<8x16xf32>
      %121 = arith.addf %120, %119 : vector<8x16xf32>
      %122 = arith.divf %120, %121 : vector<8x16xf32>
      %123 = vector.extract_strided_slice %110 {offsets = [0, 16], sizes = [8, 16], strides = [1, 1]} : vector<8x48xf32> to vector<8x16xf32>
      %124 = vector.extract_strided_slice %114 {offsets = [0, 16], sizes = [8, 16], strides = [1, 1]} : vector<8x48xf32> to vector<8x16xf32>
      %125 = arith.addf %123, %124 : vector<8x16xf32>
      %126 = arith.negf %125 : vector<8x16xf32>
      %127 = math.exp %126 : vector<8x16xf32>
      %cst_44 = arith.constant 1.000000e+00 : f32
      %128 = vector.broadcast %cst_44 : f32 to vector<8x16xf32>
      %129 = arith.addf %128, %127 : vector<8x16xf32>
      %130 = arith.divf %128, %129 : vector<8x16xf32>
      %131 = vector.extract_strided_slice %110 {offsets = [0, 32], sizes = [8, 16], strides = [1, 1]} : vector<8x48xf32> to vector<8x16xf32>
      %132 = vector.extract_strided_slice %114 {offsets = [0, 32], sizes = [8, 16], strides = [1, 1]} : vector<8x48xf32> to vector<8x16xf32>
      %133 = arith.mulf %122, %132 : vector<8x16xf32>
      %134 = arith.addf %131, %133 : vector<8x16xf32>
      %135 = math.tanh %134 : vector<8x16xf32>
      %cst_45 = arith.constant 1.000000e+00 : f32
      %136 = vector.broadcast %cst_45 : f32 to vector<8x16xf32>
      %137 = arith.subf %136, %130 : vector<8x16xf32>
      %138 = arith.mulf %137, %135 : vector<8x16xf32>
      %139 = arith.mulf %130, %109 : vector<8x16xf32>
      %140 = arith.addf %138, %139 : vector<8x16xf32>
      %c2_i32 = arith.constant 2 : i32
      %141 = vector.broadcast %c2_i32 : i32 to vector<8x1xi32>
      %142 = arith.cmpi sgt, %16, %141 : vector<8x1xi32>
      %cst_46 = arith.constant 0.000000e+00 : f32
      %143 = vector.shape_cast %142 : vector<8x1xi1> to vector<8x1xi1>
      %144 = vector.broadcast %143 : vector<8x1xi1> to vector<8x16xi1>
      %145 = vector.broadcast %cst_46 : f32 to vector<8x16xf32>
      %146 = arith.select %144, %140, %145 : vector<8x16xi1>, vector<8x16xf32>
      %c0_47 = arith.constant 0 : index
      %c16_48 = arith.constant 16 : index
      %c0_49 = arith.constant 0 : index
      %147 = vector.load %arg7[%c0_47, %c16_48, %c0_49] : memref<1x48x16xf32, #tpu.memory_space<vmem>>, vector<1x8x16xf32>
      %148 = vector.shape_cast %147 : vector<1x8x16xf32> to vector<8x16xf32>
      %149 = vector.shape_cast %146 : vector<8x16xf32> to vector<1x8x16xf32>
      tpu.vector_store %arg7[%c0_47, %c16_48, %c0_49], %149 {strides = array<i32>} : memref<1x48x16xf32, #tpu.memory_space<vmem>>, vector<1x8x16xf32>,
      %150 = vector.shape_cast %142 : vector<8x1xi1> to vector<8x1xi1>
      %151 = vector.broadcast %150 : vector<8x1xi1> to vector<8x16xi1>
      %152 = arith.select %151, %140, %109 : vector<8x16xi1>, vector<8x16xf32>
      %c24 = arith.constant 24 : index
      %c0_50 = arith.constant 0 : index
      %153 = vector.load %arg8[%c24, %c0_50] : memref<48x48xf32, #tpu.memory_space<vmem>>, vector<8x48xf32>
      %154 = arith.truncf %152 : vector<8x16xf32> to vector<8x16xbf16>
      %cst_51 = arith.constant dense<0.000000e+00> : vector<8x48xf32>
      %155 = tpu.matmul %154, %13, %cst_51 {dimension_numbers = #tpu.dot_dimension_numbers<[1], [0], [0], [1], [0, 0, 1, 1], [], []>} : vector<8x16xbf16>, vector<16x48xbf16>, vector<8x48xf32> -> vector<8x48xf32>
      %156 = vector.broadcast %15 : vector<1x48xf32> to vector<8x48xf32>
      %157 = arith.addf %155, %156 : vector<8x48xf32>
      %158 = vector.extract_strided_slice %153 {offsets = [0, 0], sizes = [8, 16], strides = [1, 1]} : vector<8x48xf32> to vector<8x16xf32>
      %159 = vector.extract_strided_slice %157 {offsets = [0, 0], sizes = [8, 16], strides = [1, 1]} : vector<8x48xf32> to vector<8x16xf32>
      %160 = arith.addf %158, %159 : vector<8x16xf32>
      %161 = arith.negf %160 : vector<8x16xf32>
      %162 = math.exp %161 : vector<8x16xf32>
      %cst_52 = arith.constant 1.000000e+00 : f32
      %163 = vector.broadcast %cst_52 : f32 to vector<8x16xf32>
      %164 = arith.addf %163, %162 : vector<8x16xf32>
      %165 = arith.divf %163, %164 : vector<8x16xf32>
      %166 = vector.extract_strided_slice %153 {offsets = [0, 16], sizes = [8, 16], strides = [1, 1]} : vector<8x48xf32> to vector<8x16xf32>
      %167 = vector.extract_strided_slice %157 {offsets = [0, 16], sizes = [8, 16], strides = [1, 1]} : vector<8x48xf32> to vector<8x16xf32>
      %168 = arith.addf %166, %167 : vector<8x16xf32>
      %169 = arith.negf %168 : vector<8x16xf32>
      %170 = math.exp %169 : vector<8x16xf32>
      %cst_53 = arith.constant 1.000000e+00 : f32
      %171 = vector.broadcast %cst_53 : f32 to vector<8x16xf32>
      %172 = arith.addf %171, %170 : vector<8x16xf32>
      %173 = arith.divf %171, %172 : vector<8x16xf32>
      %174 = vector.extract_strided_slice %153 {offsets = [0, 32], sizes = [8, 16], strides = [1, 1]} : vector<8x48xf32> to vector<8x16xf32>
      %175 = vector.extract_strided_slice %157 {offsets = [0, 32], sizes = [8, 16], strides = [1, 1]} : vector<8x48xf32> to vector<8x16xf32>
      %176 = arith.mulf %165, %175 : vector<8x16xf32>
      %177 = arith.addf %174, %176 : vector<8x16xf32>
      %178 = math.tanh %177 : vector<8x16xf32>
      %cst_54 = arith.constant 1.000000e+00 : f32
      %179 = vector.broadcast %cst_54 : f32 to vector<8x16xf32>
      %180 = arith.subf %179, %173 : vector<8x16xf32>
      %181 = arith.mulf %180, %178 : vector<8x16xf32>
      %182 = arith.mulf %173, %152 : vector<8x16xf32>
      %183 = arith.addf %181, %182 : vector<8x16xf32>
      %c3_i32 = arith.constant 3 : i32
      %184 = vector.broadcast %c3_i32 : i32 to vector<8x1xi32>
      %185 = arith.cmpi sgt, %16, %184 : vector<8x1xi32>
      %cst_55 = arith.constant 0.000000e+00 : f32
      %186 = vector.shape_cast %185 : vector<8x1xi1> to vector<8x1xi1>
      %187 = vector.broadcast %186 : vector<8x1xi1> to vector<8x16xi1>
      %188 = vector.broadcast %cst_55 : f32 to vector<8x16xf32>
      %189 = arith.select %187, %183, %188 : vector<8x16xi1>, vector<8x16xf32>
      %c0_56 = arith.constant 0 : index
      %c24_57 = arith.constant 24 : index
      %c0_58 = arith.constant 0 : index
      %190 = vector.load %arg7[%c0_56, %c24_57, %c0_58] : memref<1x48x16xf32, #tpu.memory_space<vmem>>, vector<1x8x16xf32>
      %191 = vector.shape_cast %190 : vector<1x8x16xf32> to vector<8x16xf32>
      %192 = vector.shape_cast %189 : vector<8x16xf32> to vector<1x8x16xf32>
      tpu.vector_store %arg7[%c0_56, %c24_57, %c0_58], %192 {strides = array<i32>} : memref<1x48x16xf32, #tpu.memory_space<vmem>>, vector<1x8x16xf32>,
      %193 = vector.shape_cast %185 : vector<8x1xi1> to vector<8x1xi1>
      %194 = vector.broadcast %193 : vector<8x1xi1> to vector<8x16xi1>
      %195 = arith.select %194, %183, %152 : vector<8x16xi1>, vector<8x16xf32>
      %c32 = arith.constant 32 : index
      %c0_59 = arith.constant 0 : index
      %196 = vector.load %arg8[%c32, %c0_59] : memref<48x48xf32, #tpu.memory_space<vmem>>, vector<8x48xf32>
      %197 = arith.truncf %195 : vector<8x16xf32> to vector<8x16xbf16>
      %cst_60 = arith.constant dense<0.000000e+00> : vector<8x48xf32>
      %198 = tpu.matmul %197, %13, %cst_60 {dimension_numbers = #tpu.dot_dimension_numbers<[1], [0], [0], [1], [0, 0, 1, 1], [], []>} : vector<8x16xbf16>, vector<16x48xbf16>, vector<8x48xf32> -> vector<8x48xf32>
      %199 = vector.broadcast %15 : vector<1x48xf32> to vector<8x48xf32>
      %200 = arith.addf %198, %199 : vector<8x48xf32>
      %201 = vector.extract_strided_slice %196 {offsets = [0, 0], sizes = [8, 16], strides = [1, 1]} : vector<8x48xf32> to vector<8x16xf32>
      %202 = vector.extract_strided_slice %200 {offsets = [0, 0], sizes = [8, 16], strides = [1, 1]} : vector<8x48xf32> to vector<8x16xf32>
      %203 = arith.addf %201, %202 : vector<8x16xf32>
      %204 = arith.negf %203 : vector<8x16xf32>
      %205 = math.exp %204 : vector<8x16xf32>
      %cst_61 = arith.constant 1.000000e+00 : f32
      %206 = vector.broadcast %cst_61 : f32 to vector<8x16xf32>
      %207 = arith.addf %206, %205 : vector<8x16xf32>
      %208 = arith.divf %206, %207 : vector<8x16xf32>
      %209 = vector.extract_strided_slice %196 {offsets = [0, 16], sizes = [8, 16], strides = [1, 1]} : vector<8x48xf32> to vector<8x16xf32>
      %210 = vector.extract_strided_slice %200 {offsets = [0, 16], sizes = [8, 16], strides = [1, 1]} : vector<8x48xf32> to vector<8x16xf32>
      %211 = arith.addf %209, %210 : vector<8x16xf32>
      %212 = arith.negf %211 : vector<8x16xf32>
      %213 = math.exp %212 : vector<8x16xf32>
      %cst_62 = arith.constant 1.000000e+00 : f32
      %214 = vector.broadcast %cst_62 : f32 to vector<8x16xf32>
      %215 = arith.addf %214, %213 : vector<8x16xf32>
      %216 = arith.divf %214, %215 : vector<8x16xf32>
      %217 = vector.extract_strided_slice %196 {offsets = [0, 32], sizes = [8, 16], strides = [1, 1]} : vector<8x48xf32> to vector<8x16xf32>
      %218 = vector.extract_strided_slice %200 {offsets = [0, 32], sizes = [8, 16], strides = [1, 1]} : vector<8x48xf32> to vector<8x16xf32>
      %219 = arith.mulf %208, %218 : vector<8x16xf32>
      %220 = arith.addf %217, %219 : vector<8x16xf32>
      %221 = math.tanh %220 : vector<8x16xf32>
      %cst_63 = arith.constant 1.000000e+00 : f32
      %222 = vector.broadcast %cst_63 : f32 to vector<8x16xf32>
      %223 = arith.subf %222, %216 : vector<8x16xf32>
      %224 = arith.mulf %223, %221 : vector<8x16xf32>
      %225 = arith.mulf %216, %195 : vector<8x16xf32>
      %226 = arith.addf %224, %225 : vector<8x16xf32>
      %c4_i32 = arith.constant 4 : i32
      %227 = vector.broadcast %c4_i32 : i32 to vector<8x1xi32>
      %228 = arith.cmpi sgt, %16, %227 : vector<8x1xi32>
      %cst_64 = arith.constant 0.000000e+00 : f32
      %229 = vector.shape_cast %228 : vector<8x1xi1> to vector<8x1xi1>
      %230 = vector.broadcast %229 : vector<8x1xi1> to vector<8x16xi1>
      %231 = vector.broadcast %cst_64 : f32 to vector<8x16xf32>
      %232 = arith.select %230, %226, %231 : vector<8x16xi1>, vector<8x16xf32>
      %c0_65 = arith.constant 0 : index
      %c32_66 = arith.constant 32 : index
      %c0_67 = arith.constant 0 : index
      %233 = vector.load %arg7[%c0_65, %c32_66, %c0_67] : memref<1x48x16xf32, #tpu.memory_space<vmem>>, vector<1x8x16xf32>
      %234 = vector.shape_cast %233 : vector<1x8x16xf32> to vector<8x16xf32>
      %235 = vector.shape_cast %232 : vector<8x16xf32> to vector<1x8x16xf32>
      tpu.vector_store %arg7[%c0_65, %c32_66, %c0_67], %235 {strides = array<i32>} : memref<1x48x16xf32, #tpu.memory_space<vmem>>, vector<1x8x16xf32>,
      %236 = vector.shape_cast %228 : vector<8x1xi1> to vector<8x1xi1>
      %237 = vector.broadcast %236 : vector<8x1xi1> to vector<8x16xi1>
      %238 = arith.select %237, %226, %195 : vector<8x16xi1>, vector<8x16xf32>
      %c40 = arith.constant 40 : index
      %c0_68 = arith.constant 0 : index
      %239 = vector.load %arg8[%c40, %c0_68] : memref<48x48xf32, #tpu.memory_space<vmem>>, vector<8x48xf32>
      %240 = arith.truncf %238 : vector<8x16xf32> to vector<8x16xbf16>
      %cst_69 = arith.constant dense<0.000000e+00> : vector<8x48xf32>
      %241 = tpu.matmul %240, %13, %cst_69 {dimension_numbers = #tpu.dot_dimension_numbers<[1], [0], [0], [1], [0, 0, 1, 1], [], []>} : vector<8x16xbf16>, vector<16x48xbf16>, vector<8x48xf32> -> vector<8x48xf32>
      %242 = vector.broadcast %15 : vector<1x48xf32> to vector<8x48xf32>
      %243 = arith.addf %241, %242 : vector<8x48xf32>
      %244 = vector.extract_strided_slice %239 {offsets = [0, 0], sizes = [8, 16], strides = [1, 1]} : vector<8x48xf32> to vector<8x16xf32>
      %245 = vector.extract_strided_slice %243 {offsets = [0, 0], sizes = [8, 16], strides = [1, 1]} : vector<8x48xf32> to vector<8x16xf32>
      %246 = arith.addf %244, %245 : vector<8x16xf32>
      %247 = arith.negf %246 : vector<8x16xf32>
      %248 = math.exp %247 : vector<8x16xf32>
      %cst_70 = arith.constant 1.000000e+00 : f32
      %249 = vector.broadcast %cst_70 : f32 to vector<8x16xf32>
      %250 = arith.addf %249, %248 : vector<8x16xf32>
      %251 = arith.divf %249, %250 : vector<8x16xf32>
      %252 = vector.extract_strided_slice %239 {offsets = [0, 16], sizes = [8, 16], strides = [1, 1]} : vector<8x48xf32> to vector<8x16xf32>
      %253 = vector.extract_strided_slice %243 {offsets = [0, 16], sizes = [8, 16], strides = [1, 1]} : vector<8x48xf32> to vector<8x16xf32>
      %254 = arith.addf %252, %253 : vector<8x16xf32>
      %255 = arith.negf %254 : vector<8x16xf32>
      %256 = math.exp %255 : vector<8x16xf32>
      %cst_71 = arith.constant 1.000000e+00 : f32
      %257 = vector.broadcast %cst_71 : f32 to vector<8x16xf32>
      %258 = arith.addf %257, %256 : vector<8x16xf32>
      %259 = arith.divf %257, %258 : vector<8x16xf32>
      %260 = vector.extract_strided_slice %239 {offsets = [0, 32], sizes = [8, 16], strides = [1, 1]} : vector<8x48xf32> to vector<8x16xf32>
      %261 = vector.extract_strided_slice %243 {offsets = [0, 32], sizes = [8, 16], strides = [1, 1]} : vector<8x48xf32> to vector<8x16xf32>
      %262 = arith.mulf %251, %261 : vector<8x16xf32>
      %263 = arith.addf %260, %262 : vector<8x16xf32>
      %264 = math.tanh %263 : vector<8x16xf32>
      %cst_72 = arith.constant 1.000000e+00 : f32
      %265 = vector.broadcast %cst_72 : f32 to vector<8x16xf32>
      %266 = arith.subf %265, %259 : vector<8x16xf32>
      %267 = arith.mulf %266, %264 : vector<8x16xf32>
      %268 = arith.mulf %259, %238 : vector<8x16xf32>
      %269 = arith.addf %267, %268 : vector<8x16xf32>
      %c5_i32 = arith.constant 5 : i32
      %270 = vector.broadcast %c5_i32 : i32 to vector<8x1xi32>
      %271 = arith.cmpi sgt, %16, %270 : vector<8x1xi32>
      %cst_73 = arith.constant 0.000000e+00 : f32
      %272 = vector.shape_cast %271 : vector<8x1xi1> to vector<8x1xi1>
      %273 = vector.broadcast %272 : vector<8x1xi1> to vector<8x16xi1>
      %274 = vector.broadcast %cst_73 : f32 to vector<8x16xf32>
      %275 = arith.select %273, %269, %274 : vector<8x16xi1>, vector<8x16xf32>
      %c0_74 = arith.constant 0 : index
      %c40_75 = arith.constant 40 : index
      %c0_76 = arith.constant 0 : index
      %276 = vector.load %arg7[%c0_74, %c40_75, %c0_76] : memref<1x48x16xf32, #tpu.memory_space<vmem>>, vector<1x8x16xf32>
      %277 = vector.shape_cast %276 : vector<1x8x16xf32> to vector<8x16xf32>
      %278 = vector.shape_cast %275 : vector<8x16xf32> to vector<1x8x16xf32>
      tpu.vector_store %arg7[%c0_74, %c40_75, %c0_76], %278 {strides = array<i32>} : memref<1x48x16xf32, #tpu.memory_space<vmem>>, vector<1x8x16xf32>,
    } else {
    }
    %c1_i32 = arith.constant 1 : i32
    %20 = arith.cmpi eq, %arg0, %c1_i32 : i32
    %21 = arith.extui %20 : i1 to i32
    %c0_i32_18 = arith.constant 0 : i32
    %22 = arith.cmpi ne, %21, %c0_i32_18 : i32
    scf.if %22 {
      %cst_19 = arith.constant 0.000000e+00 : f32
      %23 = vector.broadcast %cst_19 : f32 to vector<8x16xf32>
      %c40 = arith.constant 40 : index
      %c0_20 = arith.constant 0 : index
      %24 = vector.load %arg8[%c40, %c0_20] : memref<48x48xf32, #tpu.memory_space<vmem>>, vector<8x48xf32>
      %25 = arith.truncf %23 : vector<8x16xf32> to vector<8x16xbf16>
      %cst_21 = arith.constant dense<0.000000e+00> : vector<8x48xf32>
      %26 = tpu.matmul %25, %13, %cst_21 {dimension_numbers = #tpu.dot_dimension_numbers<[1], [0], [0], [1], [0, 0, 1, 1], [], []>} : vector<8x16xbf16>, vector<16x48xbf16>, vector<8x48xf32> -> vector<8x48xf32>
      %27 = vector.broadcast %15 : vector<1x48xf32> to vector<8x48xf32>
      %28 = arith.addf %26, %27 : vector<8x48xf32>
      %29 = vector.extract_strided_slice %24 {offsets = [0, 0], sizes = [8, 16], strides = [1, 1]} : vector<8x48xf32> to vector<8x16xf32>
      %30 = vector.extract_strided_slice %28 {offsets = [0, 0], sizes = [8, 16], strides = [1, 1]} : vector<8x48xf32> to vector<8x16xf32>
      %31 = arith.addf %29, %30 : vector<8x16xf32>
      %32 = arith.negf %31 : vector<8x16xf32>
      %33 = math.exp %32 : vector<8x16xf32>
      %cst_22 = arith.constant 1.000000e+00 : f32
      %34 = vector.broadcast %cst_22 : f32 to vector<8x16xf32>
      %35 = arith.addf %34, %33 : vector<8x16xf32>
      %36 = arith.divf %34, %35 : vector<8x16xf32>
      %37 = vector.extract_strided_slice %24 {offsets = [0, 16], sizes = [8, 16], strides = [1, 1]} : vector<8x48xf32> to vector<8x16xf32>
      %38 = vector.extract_strided_slice %28 {offsets = [0, 16], sizes = [8, 16], strides = [1, 1]} : vector<8x48xf32> to vector<8x16xf32>
      %39 = arith.addf %37, %38 : vector<8x16xf32>
      %40 = arith.negf %39 : vector<8x16xf32>
      %41 = math.exp %40 : vector<8x16xf32>
      %cst_23 = arith.constant 1.000000e+00 : f32
      %42 = vector.broadcast %cst_23 : f32 to vector<8x16xf32>
      %43 = arith.addf %42, %41 : vector<8x16xf32>
      %44 = arith.divf %42, %43 : vector<8x16xf32>
      %45 = vector.extract_strided_slice %24 {offsets = [0, 32], sizes = [8, 16], strides = [1, 1]} : vector<8x48xf32> to vector<8x16xf32>
      %46 = vector.extract_strided_slice %28 {offsets = [0, 32], sizes = [8, 16], strides = [1, 1]} : vector<8x48xf32> to vector<8x16xf32>
      %47 = arith.mulf %36, %46 : vector<8x16xf32>
      %48 = arith.addf %45, %47 : vector<8x16xf32>
      %49 = math.tanh %48 : vector<8x16xf32>
      %cst_24 = arith.constant 1.000000e+00 : f32
      %50 = vector.broadcast %cst_24 : f32 to vector<8x16xf32>
      %51 = arith.subf %50, %44 : vector<8x16xf32>
      %52 = arith.mulf %51, %49 : vector<8x16xf32>
      %53 = arith.mulf %44, %23 : vector<8x16xf32>
      %54 = arith.addf %52, %53 : vector<8x16xf32>
      %c5_i32 = arith.constant 5 : i32
      %55 = vector.broadcast %c5_i32 : i32 to vector<8x1xi32>
      %56 = arith.cmpi sgt, %16, %55 : vector<8x1xi32>
      %cst_25 = arith.constant 0.000000e+00 : f32
      %57 = vector.shape_cast %56 : vector<8x1xi1> to vector<8x1xi1>
      %58 = vector.broadcast %57 : vector<8x1xi1> to vector<8x16xi1>
      %59 = vector.broadcast %cst_25 : f32 to vector<8x16xf32>
      %60 = arith.select %58, %54, %59 : vector<8x16xi1>, vector<8x16xf32>
      %c0_26 = arith.constant 0 : index
      %c40_27 = arith.constant 40 : index
      %c0_28 = arith.constant 0 : index
      %61 = vector.load %arg7[%c0_26, %c40_27, %c0_28] : memref<1x48x16xf32, #tpu.memory_space<vmem>>, vector<1x8x16xf32>
      %62 = vector.shape_cast %61 : vector<1x8x16xf32> to vector<8x16xf32>
      %63 = vector.shape_cast %60 : vector<8x16xf32> to vector<1x8x16xf32>
      tpu.vector_store %arg7[%c0_26, %c40_27, %c0_28], %63 {strides = array<i32>} : memref<1x48x16xf32, #tpu.memory_space<vmem>>, vector<1x8x16xf32>,
      %64 = vector.shape_cast %56 : vector<8x1xi1> to vector<8x1xi1>
      %65 = vector.broadcast %64 : vector<8x1xi1> to vector<8x16xi1>
      %66 = arith.select %65, %54, %23 : vector<8x16xi1>, vector<8x16xf32>
      %c32 = arith.constant 32 : index
      %c0_29 = arith.constant 0 : index
      %67 = vector.load %arg8[%c32, %c0_29] : memref<48x48xf32, #tpu.memory_space<vmem>>, vector<8x48xf32>
      %68 = arith.truncf %66 : vector<8x16xf32> to vector<8x16xbf16>
      %cst_30 = arith.constant dense<0.000000e+00> : vector<8x48xf32>
      %69 = tpu.matmul %68, %13, %cst_30 {dimension_numbers = #tpu.dot_dimension_numbers<[1], [0], [0], [1], [0, 0, 1, 1], [], []>} : vector<8x16xbf16>, vector<16x48xbf16>, vector<8x48xf32> -> vector<8x48xf32>
      %70 = vector.broadcast %15 : vector<1x48xf32> to vector<8x48xf32>
      %71 = arith.addf %69, %70 : vector<8x48xf32>
      %72 = vector.extract_strided_slice %67 {offsets = [0, 0], sizes = [8, 16], strides = [1, 1]} : vector<8x48xf32> to vector<8x16xf32>
      %73 = vector.extract_strided_slice %71 {offsets = [0, 0], sizes = [8, 16], strides = [1, 1]} : vector<8x48xf32> to vector<8x16xf32>
      %74 = arith.addf %72, %73 : vector<8x16xf32>
      %75 = arith.negf %74 : vector<8x16xf32>
      %76 = math.exp %75 : vector<8x16xf32>
      %cst_31 = arith.constant 1.000000e+00 : f32
      %77 = vector.broadcast %cst_31 : f32 to vector<8x16xf32>
      %78 = arith.addf %77, %76 : vector<8x16xf32>
      %79 = arith.divf %77, %78 : vector<8x16xf32>
      %80 = vector.extract_strided_slice %67 {offsets = [0, 16], sizes = [8, 16], strides = [1, 1]} : vector<8x48xf32> to vector<8x16xf32>
      %81 = vector.extract_strided_slice %71 {offsets = [0, 16], sizes = [8, 16], strides = [1, 1]} : vector<8x48xf32> to vector<8x16xf32>
      %82 = arith.addf %80, %81 : vector<8x16xf32>
      %83 = arith.negf %82 : vector<8x16xf32>
      %84 = math.exp %83 : vector<8x16xf32>
      %cst_32 = arith.constant 1.000000e+00 : f32
      %85 = vector.broadcast %cst_32 : f32 to vector<8x16xf32>
      %86 = arith.addf %85, %84 : vector<8x16xf32>
      %87 = arith.divf %85, %86 : vector<8x16xf32>
      %88 = vector.extract_strided_slice %67 {offsets = [0, 32], sizes = [8, 16], strides = [1, 1]} : vector<8x48xf32> to vector<8x16xf32>
      %89 = vector.extract_strided_slice %71 {offsets = [0, 32], sizes = [8, 16], strides = [1, 1]} : vector<8x48xf32> to vector<8x16xf32>
      %90 = arith.mulf %79, %89 : vector<8x16xf32>
      %91 = arith.addf %88, %90 : vector<8x16xf32>
      %92 = math.tanh %91 : vector<8x16xf32>
      %cst_33 = arith.constant 1.000000e+00 : f32
      %93 = vector.broadcast %cst_33 : f32 to vector<8x16xf32>
      %94 = arith.subf %93, %87 : vector<8x16xf32>
      %95 = arith.mulf %94, %92 : vector<8x16xf32>
      %96 = arith.mulf %87, %66 : vector<8x16xf32>
      %97 = arith.addf %95, %96 : vector<8x16xf32>
      %c4_i32 = arith.constant 4 : i32
      %98 = vector.broadcast %c4_i32 : i32 to vector<8x1xi32>
      %99 = arith.cmpi sgt, %16, %98 : vector<8x1xi32>
      %cst_34 = arith.constant 0.000000e+00 : f32
      %100 = vector.shape_cast %99 : vector<8x1xi1> to vector<8x1xi1>
      %101 = vector.broadcast %100 : vector<8x1xi1> to vector<8x16xi1>
      %102 = vector.broadcast %cst_34 : f32 to vector<8x16xf32>
      %103 = arith.select %101, %97, %102 : vector<8x16xi1>, vector<8x16xf32>
      %c0_35 = arith.constant 0 : index
      %c32_36 = arith.constant 32 : index
      %c0_37 = arith.constant 0 : index
      %104 = vector.load %arg7[%c0_35, %c32_36, %c0_37] : memref<1x48x16xf32, #tpu.memory_space<vmem>>, vector<1x8x16xf32>
      %105 = vector.shape_cast %104 : vector<1x8x16xf32> to vector<8x16xf32>
      %106 = vector.shape_cast %103 : vector<8x16xf32> to vector<1x8x16xf32>
      tpu.vector_store %arg7[%c0_35, %c32_36, %c0_37], %106 {strides = array<i32>} : memref<1x48x16xf32, #tpu.memory_space<vmem>>, vector<1x8x16xf32>,
      %107 = vector.shape_cast %99 : vector<8x1xi1> to vector<8x1xi1>
      %108 = vector.broadcast %107 : vector<8x1xi1> to vector<8x16xi1>
      %109 = arith.select %108, %97, %66 : vector<8x16xi1>, vector<8x16xf32>
      %c24 = arith.constant 24 : index
      %c0_38 = arith.constant 0 : index
      %110 = vector.load %arg8[%c24, %c0_38] : memref<48x48xf32, #tpu.memory_space<vmem>>, vector<8x48xf32>
      %111 = arith.truncf %109 : vector<8x16xf32> to vector<8x16xbf16>
      %cst_39 = arith.constant dense<0.000000e+00> : vector<8x48xf32>
      %112 = tpu.matmul %111, %13, %cst_39 {dimension_numbers = #tpu.dot_dimension_numbers<[1], [0], [0], [1], [0, 0, 1, 1], [], []>} : vector<8x16xbf16>, vector<16x48xbf16>, vector<8x48xf32> -> vector<8x48xf32>
      %113 = vector.broadcast %15 : vector<1x48xf32> to vector<8x48xf32>
      %114 = arith.addf %112, %113 : vector<8x48xf32>
      %115 = vector.extract_strided_slice %110 {offsets = [0, 0], sizes = [8, 16], strides = [1, 1]} : vector<8x48xf32> to vector<8x16xf32>
      %116 = vector.extract_strided_slice %114 {offsets = [0, 0], sizes = [8, 16], strides = [1, 1]} : vector<8x48xf32> to vector<8x16xf32>
      %117 = arith.addf %115, %116 : vector<8x16xf32>
      %118 = arith.negf %117 : vector<8x16xf32>
      %119 = math.exp %118 : vector<8x16xf32>
      %cst_40 = arith.constant 1.000000e+00 : f32
      %120 = vector.broadcast %cst_40 : f32 to vector<8x16xf32>
      %121 = arith.addf %120, %119 : vector<8x16xf32>
      %122 = arith.divf %120, %121 : vector<8x16xf32>
      %123 = vector.extract_strided_slice %110 {offsets = [0, 16], sizes = [8, 16], strides = [1, 1]} : vector<8x48xf32> to vector<8x16xf32>
      %124 = vector.extract_strided_slice %114 {offsets = [0, 16], sizes = [8, 16], strides = [1, 1]} : vector<8x48xf32> to vector<8x16xf32>
      %125 = arith.addf %123, %124 : vector<8x16xf32>
      %126 = arith.negf %125 : vector<8x16xf32>
      %127 = math.exp %126 : vector<8x16xf32>
      %cst_41 = arith.constant 1.000000e+00 : f32
      %128 = vector.broadcast %cst_41 : f32 to vector<8x16xf32>
      %129 = arith.addf %128, %127 : vector<8x16xf32>
      %130 = arith.divf %128, %129 : vector<8x16xf32>
      %131 = vector.extract_strided_slice %110 {offsets = [0, 32], sizes = [8, 16], strides = [1, 1]} : vector<8x48xf32> to vector<8x16xf32>
      %132 = vector.extract_strided_slice %114 {offsets = [0, 32], sizes = [8, 16], strides = [1, 1]} : vector<8x48xf32> to vector<8x16xf32>
      %133 = arith.mulf %122, %132 : vector<8x16xf32>
      %134 = arith.addf %131, %133 : vector<8x16xf32>
      %135 = math.tanh %134 : vector<8x16xf32>
      %cst_42 = arith.constant 1.000000e+00 : f32
      %136 = vector.broadcast %cst_42 : f32 to vector<8x16xf32>
      %137 = arith.subf %136, %130 : vector<8x16xf32>
      %138 = arith.mulf %137, %135 : vector<8x16xf32>
      %139 = arith.mulf %130, %109 : vector<8x16xf32>
      %140 = arith.addf %138, %139 : vector<8x16xf32>
      %c3_i32 = arith.constant 3 : i32
      %141 = vector.broadcast %c3_i32 : i32 to vector<8x1xi32>
      %142 = arith.cmpi sgt, %16, %141 : vector<8x1xi32>
      %cst_43 = arith.constant 0.000000e+00 : f32
      %143 = vector.shape_cast %142 : vector<8x1xi1> to vector<8x1xi1>
      %144 = vector.broadcast %143 : vector<8x1xi1> to vector<8x16xi1>
      %145 = vector.broadcast %cst_43 : f32 to vector<8x16xf32>
      %146 = arith.select %144, %140, %145 : vector<8x16xi1>, vector<8x16xf32>
      %c0_44 = arith.constant 0 : index
      %c24_45 = arith.constant 24 : index
      %c0_46 = arith.constant 0 : index
      %147 = vector.load %arg7[%c0_44, %c24_45, %c0_46] : memref<1x48x16xf32, #tpu.memory_space<vmem>>, vector<1x8x16xf32>
      %148 = vector.shape_cast %147 : vector<1x8x16xf32> to vector<8x16xf32>
      %149 = vector.shape_cast %146 : vector<8x16xf32> to vector<1x8x16xf32>
      tpu.vector_store %arg7[%c0_44, %c24_45, %c0_46], %149 {strides = array<i32>} : memref<1x48x16xf32, #tpu.memory_space<vmem>>, vector<1x8x16xf32>,
      %150 = vector.shape_cast %142 : vector<8x1xi1> to vector<8x1xi1>
      %151 = vector.broadcast %150 : vector<8x1xi1> to vector<8x16xi1>
      %152 = arith.select %151, %140, %109 : vector<8x16xi1>, vector<8x16xf32>
      %c16 = arith.constant 16 : index
      %c0_47 = arith.constant 0 : index
      %153 = vector.load %arg8[%c16, %c0_47] : memref<48x48xf32, #tpu.memory_space<vmem>>, vector<8x48xf32>
      %154 = arith.truncf %152 : vector<8x16xf32> to vector<8x16xbf16>
      %cst_48 = arith.constant dense<0.000000e+00> : vector<8x48xf32>
      %155 = tpu.matmul %154, %13, %cst_48 {dimension_numbers = #tpu.dot_dimension_numbers<[1], [0], [0], [1], [0, 0, 1, 1], [], []>} : vector<8x16xbf16>, vector<16x48xbf16>, vector<8x48xf32> -> vector<8x48xf32>
      %156 = vector.broadcast %15 : vector<1x48xf32> to vector<8x48xf32>
      %157 = arith.addf %155, %156 : vector<8x48xf32>
      %158 = vector.extract_strided_slice %153 {offsets = [0, 0], sizes = [8, 16], strides = [1, 1]} : vector<8x48xf32> to vector<8x16xf32>
      %159 = vector.extract_strided_slice %157 {offsets = [0, 0], sizes = [8, 16], strides = [1, 1]} : vector<8x48xf32> to vector<8x16xf32>
      %160 = arith.addf %158, %159 : vector<8x16xf32>
      %161 = arith.negf %160 : vector<8x16xf32>
      %162 = math.exp %161 : vector<8x16xf32>
      %cst_49 = arith.constant 1.000000e+00 : f32
      %163 = vector.broadcast %cst_49 : f32 to vector<8x16xf32>
      %164 = arith.addf %163, %162 : vector<8x16xf32>
      %165 = arith.divf %163, %164 : vector<8x16xf32>
      %166 = vector.extract_strided_slice %153 {offsets = [0, 16], sizes = [8, 16], strides = [1, 1]} : vector<8x48xf32> to vector<8x16xf32>
      %167 = vector.extract_strided_slice %157 {offsets = [0, 16], sizes = [8, 16], strides = [1, 1]} : vector<8x48xf32> to vector<8x16xf32>
      %168 = arith.addf %166, %167 : vector<8x16xf32>
      %169 = arith.negf %168 : vector<8x16xf32>
      %170 = math.exp %169 : vector<8x16xf32>
      %cst_50 = arith.constant 1.000000e+00 : f32
      %171 = vector.broadcast %cst_50 : f32 to vector<8x16xf32>
      %172 = arith.addf %171, %170 : vector<8x16xf32>
      %173 = arith.divf %171, %172 : vector<8x16xf32>
      %174 = vector.extract_strided_slice %153 {offsets = [0, 32], sizes = [8, 16], strides = [1, 1]} : vector<8x48xf32> to vector<8x16xf32>
      %175 = vector.extract_strided_slice %157 {offsets = [0, 32], sizes = [8, 16], strides = [1, 1]} : vector<8x48xf32> to vector<8x16xf32>
      %176 = arith.mulf %165, %175 : vector<8x16xf32>
      %177 = arith.addf %174, %176 : vector<8x16xf32>
      %178 = math.tanh %177 : vector<8x16xf32>
      %cst_51 = arith.constant 1.000000e+00 : f32
      %179 = vector.broadcast %cst_51 : f32 to vector<8x16xf32>
      %180 = arith.subf %179, %173 : vector<8x16xf32>
      %181 = arith.mulf %180, %178 : vector<8x16xf32>
      %182 = arith.mulf %173, %152 : vector<8x16xf32>
      %183 = arith.addf %181, %182 : vector<8x16xf32>
      %c2_i32 = arith.constant 2 : i32
      %184 = vector.broadcast %c2_i32 : i32 to vector<8x1xi32>
      %185 = arith.cmpi sgt, %16, %184 : vector<8x1xi32>
      %cst_52 = arith.constant 0.000000e+00 : f32
      %186 = vector.shape_cast %185 : vector<8x1xi1> to vector<8x1xi1>
      %187 = vector.broadcast %186 : vector<8x1xi1> to vector<8x16xi1>
      %188 = vector.broadcast %cst_52 : f32 to vector<8x16xf32>
      %189 = arith.select %187, %183, %188 : vector<8x16xi1>, vector<8x16xf32>
      %c0_53 = arith.constant 0 : index
      %c16_54 = arith.constant 16 : index
      %c0_55 = arith.constant 0 : index
      %190 = vector.load %arg7[%c0_53, %c16_54, %c0_55] : memref<1x48x16xf32, #tpu.memory_space<vmem>>, vector<1x8x16xf32>
      %191 = vector.shape_cast %190 : vector<1x8x16xf32> to vector<8x16xf32>
      %192 = vector.shape_cast %189 : vector<8x16xf32> to vector<1x8x16xf32>
      tpu.vector_store %arg7[%c0_53, %c16_54, %c0_55], %192 {strides = array<i32>} : memref<1x48x16xf32, #tpu.memory_space<vmem>>, vector<1x8x16xf32>,
      %193 = vector.shape_cast %185 : vector<8x1xi1> to vector<8x1xi1>
      %194 = vector.broadcast %193 : vector<8x1xi1> to vector<8x16xi1>
      %195 = arith.select %194, %183, %152 : vector<8x16xi1>, vector<8x16xf32>
      %c8 = arith.constant 8 : index
      %c0_56 = arith.constant 0 : index
      %196 = vector.load %arg8[%c8, %c0_56] : memref<48x48xf32, #tpu.memory_space<vmem>>, vector<8x48xf32>
      %197 = arith.truncf %195 : vector<8x16xf32> to vector<8x16xbf16>
      %cst_57 = arith.constant dense<0.000000e+00> : vector<8x48xf32>
      %198 = tpu.matmul %197, %13, %cst_57 {dimension_numbers = #tpu.dot_dimension_numbers<[1], [0], [0], [1], [0, 0, 1, 1], [], []>} : vector<8x16xbf16>, vector<16x48xbf16>, vector<8x48xf32> -> vector<8x48xf32>
      %199 = vector.broadcast %15 : vector<1x48xf32> to vector<8x48xf32>
      %200 = arith.addf %198, %199 : vector<8x48xf32>
      %201 = vector.extract_strided_slice %196 {offsets = [0, 0], sizes = [8, 16], strides = [1, 1]} : vector<8x48xf32> to vector<8x16xf32>
      %202 = vector.extract_strided_slice %200 {offsets = [0, 0], sizes = [8, 16], strides = [1, 1]} : vector<8x48xf32> to vector<8x16xf32>
      %203 = arith.addf %201, %202 : vector<8x16xf32>
      %204 = arith.negf %203 : vector<8x16xf32>
      %205 = math.exp %204 : vector<8x16xf32>
      %cst_58 = arith.constant 1.000000e+00 : f32
      %206 = vector.broadcast %cst_58 : f32 to vector<8x16xf32>
      %207 = arith.addf %206, %205 : vector<8x16xf32>
      %208 = arith.divf %206, %207 : vector<8x16xf32>
      %209 = vector.extract_strided_slice %196 {offsets = [0, 16], sizes = [8, 16], strides = [1, 1]} : vector<8x48xf32> to vector<8x16xf32>
      %210 = vector.extract_strided_slice %200 {offsets = [0, 16], sizes = [8, 16], strides = [1, 1]} : vector<8x48xf32> to vector<8x16xf32>
      %211 = arith.addf %209, %210 : vector<8x16xf32>
      %212 = arith.negf %211 : vector<8x16xf32>
      %213 = math.exp %212 : vector<8x16xf32>
      %cst_59 = arith.constant 1.000000e+00 : f32
      %214 = vector.broadcast %cst_59 : f32 to vector<8x16xf32>
      %215 = arith.addf %214, %213 : vector<8x16xf32>
      %216 = arith.divf %214, %215 : vector<8x16xf32>
      %217 = vector.extract_strided_slice %196 {offsets = [0, 32], sizes = [8, 16], strides = [1, 1]} : vector<8x48xf32> to vector<8x16xf32>
      %218 = vector.extract_strided_slice %200 {offsets = [0, 32], sizes = [8, 16], strides = [1, 1]} : vector<8x48xf32> to vector<8x16xf32>
      %219 = arith.mulf %208, %218 : vector<8x16xf32>
      %220 = arith.addf %217, %219 : vector<8x16xf32>
      %221 = math.tanh %220 : vector<8x16xf32>
      %cst_60 = arith.constant 1.000000e+00 : f32
      %222 = vector.broadcast %cst_60 : f32 to vector<8x16xf32>
      %223 = arith.subf %222, %216 : vector<8x16xf32>
      %224 = arith.mulf %223, %221 : vector<8x16xf32>
      %225 = arith.mulf %216, %195 : vector<8x16xf32>
      %226 = arith.addf %224, %225 : vector<8x16xf32>
      %c1_i32_61 = arith.constant 1 : i32
      %227 = vector.broadcast %c1_i32_61 : i32 to vector<8x1xi32>
      %228 = arith.cmpi sgt, %16, %227 : vector<8x1xi32>
      %cst_62 = arith.constant 0.000000e+00 : f32
      %229 = vector.shape_cast %228 : vector<8x1xi1> to vector<8x1xi1>
      %230 = vector.broadcast %229 : vector<8x1xi1> to vector<8x16xi1>
      %231 = vector.broadcast %cst_62 : f32 to vector<8x16xf32>
      %232 = arith.select %230, %226, %231 : vector<8x16xi1>, vector<8x16xf32>
      %c0_63 = arith.constant 0 : index
      %c8_64 = arith.constant 8 : index
      %c0_65 = arith.constant 0 : index
      %233 = vector.load %arg7[%c0_63, %c8_64, %c0_65] : memref<1x48x16xf32, #tpu.memory_space<vmem>>, vector<1x8x16xf32>
      %234 = vector.shape_cast %233 : vector<1x8x16xf32> to vector<8x16xf32>
      %235 = vector.shape_cast %232 : vector<8x16xf32> to vector<1x8x16xf32>
      tpu.vector_store %arg7[%c0_63, %c8_64, %c0_65], %235 {strides = array<i32>} : memref<1x48x16xf32, #tpu.memory_space<vmem>>, vector<1x8x16xf32>,
      %236 = vector.shape_cast %228 : vector<8x1xi1> to vector<8x1xi1>
      %237 = vector.broadcast %236 : vector<8x1xi1> to vector<8x16xi1>
      %238 = arith.select %237, %226, %195 : vector<8x16xi1>, vector<8x16xf32>
      %c0_66 = arith.constant 0 : index
      %c0_67 = arith.constant 0 : index
      %239 = vector.load %arg8[%c0_66, %c0_67] : memref<48x48xf32, #tpu.memory_space<vmem>>, vector<8x48xf32>
      %240 = arith.truncf %238 : vector<8x16xf32> to vector<8x16xbf16>
      %cst_68 = arith.constant dense<0.000000e+00> : vector<8x48xf32>
      %241 = tpu.matmul %240, %13, %cst_68 {dimension_numbers = #tpu.dot_dimension_numbers<[1], [0], [0], [1], [0, 0, 1, 1], [], []>} : vector<8x16xbf16>, vector<16x48xbf16>, vector<8x48xf32> -> vector<8x48xf32>
      %242 = vector.broadcast %15 : vector<1x48xf32> to vector<8x48xf32>
      %243 = arith.addf %241, %242 : vector<8x48xf32>
      %244 = vector.extract_strided_slice %239 {offsets = [0, 0], sizes = [8, 16], strides = [1, 1]} : vector<8x48xf32> to vector<8x16xf32>
      %245 = vector.extract_strided_slice %243 {offsets = [0, 0], sizes = [8, 16], strides = [1, 1]} : vector<8x48xf32> to vector<8x16xf32>
      %246 = arith.addf %244, %245 : vector<8x16xf32>
      %247 = arith.negf %246 : vector<8x16xf32>
      %248 = math.exp %247 : vector<8x16xf32>
      %cst_69 = arith.constant 1.000000e+00 : f32
      %249 = vector.broadcast %cst_69 : f32 to vector<8x16xf32>
      %250 = arith.addf %249, %248 : vector<8x16xf32>
      %251 = arith.divf %249, %250 : vector<8x16xf32>
      %252 = vector.extract_strided_slice %239 {offsets = [0, 16], sizes = [8, 16], strides = [1, 1]} : vector<8x48xf32> to vector<8x16xf32>
      %253 = vector.extract_strided_slice %243 {offsets = [0, 16], sizes = [8, 16], strides = [1, 1]} : vector<8x48xf32> to vector<8x16xf32>
      %254 = arith.addf %252, %253 : vector<8x16xf32>
      %255 = arith.negf %254 : vector<8x16xf32>
      %256 = math.exp %255 : vector<8x16xf32>
      %cst_70 = arith.constant 1.000000e+00 : f32
      %257 = vector.broadcast %cst_70 : f32 to vector<8x16xf32>
      %258 = arith.addf %257, %256 : vector<8x16xf32>
      %259 = arith.divf %257, %258 : vector<8x16xf32>
      %260 = vector.extract_strided_slice %239 {offsets = [0, 32], sizes = [8, 16], strides = [1, 1]} : vector<8x48xf32> to vector<8x16xf32>
      %261 = vector.extract_strided_slice %243 {offsets = [0, 32], sizes = [8, 16], strides = [1, 1]} : vector<8x48xf32> to vector<8x16xf32>
      %262 = arith.mulf %251, %261 : vector<8x16xf32>
      %263 = arith.addf %260, %262 : vector<8x16xf32>
      %264 = math.tanh %263 : vector<8x16xf32>
      %cst_71 = arith.constant 1.000000e+00 : f32
      %265 = vector.broadcast %cst_71 : f32 to vector<8x16xf32>
      %266 = arith.subf %265, %259 : vector<8x16xf32>
      %267 = arith.mulf %266, %264 : vector<8x16xf32>
      %268 = arith.mulf %259, %238 : vector<8x16xf32>
      %269 = arith.addf %267, %268 : vector<8x16xf32>
      %c0_i32_72 = arith.constant 0 : i32
      %270 = vector.broadcast %c0_i32_72 : i32 to vector<8x1xi32>
      %271 = arith.cmpi sgt, %16, %270 : vector<8x1xi32>
      %cst_73 = arith.constant 0.000000e+00 : f32
      %272 = vector.shape_cast %271 : vector<8x1xi1> to vector<8x1xi1>
      %273 = vector.broadcast %272 : vector<8x1xi1> to vector<8x16xi1>
      %274 = vector.broadcast %cst_73 : f32 to vector<8x16xf32>
      %275 = arith.select %273, %269, %274 : vector<8x16xi1>, vector<8x16xf32>
      %c0_74 = arith.constant 0 : index
      %c0_75 = arith.constant 0 : index
      %c0_76 = arith.constant 0 : index
      %276 = vector.load %arg7[%c0_74, %c0_75, %c0_76] : memref<1x48x16xf32, #tpu.memory_space<vmem>>, vector<1x8x16xf32>
      %277 = vector.shape_cast %276 : vector<1x8x16xf32> to vector<8x16xf32>
      %278 = vector.shape_cast %275 : vector<8x16xf32> to vector<1x8x16xf32>
      tpu.vector_store %arg7[%c0_74, %c0_75, %c0_76], %278 {strides = array<i32>} : memref<1x48x16xf32, #tpu.memory_space<vmem>>, vector<1x8x16xf32>,
    } else {
    }
    return
  }
  func.func @transform_0(%arg0: i32) -> (i32, i32) {
    %c0_i32 = arith.constant 0 : i32
    %c0_i32_0 = arith.constant 0 : i32
    %c0_i32_1 = arith.constant 0 : i32
    return %c0_i32, %c0_i32_0 : i32, i32
  }
  func.func @transform_1(%arg0: i32) -> (i32, i32) {
    %c0_i32 = arith.constant 0 : i32
    %c0_i32_0 = arith.constant 0 : i32
    %c0_i32_1 = arith.constant 0 : i32
    return %c0_i32, %c0_i32_0 : i32, i32
  }
  func.func @transform_2(%arg0: i32) -> (i32, i32, i32) {
    %c0_i32 = arith.constant 0 : i32
    %c0_i32_0 = arith.constant 0 : i32
    %c0_i32_1 = arith.constant 0 : i32
    return %arg0, %c0_i32, %c0_i32_0 : i32, i32, i32
  }
  func.func @transform_3(%arg0: i32) -> (i32, i32, i32) {
    %c0_i32 = arith.constant 0 : i32
    %c0_i32_0 = arith.constant 0 : i32
    %c0_i32_1 = arith.constant 0 : i32
    return %arg0, %c0_i32, %c0_i32_0 : i32, i32, i32
  }
  func.func @transform_4(%arg0: i32) -> (i32, i32, i32) {
    %c0_i32 = arith.constant 0 : i32
    %c0_i32_0 = arith.constant 0 : i32
    %c0_i32_1 = arith.constant 0 : i32
    return %arg0, %c0_i32, %c0_i32_0 : i32, i32, i32
  }
  func.func @transform_5(%arg0: i32) -> (i32, i32, i32) {
    %c0_i32 = arith.constant 0 : i32
    %c0_i32_0 = arith.constant 0 : i32
    %c0_i32_1 = arith.constant 0 : i32
    return %arg0, %c0_i32, %c0_i32_0 : i32, i32, i32
  }
  func.func @transform_6(%arg0: i32) -> (i32, i32, i32) {
    %c0_i32 = arith.constant 0 : i32
    %c0_i32_0 = arith.constant 0 : i32
    %c0_i32_1 = arith.constant 0 : i32
    return %arg0, %c0_i32, %c0_i32_0 : i32, i32, i32
  }
}

module attributes {stable_mosaic.version = 11 : i64} {
  func.func @_attn_kernel(%arg0: i32, %arg1: memref<48x32xf32, #tpu.memory_space<vmem>>, %arg2: memref<48x1xf32, #tpu.memory_space<vmem>>, %arg3: memref<1x32xf32, #tpu.memory_space<vmem>>, %arg4: memref<1x32xf32, #tpu.memory_space<vmem>>, %arg5: memref<32x16xf32, #tpu.memory_space<vmem>>, %arg6: memref<1x16xf32, #tpu.memory_space<vmem>>, %arg7: memref<1x16xf32, #tpu.memory_space<vmem>>, %arg8: memref<8x6xf32, #tpu.memory_space<vmem>>, %arg9: memref<8x32xf32, #tpu.memory_space<vmem>>) attributes {dimension_semantics = [#tpu.dimension_semantics<arbitrary>], iteration_bounds = array<i64: 1>, scalar_prefetch = 0 : i64, scratch_operands = 0 : i64, tpu.core_type = #tpu.core_type<tc>, window_params = [{pipeline_mode = #tpu.pipeline_mode<synchronous>, transform_indices = @transform_0, window_bounds = array<i64: 48, 32>}, {pipeline_mode = #tpu.pipeline_mode<synchronous>, transform_indices = @transform_1, window_bounds = array<i64: 48, 1>}, {pipeline_mode = #tpu.pipeline_mode<synchronous>, transform_indices = @transform_2, window_bounds = array<i64: 1, 32>}, {pipeline_mode = #tpu.pipeline_mode<synchronous>, transform_indices = @transform_3, window_bounds = array<i64: 1, 32>}, {pipeline_mode = #tpu.pipeline_mode<synchronous>, transform_indices = @transform_4, window_bounds = array<i64: 32, 16>}, {pipeline_mode = #tpu.pipeline_mode<synchronous>, transform_indices = @transform_5, window_bounds = array<i64: 1, 16>}, {pipeline_mode = #tpu.pipeline_mode<synchronous>, transform_indices = @transform_6, window_bounds = array<i64: 1, 16>}, {pipeline_mode = #tpu.pipeline_mode<synchronous>, transform_indices = @transform_7, window_bounds = array<i64: 8, 6>}, {pipeline_mode = #tpu.pipeline_mode<synchronous>, transform_indices = @transform_8, window_bounds = array<i64: 8, 32>}]} {
    %c0 = arith.constant 0 : index
    %c0_0 = arith.constant 0 : index
    %0 = vector.load %arg1[%c0, %c0_0] : memref<48x32xf32, #tpu.memory_space<vmem>>, vector<48x32xf32>
    %c0_1 = arith.constant 0 : index
    %c0_2 = arith.constant 0 : index
    %1 = vector.load %arg2[%c0_1, %c0_2] : memref<48x1xf32, #tpu.memory_space<vmem>>, vector<48x1xf32>
    %cst = arith.constant dense<0.000000e+00> : vector<48xf32>
    %2 = vector.multi_reduction <add>, %0, %cst [1] : vector<48x32xf32> to vector<48xf32>
    %3 = vector.shape_cast %2 : vector<48xf32> to vector<48x1xf32>
    %cst_3 = arith.constant 3.200000e+01 : f32
    %4 = vector.broadcast %cst_3 : f32 to vector<48x1xf32>
    %5 = arith.divf %3, %4 : vector<48x1xf32>
    %6 = vector.broadcast %5 : vector<48x1xf32> to vector<48x32xf32>
    %7 = arith.subf %0, %6 : vector<48x32xf32>
    %8 = arith.mulf %7, %7 : vector<48x32xf32>
    %cst_4 = arith.constant dense<0.000000e+00> : vector<48xf32>
    %9 = vector.multi_reduction <add>, %8, %cst_4 [1] : vector<48x32xf32> to vector<48xf32>
    %10 = vector.shape_cast %9 : vector<48xf32> to vector<48x1xf32>
    %cst_5 = arith.constant 3.200000e+01 : f32
    %11 = vector.broadcast %cst_5 : f32 to vector<48x1xf32>
    %12 = arith.divf %10, %11 : vector<48x1xf32>
    %13 = vector.broadcast %5 : vector<48x1xf32> to vector<48x32xf32>
    %14 = arith.subf %0, %13 : vector<48x32xf32>
    %cst_6 = arith.constant 9.99999974E-6 : f32
    %15 = vector.broadcast %cst_6 : f32 to vector<48x1xf32>
    %16 = arith.addf %12, %15 : vector<48x1xf32>
    %17 = math.rsqrt %16 : vector<48x1xf32>
    %18 = vector.broadcast %17 : vector<48x1xf32> to vector<48x32xf32>
    %19 = arith.mulf %14, %18 : vector<48x32xf32>
    %c0_7 = arith.constant 0 : index
    %c0_8 = arith.constant 0 : index
    %20 = vector.load %arg3[%c0_7, %c0_8] : memref<1x32xf32, #tpu.memory_space<vmem>>, vector<1x32xf32>
    %21 = vector.broadcast %20 : vector<1x32xf32> to vector<48x32xf32>
    %22 = arith.mulf %19, %21 : vector<48x32xf32>
    %c0_9 = arith.constant 0 : index
    %c0_10 = arith.constant 0 : index
    %23 = vector.load %arg4[%c0_9, %c0_10] : memref<1x32xf32, #tpu.memory_space<vmem>>, vector<1x32xf32>
    %24 = vector.broadcast %23 : vector<1x32xf32> to vector<48x32xf32>
    %25 = arith.addf %22, %24 : vector<48x32xf32>
    %26 = arith.truncf %25 : vector<48x32xf32> to vector<48x32xbf16>
    %c0_11 = arith.constant 0 : index
    %c0_12 = arith.constant 0 : index
    %27 = vector.load %arg5[%c0_11, %c0_12] : memref<32x16xf32, #tpu.memory_space<vmem>>, vector<32x16xf32>
    %28 = arith.truncf %27 : vector<32x16xf32> to vector<32x16xbf16>
    %cst_13 = arith.constant dense<0.000000e+00> : vector<48x16xf32>
    %29 = tpu.matmul %26, %28, %cst_13 {dimension_numbers = #tpu.dot_dimension_numbers<[1], [0], [0], [1], [0, 0, 1, 1], [], []>} : vector<48x32xbf16>, vector<32x16xbf16>, vector<48x16xf32> -> vector<48x16xf32>
    %c0_14 = arith.constant 0 : index
    %c0_15 = arith.constant 0 : index
    %30 = vector.load %arg6[%c0_14, %c0_15] : memref<1x16xf32, #tpu.memory_space<vmem>>, vector<1x16xf32>
    %31 = vector.broadcast %30 : vector<1x16xf32> to vector<48x16xf32>
    %32 = arith.addf %29, %31 : vector<48x16xf32>
    %33 = math.tanh %32 : vector<48x16xf32>
    %c0_16 = arith.constant 0 : index
    %c0_17 = arith.constant 0 : index
    %34 = vector.load %arg7[%c0_16, %c0_17] : memref<1x16xf32, #tpu.memory_space<vmem>>, vector<1x16xf32>
    %35 = vector.broadcast %34 : vector<1x16xf32> to vector<48x16xf32>
    %36 = arith.mulf %33, %35 : vector<48x16xf32>
    %cst_18 = arith.constant dense<0.000000e+00> : vector<48xf32>
    %37 = vector.multi_reduction <add>, %36, %cst_18 [1] : vector<48x16xf32> to vector<48xf32>
    %38 = vector.shape_cast %37 : vector<48xf32> to vector<48x1xf32>
    %cst_19 = arith.constant 0.000000e+00 : f32
    %39 = vector.broadcast %cst_19 : f32 to vector<48x1xf32>
    %40 = arith.cmpf ogt, %1, %39 : vector<48x1xf32>
    %cst_20 = arith.constant -3.400000e+38 : f32
    %41 = vector.broadcast %cst_20 : f32 to vector<48x1xf32>
    %42 = arith.select %40, %38, %41 : vector<48x1xi1>, vector<48x1xf32>
    %cst_21 = arith.constant dense<0xFF800000> : vector<1xf32>
    %43 = vector.multi_reduction <maximumf>, %42, %cst_21 [0] : vector<48x1xf32> to vector<1xf32>
    %44 = vector.shape_cast %43 : vector<1xf32> to vector<1x1xf32>
    %cst_22 = arith.constant 0.000000e+00 : f32
    %45 = vector.broadcast %cst_22 : f32 to vector<48x1xf32>
    %46 = arith.cmpf ogt, %1, %45 : vector<48x1xf32>
    %47 = vector.shape_cast %44 : vector<1x1xf32> to vector<1x1xf32>
    %48 = vector.broadcast %47 : vector<1x1xf32> to vector<48x1xf32>
    %49 = arith.select %46, %38, %48 : vector<48x1xi1>, vector<48x1xf32>
    %50 = vector.broadcast %44 : vector<1x1xf32> to vector<48x1xf32>
    %51 = arith.subf %49, %50 : vector<48x1xf32>
    %52 = math.exp %51 : vector<48x1xf32>
    %53 = arith.mulf %52, %1 : vector<48x1xf32>
    %54 = tpu.iota {dimensions = array<i32: 1>} : vector<8x48xi32>
    %55 = tpu.iota {dimensions = array<i32: 0>} : vector<8x48xi32>
    %c6_i32 = arith.constant 6 : i32
    %56 = vector.broadcast %c6_i32 : i32 to vector<8x48xi32>
    %57 = arith.muli %55, %56 : vector<8x48xi32>
    %58 = arith.cmpi sge, %54, %57 : vector<8x48xi32>
    %c6_i32_23 = arith.constant 6 : i32
    %59 = vector.broadcast %c6_i32_23 : i32 to vector<8x48xi32>
    %60 = arith.muli %55, %59 : vector<8x48xi32>
    %c6_i32_24 = arith.constant 6 : i32
    %61 = vector.broadcast %c6_i32_24 : i32 to vector<8x48xi32>
    %62 = arith.addi %60, %61 : vector<8x48xi32>
    %63 = arith.cmpi slt, %54, %62 : vector<8x48xi32>
    %64 = arith.andi %58, %63 : vector<8x48xi1>
    %65 = arith.extui %64 : vector<8x48xi1> to vector<8x48xi32>
    %66 = arith.sitofp %65 : vector<8x48xi32> to vector<8x48xf32>
    %67 = tpu.iota {dimensions = array<i32: 0>} : vector<48x8xi32>
    %68 = tpu.iota {dimensions = array<i32: 1>} : vector<48x8xi32>
    %c6_i32_25 = arith.constant 6 : i32
    %69 = vector.broadcast %c6_i32_25 : i32 to vector<48x8xi32>
    %70 = arith.muli %68, %69 : vector<48x8xi32>
    %71 = arith.cmpi sge, %67, %70 : vector<48x8xi32>
    %72 = arith.extui %71 : vector<48x8xi1> to vector<48x8xi32>
    %73 = arith.sitofp %72 : vector<48x8xi32> to vector<48x8xf32>
    %cst_26 = arith.constant dense<0.000000e+00> : vector<48xf32>
    %74 = vector.multi_reduction <add>, %73, %cst_26 [1] : vector<48x8xf32> to vector<48xf32>
    %75 = vector.shape_cast %74 : vector<48xf32> to vector<48x1xf32>
    %cst_27 = arith.constant 1.000000e+00 : f32
    %76 = vector.broadcast %cst_27 : f32 to vector<48x1xf32>
    %77 = arith.subf %75, %76 : vector<48x1xf32>
    %78 = tpu.iota {dimensions = array<i32: 0>} : vector<48x6xi32>
    %79 = arith.sitofp %78 : vector<48x6xi32> to vector<48x6xf32>
    %80 = tpu.iota {dimensions = array<i32: 1>} : vector<48x6xi32>
    %81 = arith.sitofp %80 : vector<48x6xi32> to vector<48x6xf32>
    %cst_28 = arith.constant 6.000000e+00 : f32
    %82 = vector.broadcast %cst_28 : f32 to vector<48x1xf32>
    %83 = arith.mulf %82, %77 : vector<48x1xf32>
    %84 = vector.broadcast %83 : vector<48x1xf32> to vector<48x6xf32>
    %85 = arith.subf %79, %84 : vector<48x6xf32>
    %86 = arith.cmpf oeq, %85, %81 : vector<48x6xf32>
    %87 = arith.extui %86 : vector<48x6xi1> to vector<48x6xi32>
    %88 = arith.sitofp %87 : vector<48x6xi32> to vector<48x6xf32>
    %89 = vector.broadcast %53 : vector<48x1xf32> to vector<48x6xf32>
    %90 = arith.mulf %89, %88 : vector<48x6xf32>
    %cst_29 = arith.constant dense<0.000000e+00> : vector<8x6xf32>
    %91 = tpu.matmul %66, %90, %cst_29 {dimension_numbers = #tpu.dot_dimension_numbers<[1], [0], [0], [1], [0, 0, 1, 1], [], []>} : vector<8x48xf32>, vector<48x6xf32>, vector<8x6xf32> -> vector<8x6xf32>
    %92 = vector.broadcast %53 : vector<48x1xf32> to vector<48x32xf32>
    %93 = arith.mulf %92, %0 : vector<48x32xf32>
    %cst_30 = arith.constant dense<0.000000e+00> : vector<8x32xf32>
    %94 = tpu.matmul %66, %93, %cst_30 {dimension_numbers = #tpu.dot_dimension_numbers<[1], [0], [0], [1], [0, 0, 1, 1], [], []>} : vector<8x48xf32>, vector<48x32xf32>, vector<8x32xf32> -> vector<8x32xf32>
    %cst_31 = arith.constant dense<0.000000e+00> : vector<8xf32>
    %95 = vector.multi_reduction <add>, %91, %cst_31 [1] : vector<8x6xf32> to vector<8xf32>
    %96 = vector.shape_cast %95 : vector<8xf32> to vector<8x1xf32>
    %cst_32 = arith.constant 0.000000e+00 : f32
    %97 = vector.broadcast %cst_32 : f32 to vector<8x1xf32>
    %98 = arith.cmpf ogt, %96, %97 : vector<8x1xf32>
    %cst_33 = arith.constant 1.000000e-30 : f32
    %99 = vector.broadcast %cst_33 : f32 to vector<8x1xf32>
    %100 = arith.maximumf %96, %99 : vector<8x1xf32>
    %cst_34 = arith.constant 1.000000e+00 : f32
    %101 = vector.broadcast %cst_34 : f32 to vector<8x1xf32>
    %102 = arith.divf %101, %100 : vector<8x1xf32>
    %cst_35 = arith.constant 0.000000e+00 : f32
    %103 = vector.broadcast %cst_35 : f32 to vector<8x1xf32>
    %104 = arith.select %98, %102, %103 : vector<8x1xi1>, vector<8x1xf32>
    %105 = vector.broadcast %104 : vector<8x1xf32> to vector<8x6xf32>
    %106 = arith.mulf %91, %105 : vector<8x6xf32>
    %c0_36 = arith.constant 0 : index
    %c0_37 = arith.constant 0 : index
    %107 = vector.load %arg8[%c0_36, %c0_37] : memref<8x6xf32, #tpu.memory_space<vmem>>, vector<8x6xf32>
    tpu.vector_store %arg8[%c0_36, %c0_37], %106 {strides = array<i32>} : memref<8x6xf32, #tpu.memory_space<vmem>>, vector<8x6xf32>,
    %108 = vector.broadcast %104 : vector<8x1xf32> to vector<8x32xf32>
    %109 = arith.mulf %94, %108 : vector<8x32xf32>
    %c0_38 = arith.constant 0 : index
    %c0_39 = arith.constant 0 : index
    %110 = vector.load %arg9[%c0_38, %c0_39] : memref<8x32xf32, #tpu.memory_space<vmem>>, vector<8x32xf32>
    tpu.vector_store %arg9[%c0_38, %c0_39], %109 {strides = array<i32>} : memref<8x32xf32, #tpu.memory_space<vmem>>, vector<8x32xf32>,
    return
  }
  func.func @transform_0(%arg0: i32) -> (i32, i32) {
    %c0_i32 = arith.constant 0 : i32
    %c0_i32_0 = arith.constant 0 : i32
    %c0_i32_1 = arith.constant 0 : i32
    return %c0_i32, %c0_i32_0 : i32, i32
  }
  func.func @transform_1(%arg0: i32) -> (i32, i32) {
    %c0_i32 = arith.constant 0 : i32
    %c0_i32_0 = arith.constant 0 : i32
    %c0_i32_1 = arith.constant 0 : i32
    return %c0_i32, %c0_i32_0 : i32, i32
  }
  func.func @transform_2(%arg0: i32) -> (i32, i32) {
    %c0_i32 = arith.constant 0 : i32
    %c0_i32_0 = arith.constant 0 : i32
    %c0_i32_1 = arith.constant 0 : i32
    return %c0_i32, %c0_i32_0 : i32, i32
  }
  func.func @transform_3(%arg0: i32) -> (i32, i32) {
    %c0_i32 = arith.constant 0 : i32
    %c0_i32_0 = arith.constant 0 : i32
    %c0_i32_1 = arith.constant 0 : i32
    return %c0_i32, %c0_i32_0 : i32, i32
  }
  func.func @transform_4(%arg0: i32) -> (i32, i32) {
    %c0_i32 = arith.constant 0 : i32
    %c0_i32_0 = arith.constant 0 : i32
    %c0_i32_1 = arith.constant 0 : i32
    return %c0_i32, %c0_i32_0 : i32, i32
  }
  func.func @transform_5(%arg0: i32) -> (i32, i32) {
    %c0_i32 = arith.constant 0 : i32
    %c0_i32_0 = arith.constant 0 : i32
    %c0_i32_1 = arith.constant 0 : i32
    return %c0_i32, %c0_i32_0 : i32, i32
  }
  func.func @transform_6(%arg0: i32) -> (i32, i32) {
    %c0_i32 = arith.constant 0 : i32
    %c0_i32_0 = arith.constant 0 : i32
    %c0_i32_1 = arith.constant 0 : i32
    return %c0_i32, %c0_i32_0 : i32, i32
  }
  func.func @transform_7(%arg0: i32) -> (i32, i32) {
    %c0_i32 = arith.constant 0 : i32
    %c0_i32_0 = arith.constant 0 : i32
    %c0_i32_1 = arith.constant 0 : i32
    return %c0_i32, %c0_i32_0 : i32, i32
  }
  func.func @transform_8(%arg0: i32) -> (i32, i32) {
    %c0_i32 = arith.constant 0 : i32
    %c0_i32_0 = arith.constant 0 : i32
    %c0_i32_1 = arith.constant 0 : i32
    return %c0_i32, %c0_i32_0 : i32, i32
  }
}

module attributes {stable_mosaic.version = 11 : i64} {
  func.func @_bigru_kernel(%arg0: i32, %arg1: memref<32x32xf32, #tpu.memory_space<vmem>>, %arg2: memref<8x1xi32, #tpu.memory_space<vmem>>, %arg3: memref<1x32x48xf32, #tpu.memory_space<vmem>>, %arg4: memref<1x1x48xf32, #tpu.memory_space<vmem>>, %arg5: memref<1x16x48xf32, #tpu.memory_space<vmem>>, %arg6: memref<1x1x48xf32, #tpu.memory_space<vmem>>, %arg7: memref<1x32x16xf32, #tpu.memory_space<vmem>>, %arg8: memref<32x48xf32, #tpu.memory_space<vmem>>) attributes {dimension_semantics = [#tpu.dimension_semantics<parallel>], iteration_bounds = array<i64: 2>, scalar_prefetch = 0 : i64, scratch_operands = 1 : i64, tpu.core_type = #tpu.core_type<tc>, window_params = [{pipeline_mode = #tpu.pipeline_mode<synchronous>, transform_indices = @transform_0, window_bounds = array<i64: 32, 32>}, {pipeline_mode = #tpu.pipeline_mode<synchronous>, transform_indices = @transform_1, window_bounds = array<i64: 8, 1>}, {transform_indices = @transform_2, window_bounds = array<i64: 1, 32, 48>}, {transform_indices = @transform_3, window_bounds = array<i64: 1, 1, 48>}, {transform_indices = @transform_4, window_bounds = array<i64: 1, 16, 48>}, {transform_indices = @transform_5, window_bounds = array<i64: 1, 1, 48>}, {transform_indices = @transform_6, window_bounds = array<i64: 1, 32, 16>}]} {
    %c0 = arith.constant 0 : index
    %c0_0 = arith.constant 0 : index
    %0 = vector.load %arg1[%c0, %c0_0] : memref<32x32xf32, #tpu.memory_space<vmem>>, vector<32x32xf32>
    %1 = arith.truncf %0 : vector<32x32xf32> to vector<32x32xbf16>
    %c0_1 = arith.constant 0 : index
    %c0_2 = arith.constant 0 : index
    %c0_3 = arith.constant 0 : index
    %2 = vector.load %arg3[%c0_1, %c0_2, %c0_3] : memref<1x32x48xf32, #tpu.memory_space<vmem>>, vector<1x32x48xf32>
    %3 = vector.shape_cast %2 : vector<1x32x48xf32> to vector<32x48xf32>
    %4 = arith.truncf %3 : vector<32x48xf32> to vector<32x48xbf16>
    %cst = arith.constant dense<0.000000e+00> : vector<32x48xf32>
    %5 = tpu.matmul %1, %4, %cst {dimension_numbers = #tpu.dot_dimension_numbers<[1], [0], [0], [1], [0, 0, 1, 1], [], []>} : vector<32x32xbf16>, vector<32x48xbf16>, vector<32x48xf32> -> vector<32x48xf32>
    %c0_4 = arith.constant 0 : index
    %c0_5 = arith.constant 0 : index
    %c0_6 = arith.constant 0 : index
    %6 = vector.load %arg4[%c0_4, %c0_5, %c0_6] : memref<1x1x48xf32, #tpu.memory_space<vmem>>, vector<1x1x48xf32>
    %7 = vector.shape_cast %6 : vector<1x1x48xf32> to vector<1x48xf32>
    %8 = vector.broadcast %7 : vector<1x48xf32> to vector<32x48xf32>
    %9 = arith.addf %5, %8 : vector<32x48xf32>
    %c0_7 = arith.constant 0 : index
    %c0_8 = arith.constant 0 : index
    %10 = vector.load %arg8[%c0_7, %c0_8] : memref<32x48xf32, #tpu.memory_space<vmem>>, vector<32x48xf32>
    tpu.vector_store %arg8[%c0_7, %c0_8], %9 {strides = array<i32>} : memref<32x48xf32, #tpu.memory_space<vmem>>, vector<32x48xf32>,
    %c0_9 = arith.constant 0 : index
    %c0_10 = arith.constant 0 : index
    %c0_11 = arith.constant 0 : index
    %11 = vector.load %arg5[%c0_9, %c0_10, %c0_11] : memref<1x16x48xf32, #tpu.memory_space<vmem>>, vector<1x16x48xf32>
    %12 = vector.shape_cast %11 : vector<1x16x48xf32> to vector<16x48xf32>
    %13 = arith.truncf %12 : vector<16x48xf32> to vector<16x48xbf16>
    %c0_12 = arith.constant 0 : index
    %c0_13 = arith.constant 0 : index
    %c0_14 = arith.constant 0 : index
    %14 = vector.load %arg6[%c0_12, %c0_13, %c0_14] : memref<1x1x48xf32, #tpu.memory_space<vmem>>, vector<1x1x48xf32>
    %15 = vector.shape_cast %14 : vector<1x1x48xf32> to vector<1x48xf32>
    %c0_15 = arith.constant 0 : index
    %c0_16 = arith.constant 0 : index
    %16 = vector.load %arg2[%c0_15, %c0_16] : memref<8x1xi32, #tpu.memory_space<vmem>>, vector<8x1xi32>
    %c0_i32 = arith.constant 0 : i32
    %17 = arith.cmpi eq, %arg0, %c0_i32 : i32
    %18 = arith.extui %17 : i1 to i32
    %c0_i32_17 = arith.constant 0 : i32
    %19 = arith.cmpi ne, %18, %c0_i32_17 : i32
    scf.if %19 {
      %cst_19 = arith.constant 0.000000e+00 : f32
      %23 = vector.broadcast %cst_19 : f32 to vector<8x16xf32>
      %c0_20 = arith.constant 0 : index
      %c0_21 = arith.constant 0 : index
      %24 = vector.load %arg8[%c0_20, %c0_21] : memref<32x48xf32, #tpu.memory_space<vmem>>, vector<8x48xf32>
      %25 = arith.truncf %23 : vector<8x16xf32> to vector<8x16xbf16>
      %cst_22 = arith.constant dense<0.000000e+00> : vector<8x48xf32>
      %26 = tpu.matmul %25, %13, %cst_22 {dimension_numbers = #tpu.dot_dimension_numbers<[1], [0], [0], [1], [0, 0, 1, 1], [], []>} : vector<8x16xbf16>, vector<16x48xbf16>, vector<8x48xf32> -> vector<8x48xf32>
      %27 = vector.broadcast %15 : vector<1x48xf32> to vector<8x48xf32>
      %28 = arith.addf %26, %27 : vector<8x48xf32>
      %29 = vector.extract_strided_slice %24 {offsets = [0, 0], sizes = [8, 16], strides = [1, 1]} : vector<8x48xf32> to vector<8x16xf32>
      %30 = vector.extract_strided_slice %28 {offsets = [0, 0], sizes = [8, 16], strides = [1, 1]} : vector<8x48xf32> to vector<8x16xf32>
      %31 = arith.addf %29, %30 : vector<8x16xf32>
      %32 = arith.negf %31 : vector<8x16xf32>
      %33 = math.exp %32 : vector<8x16xf32>
      %cst_23 = arith.constant 1.000000e+00 : f32
      %34 = vector.broadcast %cst_23 : f32 to vector<8x16xf32>
      %35 = arith.addf %34, %33 : vector<8x16xf32>
      %36 = arith.divf %34, %35 : vector<8x16xf32>
      %37 = vector.extract_strided_slice %24 {offsets = [0, 16], sizes = [8, 16], strides = [1, 1]} : vector<8x48xf32> to vector<8x16xf32>
      %38 = vector.extract_strided_slice %28 {offsets = [0, 16], sizes = [8, 16], strides = [1, 1]} : vector<8x48xf32> to vector<8x16xf32>
      %39 = arith.addf %37, %38 : vector<8x16xf32>
      %40 = arith.negf %39 : vector<8x16xf32>
      %41 = math.exp %40 : vector<8x16xf32>
      %cst_24 = arith.constant 1.000000e+00 : f32
      %42 = vector.broadcast %cst_24 : f32 to vector<8x16xf32>
      %43 = arith.addf %42, %41 : vector<8x16xf32>
      %44 = arith.divf %42, %43 : vector<8x16xf32>
      %45 = vector.extract_strided_slice %24 {offsets = [0, 32], sizes = [8, 16], strides = [1, 1]} : vector<8x48xf32> to vector<8x16xf32>
      %46 = vector.extract_strided_slice %28 {offsets = [0, 32], sizes = [8, 16], strides = [1, 1]} : vector<8x48xf32> to vector<8x16xf32>
      %47 = arith.mulf %36, %46 : vector<8x16xf32>
      %48 = arith.addf %45, %47 : vector<8x16xf32>
      %49 = math.tanh %48 : vector<8x16xf32>
      %cst_25 = arith.constant 1.000000e+00 : f32
      %50 = vector.broadcast %cst_25 : f32 to vector<8x16xf32>
      %51 = arith.subf %50, %44 : vector<8x16xf32>
      %52 = arith.mulf %51, %49 : vector<8x16xf32>
      %53 = arith.mulf %44, %23 : vector<8x16xf32>
      %54 = arith.addf %52, %53 : vector<8x16xf32>
      %c0_i32_26 = arith.constant 0 : i32
      %55 = vector.broadcast %c0_i32_26 : i32 to vector<8x1xi32>
      %56 = arith.cmpi sgt, %16, %55 : vector<8x1xi32>
      %cst_27 = arith.constant 0.000000e+00 : f32
      %57 = vector.shape_cast %56 : vector<8x1xi1> to vector<8x1xi1>
      %58 = vector.broadcast %57 : vector<8x1xi1> to vector<8x16xi1>
      %59 = vector.broadcast %cst_27 : f32 to vector<8x16xf32>
      %60 = arith.select %58, %54, %59 : vector<8x16xi1>, vector<8x16xf32>
      %c0_28 = arith.constant 0 : index
      %c0_29 = arith.constant 0 : index
      %c0_30 = arith.constant 0 : index
      %61 = vector.load %arg7[%c0_28, %c0_29, %c0_30] : memref<1x32x16xf32, #tpu.memory_space<vmem>>, vector<1x8x16xf32>
      %62 = vector.shape_cast %61 : vector<1x8x16xf32> to vector<8x16xf32>
      %63 = vector.shape_cast %60 : vector<8x16xf32> to vector<1x8x16xf32>
      tpu.vector_store %arg7[%c0_28, %c0_29, %c0_30], %63 {strides = array<i32>} : memref<1x32x16xf32, #tpu.memory_space<vmem>>, vector<1x8x16xf32>,
      %64 = vector.shape_cast %56 : vector<8x1xi1> to vector<8x1xi1>
      %65 = vector.broadcast %64 : vector<8x1xi1> to vector<8x16xi1>
      %66 = arith.select %65, %54, %23 : vector<8x16xi1>, vector<8x16xf32>
      %c8 = arith.constant 8 : index
      %c0_31 = arith.constant 0 : index
      %67 = vector.load %arg8[%c8, %c0_31] : memref<32x48xf32, #tpu.memory_space<vmem>>, vector<8x48xf32>
      %68 = arith.truncf %66 : vector<8x16xf32> to vector<8x16xbf16>
      %cst_32 = arith.constant dense<0.000000e+00> : vector<8x48xf32>
      %69 = tpu.matmul %68, %13, %cst_32 {dimension_numbers = #tpu.dot_dimension_numbers<[1], [0], [0], [1], [0, 0, 1, 1], [], []>} : vector<8x16xbf16>, vector<16x48xbf16>, vector<8x48xf32> -> vector<8x48xf32>
      %70 = vector.broadcast %15 : vector<1x48xf32> to vector<8x48xf32>
      %71 = arith.addf %69, %70 : vector<8x48xf32>
      %72 = vector.extract_strided_slice %67 {offsets = [0, 0], sizes = [8, 16], strides = [1, 1]} : vector<8x48xf32> to vector<8x16xf32>
      %73 = vector.extract_strided_slice %71 {offsets = [0, 0], sizes = [8, 16], strides = [1, 1]} : vector<8x48xf32> to vector<8x16xf32>
      %74 = arith.addf %72, %73 : vector<8x16xf32>
      %75 = arith.negf %74 : vector<8x16xf32>
      %76 = math.exp %75 : vector<8x16xf32>
      %cst_33 = arith.constant 1.000000e+00 : f32
      %77 = vector.broadcast %cst_33 : f32 to vector<8x16xf32>
      %78 = arith.addf %77, %76 : vector<8x16xf32>
      %79 = arith.divf %77, %78 : vector<8x16xf32>
      %80 = vector.extract_strided_slice %67 {offsets = [0, 16], sizes = [8, 16], strides = [1, 1]} : vector<8x48xf32> to vector<8x16xf32>
      %81 = vector.extract_strided_slice %71 {offsets = [0, 16], sizes = [8, 16], strides = [1, 1]} : vector<8x48xf32> to vector<8x16xf32>
      %82 = arith.addf %80, %81 : vector<8x16xf32>
      %83 = arith.negf %82 : vector<8x16xf32>
      %84 = math.exp %83 : vector<8x16xf32>
      %cst_34 = arith.constant 1.000000e+00 : f32
      %85 = vector.broadcast %cst_34 : f32 to vector<8x16xf32>
      %86 = arith.addf %85, %84 : vector<8x16xf32>
      %87 = arith.divf %85, %86 : vector<8x16xf32>
      %88 = vector.extract_strided_slice %67 {offsets = [0, 32], sizes = [8, 16], strides = [1, 1]} : vector<8x48xf32> to vector<8x16xf32>
      %89 = vector.extract_strided_slice %71 {offsets = [0, 32], sizes = [8, 16], strides = [1, 1]} : vector<8x48xf32> to vector<8x16xf32>
      %90 = arith.mulf %79, %89 : vector<8x16xf32>
      %91 = arith.addf %88, %90 : vector<8x16xf32>
      %92 = math.tanh %91 : vector<8x16xf32>
      %cst_35 = arith.constant 1.000000e+00 : f32
      %93 = vector.broadcast %cst_35 : f32 to vector<8x16xf32>
      %94 = arith.subf %93, %87 : vector<8x16xf32>
      %95 = arith.mulf %94, %92 : vector<8x16xf32>
      %96 = arith.mulf %87, %66 : vector<8x16xf32>
      %97 = arith.addf %95, %96 : vector<8x16xf32>
      %c1_i32_36 = arith.constant 1 : i32
      %98 = vector.broadcast %c1_i32_36 : i32 to vector<8x1xi32>
      %99 = arith.cmpi sgt, %16, %98 : vector<8x1xi32>
      %cst_37 = arith.constant 0.000000e+00 : f32
      %100 = vector.shape_cast %99 : vector<8x1xi1> to vector<8x1xi1>
      %101 = vector.broadcast %100 : vector<8x1xi1> to vector<8x16xi1>
      %102 = vector.broadcast %cst_37 : f32 to vector<8x16xf32>
      %103 = arith.select %101, %97, %102 : vector<8x16xi1>, vector<8x16xf32>
      %c0_38 = arith.constant 0 : index
      %c8_39 = arith.constant 8 : index
      %c0_40 = arith.constant 0 : index
      %104 = vector.load %arg7[%c0_38, %c8_39, %c0_40] : memref<1x32x16xf32, #tpu.memory_space<vmem>>, vector<1x8x16xf32>
      %105 = vector.shape_cast %104 : vector<1x8x16xf32> to vector<8x16xf32>
      %106 = vector.shape_cast %103 : vector<8x16xf32> to vector<1x8x16xf32>
      tpu.vector_store %arg7[%c0_38, %c8_39, %c0_40], %106 {strides = array<i32>} : memref<1x32x16xf32, #tpu.memory_space<vmem>>, vector<1x8x16xf32>,
      %107 = vector.shape_cast %99 : vector<8x1xi1> to vector<8x1xi1>
      %108 = vector.broadcast %107 : vector<8x1xi1> to vector<8x16xi1>
      %109 = arith.select %108, %97, %66 : vector<8x16xi1>, vector<8x16xf32>
      %c16 = arith.constant 16 : index
      %c0_41 = arith.constant 0 : index
      %110 = vector.load %arg8[%c16, %c0_41] : memref<32x48xf32, #tpu.memory_space<vmem>>, vector<8x48xf32>
      %111 = arith.truncf %109 : vector<8x16xf32> to vector<8x16xbf16>
      %cst_42 = arith.constant dense<0.000000e+00> : vector<8x48xf32>
      %112 = tpu.matmul %111, %13, %cst_42 {dimension_numbers = #tpu.dot_dimension_numbers<[1], [0], [0], [1], [0, 0, 1, 1], [], []>} : vector<8x16xbf16>, vector<16x48xbf16>, vector<8x48xf32> -> vector<8x48xf32>
      %113 = vector.broadcast %15 : vector<1x48xf32> to vector<8x48xf32>
      %114 = arith.addf %112, %113 : vector<8x48xf32>
      %115 = vector.extract_strided_slice %110 {offsets = [0, 0], sizes = [8, 16], strides = [1, 1]} : vector<8x48xf32> to vector<8x16xf32>
      %116 = vector.extract_strided_slice %114 {offsets = [0, 0], sizes = [8, 16], strides = [1, 1]} : vector<8x48xf32> to vector<8x16xf32>
      %117 = arith.addf %115, %116 : vector<8x16xf32>
      %118 = arith.negf %117 : vector<8x16xf32>
      %119 = math.exp %118 : vector<8x16xf32>
      %cst_43 = arith.constant 1.000000e+00 : f32
      %120 = vector.broadcast %cst_43 : f32 to vector<8x16xf32>
      %121 = arith.addf %120, %119 : vector<8x16xf32>
      %122 = arith.divf %120, %121 : vector<8x16xf32>
      %123 = vector.extract_strided_slice %110 {offsets = [0, 16], sizes = [8, 16], strides = [1, 1]} : vector<8x48xf32> to vector<8x16xf32>
      %124 = vector.extract_strided_slice %114 {offsets = [0, 16], sizes = [8, 16], strides = [1, 1]} : vector<8x48xf32> to vector<8x16xf32>
      %125 = arith.addf %123, %124 : vector<8x16xf32>
      %126 = arith.negf %125 : vector<8x16xf32>
      %127 = math.exp %126 : vector<8x16xf32>
      %cst_44 = arith.constant 1.000000e+00 : f32
      %128 = vector.broadcast %cst_44 : f32 to vector<8x16xf32>
      %129 = arith.addf %128, %127 : vector<8x16xf32>
      %130 = arith.divf %128, %129 : vector<8x16xf32>
      %131 = vector.extract_strided_slice %110 {offsets = [0, 32], sizes = [8, 16], strides = [1, 1]} : vector<8x48xf32> to vector<8x16xf32>
      %132 = vector.extract_strided_slice %114 {offsets = [0, 32], sizes = [8, 16], strides = [1, 1]} : vector<8x48xf32> to vector<8x16xf32>
      %133 = arith.mulf %122, %132 : vector<8x16xf32>
      %134 = arith.addf %131, %133 : vector<8x16xf32>
      %135 = math.tanh %134 : vector<8x16xf32>
      %cst_45 = arith.constant 1.000000e+00 : f32
      %136 = vector.broadcast %cst_45 : f32 to vector<8x16xf32>
      %137 = arith.subf %136, %130 : vector<8x16xf32>
      %138 = arith.mulf %137, %135 : vector<8x16xf32>
      %139 = arith.mulf %130, %109 : vector<8x16xf32>
      %140 = arith.addf %138, %139 : vector<8x16xf32>
      %c2_i32 = arith.constant 2 : i32
      %141 = vector.broadcast %c2_i32 : i32 to vector<8x1xi32>
      %142 = arith.cmpi sgt, %16, %141 : vector<8x1xi32>
      %cst_46 = arith.constant 0.000000e+00 : f32
      %143 = vector.shape_cast %142 : vector<8x1xi1> to vector<8x1xi1>
      %144 = vector.broadcast %143 : vector<8x1xi1> to vector<8x16xi1>
      %145 = vector.broadcast %cst_46 : f32 to vector<8x16xf32>
      %146 = arith.select %144, %140, %145 : vector<8x16xi1>, vector<8x16xf32>
      %c0_47 = arith.constant 0 : index
      %c16_48 = arith.constant 16 : index
      %c0_49 = arith.constant 0 : index
      %147 = vector.load %arg7[%c0_47, %c16_48, %c0_49] : memref<1x32x16xf32, #tpu.memory_space<vmem>>, vector<1x8x16xf32>
      %148 = vector.shape_cast %147 : vector<1x8x16xf32> to vector<8x16xf32>
      %149 = vector.shape_cast %146 : vector<8x16xf32> to vector<1x8x16xf32>
      tpu.vector_store %arg7[%c0_47, %c16_48, %c0_49], %149 {strides = array<i32>} : memref<1x32x16xf32, #tpu.memory_space<vmem>>, vector<1x8x16xf32>,
      %150 = vector.shape_cast %142 : vector<8x1xi1> to vector<8x1xi1>
      %151 = vector.broadcast %150 : vector<8x1xi1> to vector<8x16xi1>
      %152 = arith.select %151, %140, %109 : vector<8x16xi1>, vector<8x16xf32>
      %c24 = arith.constant 24 : index
      %c0_50 = arith.constant 0 : index
      %153 = vector.load %arg8[%c24, %c0_50] : memref<32x48xf32, #tpu.memory_space<vmem>>, vector<8x48xf32>
      %154 = arith.truncf %152 : vector<8x16xf32> to vector<8x16xbf16>
      %cst_51 = arith.constant dense<0.000000e+00> : vector<8x48xf32>
      %155 = tpu.matmul %154, %13, %cst_51 {dimension_numbers = #tpu.dot_dimension_numbers<[1], [0], [0], [1], [0, 0, 1, 1], [], []>} : vector<8x16xbf16>, vector<16x48xbf16>, vector<8x48xf32> -> vector<8x48xf32>
      %156 = vector.broadcast %15 : vector<1x48xf32> to vector<8x48xf32>
      %157 = arith.addf %155, %156 : vector<8x48xf32>
      %158 = vector.extract_strided_slice %153 {offsets = [0, 0], sizes = [8, 16], strides = [1, 1]} : vector<8x48xf32> to vector<8x16xf32>
      %159 = vector.extract_strided_slice %157 {offsets = [0, 0], sizes = [8, 16], strides = [1, 1]} : vector<8x48xf32> to vector<8x16xf32>
      %160 = arith.addf %158, %159 : vector<8x16xf32>
      %161 = arith.negf %160 : vector<8x16xf32>
      %162 = math.exp %161 : vector<8x16xf32>
      %cst_52 = arith.constant 1.000000e+00 : f32
      %163 = vector.broadcast %cst_52 : f32 to vector<8x16xf32>
      %164 = arith.addf %163, %162 : vector<8x16xf32>
      %165 = arith.divf %163, %164 : vector<8x16xf32>
      %166 = vector.extract_strided_slice %153 {offsets = [0, 16], sizes = [8, 16], strides = [1, 1]} : vector<8x48xf32> to vector<8x16xf32>
      %167 = vector.extract_strided_slice %157 {offsets = [0, 16], sizes = [8, 16], strides = [1, 1]} : vector<8x48xf32> to vector<8x16xf32>
      %168 = arith.addf %166, %167 : vector<8x16xf32>
      %169 = arith.negf %168 : vector<8x16xf32>
      %170 = math.exp %169 : vector<8x16xf32>
      %cst_53 = arith.constant 1.000000e+00 : f32
      %171 = vector.broadcast %cst_53 : f32 to vector<8x16xf32>
      %172 = arith.addf %171, %170 : vector<8x16xf32>
      %173 = arith.divf %171, %172 : vector<8x16xf32>
      %174 = vector.extract_strided_slice %153 {offsets = [0, 32], sizes = [8, 16], strides = [1, 1]} : vector<8x48xf32> to vector<8x16xf32>
      %175 = vector.extract_strided_slice %157 {offsets = [0, 32], sizes = [8, 16], strides = [1, 1]} : vector<8x48xf32> to vector<8x16xf32>
      %176 = arith.mulf %165, %175 : vector<8x16xf32>
      %177 = arith.addf %174, %176 : vector<8x16xf32>
      %178 = math.tanh %177 : vector<8x16xf32>
      %cst_54 = arith.constant 1.000000e+00 : f32
      %179 = vector.broadcast %cst_54 : f32 to vector<8x16xf32>
      %180 = arith.subf %179, %173 : vector<8x16xf32>
      %181 = arith.mulf %180, %178 : vector<8x16xf32>
      %182 = arith.mulf %173, %152 : vector<8x16xf32>
      %183 = arith.addf %181, %182 : vector<8x16xf32>
      %c3_i32 = arith.constant 3 : i32
      %184 = vector.broadcast %c3_i32 : i32 to vector<8x1xi32>
      %185 = arith.cmpi sgt, %16, %184 : vector<8x1xi32>
      %cst_55 = arith.constant 0.000000e+00 : f32
      %186 = vector.shape_cast %185 : vector<8x1xi1> to vector<8x1xi1>
      %187 = vector.broadcast %186 : vector<8x1xi1> to vector<8x16xi1>
      %188 = vector.broadcast %cst_55 : f32 to vector<8x16xf32>
      %189 = arith.select %187, %183, %188 : vector<8x16xi1>, vector<8x16xf32>
      %c0_56 = arith.constant 0 : index
      %c24_57 = arith.constant 24 : index
      %c0_58 = arith.constant 0 : index
      %190 = vector.load %arg7[%c0_56, %c24_57, %c0_58] : memref<1x32x16xf32, #tpu.memory_space<vmem>>, vector<1x8x16xf32>
      %191 = vector.shape_cast %190 : vector<1x8x16xf32> to vector<8x16xf32>
      %192 = vector.shape_cast %189 : vector<8x16xf32> to vector<1x8x16xf32>
      tpu.vector_store %arg7[%c0_56, %c24_57, %c0_58], %192 {strides = array<i32>} : memref<1x32x16xf32, #tpu.memory_space<vmem>>, vector<1x8x16xf32>,
    } else {
    }
    %c1_i32 = arith.constant 1 : i32
    %20 = arith.cmpi eq, %arg0, %c1_i32 : i32
    %21 = arith.extui %20 : i1 to i32
    %c0_i32_18 = arith.constant 0 : i32
    %22 = arith.cmpi ne, %21, %c0_i32_18 : i32
    scf.if %22 {
      %cst_19 = arith.constant 0.000000e+00 : f32
      %23 = vector.broadcast %cst_19 : f32 to vector<8x16xf32>
      %c24 = arith.constant 24 : index
      %c0_20 = arith.constant 0 : index
      %24 = vector.load %arg8[%c24, %c0_20] : memref<32x48xf32, #tpu.memory_space<vmem>>, vector<8x48xf32>
      %25 = arith.truncf %23 : vector<8x16xf32> to vector<8x16xbf16>
      %cst_21 = arith.constant dense<0.000000e+00> : vector<8x48xf32>
      %26 = tpu.matmul %25, %13, %cst_21 {dimension_numbers = #tpu.dot_dimension_numbers<[1], [0], [0], [1], [0, 0, 1, 1], [], []>} : vector<8x16xbf16>, vector<16x48xbf16>, vector<8x48xf32> -> vector<8x48xf32>
      %27 = vector.broadcast %15 : vector<1x48xf32> to vector<8x48xf32>
      %28 = arith.addf %26, %27 : vector<8x48xf32>
      %29 = vector.extract_strided_slice %24 {offsets = [0, 0], sizes = [8, 16], strides = [1, 1]} : vector<8x48xf32> to vector<8x16xf32>
      %30 = vector.extract_strided_slice %28 {offsets = [0, 0], sizes = [8, 16], strides = [1, 1]} : vector<8x48xf32> to vector<8x16xf32>
      %31 = arith.addf %29, %30 : vector<8x16xf32>
      %32 = arith.negf %31 : vector<8x16xf32>
      %33 = math.exp %32 : vector<8x16xf32>
      %cst_22 = arith.constant 1.000000e+00 : f32
      %34 = vector.broadcast %cst_22 : f32 to vector<8x16xf32>
      %35 = arith.addf %34, %33 : vector<8x16xf32>
      %36 = arith.divf %34, %35 : vector<8x16xf32>
      %37 = vector.extract_strided_slice %24 {offsets = [0, 16], sizes = [8, 16], strides = [1, 1]} : vector<8x48xf32> to vector<8x16xf32>
      %38 = vector.extract_strided_slice %28 {offsets = [0, 16], sizes = [8, 16], strides = [1, 1]} : vector<8x48xf32> to vector<8x16xf32>
      %39 = arith.addf %37, %38 : vector<8x16xf32>
      %40 = arith.negf %39 : vector<8x16xf32>
      %41 = math.exp %40 : vector<8x16xf32>
      %cst_23 = arith.constant 1.000000e+00 : f32
      %42 = vector.broadcast %cst_23 : f32 to vector<8x16xf32>
      %43 = arith.addf %42, %41 : vector<8x16xf32>
      %44 = arith.divf %42, %43 : vector<8x16xf32>
      %45 = vector.extract_strided_slice %24 {offsets = [0, 32], sizes = [8, 16], strides = [1, 1]} : vector<8x48xf32> to vector<8x16xf32>
      %46 = vector.extract_strided_slice %28 {offsets = [0, 32], sizes = [8, 16], strides = [1, 1]} : vector<8x48xf32> to vector<8x16xf32>
      %47 = arith.mulf %36, %46 : vector<8x16xf32>
      %48 = arith.addf %45, %47 : vector<8x16xf32>
      %49 = math.tanh %48 : vector<8x16xf32>
      %cst_24 = arith.constant 1.000000e+00 : f32
      %50 = vector.broadcast %cst_24 : f32 to vector<8x16xf32>
      %51 = arith.subf %50, %44 : vector<8x16xf32>
      %52 = arith.mulf %51, %49 : vector<8x16xf32>
      %53 = arith.mulf %44, %23 : vector<8x16xf32>
      %54 = arith.addf %52, %53 : vector<8x16xf32>
      %c3_i32 = arith.constant 3 : i32
      %55 = vector.broadcast %c3_i32 : i32 to vector<8x1xi32>
      %56 = arith.cmpi sgt, %16, %55 : vector<8x1xi32>
      %cst_25 = arith.constant 0.000000e+00 : f32
      %57 = vector.shape_cast %56 : vector<8x1xi1> to vector<8x1xi1>
      %58 = vector.broadcast %57 : vector<8x1xi1> to vector<8x16xi1>
      %59 = vector.broadcast %cst_25 : f32 to vector<8x16xf32>
      %60 = arith.select %58, %54, %59 : vector<8x16xi1>, vector<8x16xf32>
      %c0_26 = arith.constant 0 : index
      %c24_27 = arith.constant 24 : index
      %c0_28 = arith.constant 0 : index
      %61 = vector.load %arg7[%c0_26, %c24_27, %c0_28] : memref<1x32x16xf32, #tpu.memory_space<vmem>>, vector<1x8x16xf32>
      %62 = vector.shape_cast %61 : vector<1x8x16xf32> to vector<8x16xf32>
      %63 = vector.shape_cast %60 : vector<8x16xf32> to vector<1x8x16xf32>
      tpu.vector_store %arg7[%c0_26, %c24_27, %c0_28], %63 {strides = array<i32>} : memref<1x32x16xf32, #tpu.memory_space<vmem>>, vector<1x8x16xf32>,
      %64 = vector.shape_cast %56 : vector<8x1xi1> to vector<8x1xi1>
      %65 = vector.broadcast %64 : vector<8x1xi1> to vector<8x16xi1>
      %66 = arith.select %65, %54, %23 : vector<8x16xi1>, vector<8x16xf32>
      %c16 = arith.constant 16 : index
      %c0_29 = arith.constant 0 : index
      %67 = vector.load %arg8[%c16, %c0_29] : memref<32x48xf32, #tpu.memory_space<vmem>>, vector<8x48xf32>
      %68 = arith.truncf %66 : vector<8x16xf32> to vector<8x16xbf16>
      %cst_30 = arith.constant dense<0.000000e+00> : vector<8x48xf32>
      %69 = tpu.matmul %68, %13, %cst_30 {dimension_numbers = #tpu.dot_dimension_numbers<[1], [0], [0], [1], [0, 0, 1, 1], [], []>} : vector<8x16xbf16>, vector<16x48xbf16>, vector<8x48xf32> -> vector<8x48xf32>
      %70 = vector.broadcast %15 : vector<1x48xf32> to vector<8x48xf32>
      %71 = arith.addf %69, %70 : vector<8x48xf32>
      %72 = vector.extract_strided_slice %67 {offsets = [0, 0], sizes = [8, 16], strides = [1, 1]} : vector<8x48xf32> to vector<8x16xf32>
      %73 = vector.extract_strided_slice %71 {offsets = [0, 0], sizes = [8, 16], strides = [1, 1]} : vector<8x48xf32> to vector<8x16xf32>
      %74 = arith.addf %72, %73 : vector<8x16xf32>
      %75 = arith.negf %74 : vector<8x16xf32>
      %76 = math.exp %75 : vector<8x16xf32>
      %cst_31 = arith.constant 1.000000e+00 : f32
      %77 = vector.broadcast %cst_31 : f32 to vector<8x16xf32>
      %78 = arith.addf %77, %76 : vector<8x16xf32>
      %79 = arith.divf %77, %78 : vector<8x16xf32>
      %80 = vector.extract_strided_slice %67 {offsets = [0, 16], sizes = [8, 16], strides = [1, 1]} : vector<8x48xf32> to vector<8x16xf32>
      %81 = vector.extract_strided_slice %71 {offsets = [0, 16], sizes = [8, 16], strides = [1, 1]} : vector<8x48xf32> to vector<8x16xf32>
      %82 = arith.addf %80, %81 : vector<8x16xf32>
      %83 = arith.negf %82 : vector<8x16xf32>
      %84 = math.exp %83 : vector<8x16xf32>
      %cst_32 = arith.constant 1.000000e+00 : f32
      %85 = vector.broadcast %cst_32 : f32 to vector<8x16xf32>
      %86 = arith.addf %85, %84 : vector<8x16xf32>
      %87 = arith.divf %85, %86 : vector<8x16xf32>
      %88 = vector.extract_strided_slice %67 {offsets = [0, 32], sizes = [8, 16], strides = [1, 1]} : vector<8x48xf32> to vector<8x16xf32>
      %89 = vector.extract_strided_slice %71 {offsets = [0, 32], sizes = [8, 16], strides = [1, 1]} : vector<8x48xf32> to vector<8x16xf32>
      %90 = arith.mulf %79, %89 : vector<8x16xf32>
      %91 = arith.addf %88, %90 : vector<8x16xf32>
      %92 = math.tanh %91 : vector<8x16xf32>
      %cst_33 = arith.constant 1.000000e+00 : f32
      %93 = vector.broadcast %cst_33 : f32 to vector<8x16xf32>
      %94 = arith.subf %93, %87 : vector<8x16xf32>
      %95 = arith.mulf %94, %92 : vector<8x16xf32>
      %96 = arith.mulf %87, %66 : vector<8x16xf32>
      %97 = arith.addf %95, %96 : vector<8x16xf32>
      %c2_i32 = arith.constant 2 : i32
      %98 = vector.broadcast %c2_i32 : i32 to vector<8x1xi32>
      %99 = arith.cmpi sgt, %16, %98 : vector<8x1xi32>
      %cst_34 = arith.constant 0.000000e+00 : f32
      %100 = vector.shape_cast %99 : vector<8x1xi1> to vector<8x1xi1>
      %101 = vector.broadcast %100 : vector<8x1xi1> to vector<8x16xi1>
      %102 = vector.broadcast %cst_34 : f32 to vector<8x16xf32>
      %103 = arith.select %101, %97, %102 : vector<8x16xi1>, vector<8x16xf32>
      %c0_35 = arith.constant 0 : index
      %c16_36 = arith.constant 16 : index
      %c0_37 = arith.constant 0 : index
      %104 = vector.load %arg7[%c0_35, %c16_36, %c0_37] : memref<1x32x16xf32, #tpu.memory_space<vmem>>, vector<1x8x16xf32>
      %105 = vector.shape_cast %104 : vector<1x8x16xf32> to vector<8x16xf32>
      %106 = vector.shape_cast %103 : vector<8x16xf32> to vector<1x8x16xf32>
      tpu.vector_store %arg7[%c0_35, %c16_36, %c0_37], %106 {strides = array<i32>} : memref<1x32x16xf32, #tpu.memory_space<vmem>>, vector<1x8x16xf32>,
      %107 = vector.shape_cast %99 : vector<8x1xi1> to vector<8x1xi1>
      %108 = vector.broadcast %107 : vector<8x1xi1> to vector<8x16xi1>
      %109 = arith.select %108, %97, %66 : vector<8x16xi1>, vector<8x16xf32>
      %c8 = arith.constant 8 : index
      %c0_38 = arith.constant 0 : index
      %110 = vector.load %arg8[%c8, %c0_38] : memref<32x48xf32, #tpu.memory_space<vmem>>, vector<8x48xf32>
      %111 = arith.truncf %109 : vector<8x16xf32> to vector<8x16xbf16>
      %cst_39 = arith.constant dense<0.000000e+00> : vector<8x48xf32>
      %112 = tpu.matmul %111, %13, %cst_39 {dimension_numbers = #tpu.dot_dimension_numbers<[1], [0], [0], [1], [0, 0, 1, 1], [], []>} : vector<8x16xbf16>, vector<16x48xbf16>, vector<8x48xf32> -> vector<8x48xf32>
      %113 = vector.broadcast %15 : vector<1x48xf32> to vector<8x48xf32>
      %114 = arith.addf %112, %113 : vector<8x48xf32>
      %115 = vector.extract_strided_slice %110 {offsets = [0, 0], sizes = [8, 16], strides = [1, 1]} : vector<8x48xf32> to vector<8x16xf32>
      %116 = vector.extract_strided_slice %114 {offsets = [0, 0], sizes = [8, 16], strides = [1, 1]} : vector<8x48xf32> to vector<8x16xf32>
      %117 = arith.addf %115, %116 : vector<8x16xf32>
      %118 = arith.negf %117 : vector<8x16xf32>
      %119 = math.exp %118 : vector<8x16xf32>
      %cst_40 = arith.constant 1.000000e+00 : f32
      %120 = vector.broadcast %cst_40 : f32 to vector<8x16xf32>
      %121 = arith.addf %120, %119 : vector<8x16xf32>
      %122 = arith.divf %120, %121 : vector<8x16xf32>
      %123 = vector.extract_strided_slice %110 {offsets = [0, 16], sizes = [8, 16], strides = [1, 1]} : vector<8x48xf32> to vector<8x16xf32>
      %124 = vector.extract_strided_slice %114 {offsets = [0, 16], sizes = [8, 16], strides = [1, 1]} : vector<8x48xf32> to vector<8x16xf32>
      %125 = arith.addf %123, %124 : vector<8x16xf32>
      %126 = arith.negf %125 : vector<8x16xf32>
      %127 = math.exp %126 : vector<8x16xf32>
      %cst_41 = arith.constant 1.000000e+00 : f32
      %128 = vector.broadcast %cst_41 : f32 to vector<8x16xf32>
      %129 = arith.addf %128, %127 : vector<8x16xf32>
      %130 = arith.divf %128, %129 : vector<8x16xf32>
      %131 = vector.extract_strided_slice %110 {offsets = [0, 32], sizes = [8, 16], strides = [1, 1]} : vector<8x48xf32> to vector<8x16xf32>
      %132 = vector.extract_strided_slice %114 {offsets = [0, 32], sizes = [8, 16], strides = [1, 1]} : vector<8x48xf32> to vector<8x16xf32>
      %133 = arith.mulf %122, %132 : vector<8x16xf32>
      %134 = arith.addf %131, %133 : vector<8x16xf32>
      %135 = math.tanh %134 : vector<8x16xf32>
      %cst_42 = arith.constant 1.000000e+00 : f32
      %136 = vector.broadcast %cst_42 : f32 to vector<8x16xf32>
      %137 = arith.subf %136, %130 : vector<8x16xf32>
      %138 = arith.mulf %137, %135 : vector<8x16xf32>
      %139 = arith.mulf %130, %109 : vector<8x16xf32>
      %140 = arith.addf %138, %139 : vector<8x16xf32>
      %c1_i32_43 = arith.constant 1 : i32
      %141 = vector.broadcast %c1_i32_43 : i32 to vector<8x1xi32>
      %142 = arith.cmpi sgt, %16, %141 : vector<8x1xi32>
      %cst_44 = arith.constant 0.000000e+00 : f32
      %143 = vector.shape_cast %142 : vector<8x1xi1> to vector<8x1xi1>
      %144 = vector.broadcast %143 : vector<8x1xi1> to vector<8x16xi1>
      %145 = vector.broadcast %cst_44 : f32 to vector<8x16xf32>
      %146 = arith.select %144, %140, %145 : vector<8x16xi1>, vector<8x16xf32>
      %c0_45 = arith.constant 0 : index
      %c8_46 = arith.constant 8 : index
      %c0_47 = arith.constant 0 : index
      %147 = vector.load %arg7[%c0_45, %c8_46, %c0_47] : memref<1x32x16xf32, #tpu.memory_space<vmem>>, vector<1x8x16xf32>
      %148 = vector.shape_cast %147 : vector<1x8x16xf32> to vector<8x16xf32>
      %149 = vector.shape_cast %146 : vector<8x16xf32> to vector<1x8x16xf32>
      tpu.vector_store %arg7[%c0_45, %c8_46, %c0_47], %149 {strides = array<i32>} : memref<1x32x16xf32, #tpu.memory_space<vmem>>, vector<1x8x16xf32>,
      %150 = vector.shape_cast %142 : vector<8x1xi1> to vector<8x1xi1>
      %151 = vector.broadcast %150 : vector<8x1xi1> to vector<8x16xi1>
      %152 = arith.select %151, %140, %109 : vector<8x16xi1>, vector<8x16xf32>
      %c0_48 = arith.constant 0 : index
      %c0_49 = arith.constant 0 : index
      %153 = vector.load %arg8[%c0_48, %c0_49] : memref<32x48xf32, #tpu.memory_space<vmem>>, vector<8x48xf32>
      %154 = arith.truncf %152 : vector<8x16xf32> to vector<8x16xbf16>
      %cst_50 = arith.constant dense<0.000000e+00> : vector<8x48xf32>
      %155 = tpu.matmul %154, %13, %cst_50 {dimension_numbers = #tpu.dot_dimension_numbers<[1], [0], [0], [1], [0, 0, 1, 1], [], []>} : vector<8x16xbf16>, vector<16x48xbf16>, vector<8x48xf32> -> vector<8x48xf32>
      %156 = vector.broadcast %15 : vector<1x48xf32> to vector<8x48xf32>
      %157 = arith.addf %155, %156 : vector<8x48xf32>
      %158 = vector.extract_strided_slice %153 {offsets = [0, 0], sizes = [8, 16], strides = [1, 1]} : vector<8x48xf32> to vector<8x16xf32>
      %159 = vector.extract_strided_slice %157 {offsets = [0, 0], sizes = [8, 16], strides = [1, 1]} : vector<8x48xf32> to vector<8x16xf32>
      %160 = arith.addf %158, %159 : vector<8x16xf32>
      %161 = arith.negf %160 : vector<8x16xf32>
      %162 = math.exp %161 : vector<8x16xf32>
      %cst_51 = arith.constant 1.000000e+00 : f32
      %163 = vector.broadcast %cst_51 : f32 to vector<8x16xf32>
      %164 = arith.addf %163, %162 : vector<8x16xf32>
      %165 = arith.divf %163, %164 : vector<8x16xf32>
      %166 = vector.extract_strided_slice %153 {offsets = [0, 16], sizes = [8, 16], strides = [1, 1]} : vector<8x48xf32> to vector<8x16xf32>
      %167 = vector.extract_strided_slice %157 {offsets = [0, 16], sizes = [8, 16], strides = [1, 1]} : vector<8x48xf32> to vector<8x16xf32>
      %168 = arith.addf %166, %167 : vector<8x16xf32>
      %169 = arith.negf %168 : vector<8x16xf32>
      %170 = math.exp %169 : vector<8x16xf32>
      %cst_52 = arith.constant 1.000000e+00 : f32
      %171 = vector.broadcast %cst_52 : f32 to vector<8x16xf32>
      %172 = arith.addf %171, %170 : vector<8x16xf32>
      %173 = arith.divf %171, %172 : vector<8x16xf32>
      %174 = vector.extract_strided_slice %153 {offsets = [0, 32], sizes = [8, 16], strides = [1, 1]} : vector<8x48xf32> to vector<8x16xf32>
      %175 = vector.extract_strided_slice %157 {offsets = [0, 32], sizes = [8, 16], strides = [1, 1]} : vector<8x48xf32> to vector<8x16xf32>
      %176 = arith.mulf %165, %175 : vector<8x16xf32>
      %177 = arith.addf %174, %176 : vector<8x16xf32>
      %178 = math.tanh %177 : vector<8x16xf32>
      %cst_53 = arith.constant 1.000000e+00 : f32
      %179 = vector.broadcast %cst_53 : f32 to vector<8x16xf32>
      %180 = arith.subf %179, %173 : vector<8x16xf32>
      %181 = arith.mulf %180, %178 : vector<8x16xf32>
      %182 = arith.mulf %173, %152 : vector<8x16xf32>
      %183 = arith.addf %181, %182 : vector<8x16xf32>
      %c0_i32_54 = arith.constant 0 : i32
      %184 = vector.broadcast %c0_i32_54 : i32 to vector<8x1xi32>
      %185 = arith.cmpi sgt, %16, %184 : vector<8x1xi32>
      %cst_55 = arith.constant 0.000000e+00 : f32
      %186 = vector.shape_cast %185 : vector<8x1xi1> to vector<8x1xi1>
      %187 = vector.broadcast %186 : vector<8x1xi1> to vector<8x16xi1>
      %188 = vector.broadcast %cst_55 : f32 to vector<8x16xf32>
      %189 = arith.select %187, %183, %188 : vector<8x16xi1>, vector<8x16xf32>
      %c0_56 = arith.constant 0 : index
      %c0_57 = arith.constant 0 : index
      %c0_58 = arith.constant 0 : index
      %190 = vector.load %arg7[%c0_56, %c0_57, %c0_58] : memref<1x32x16xf32, #tpu.memory_space<vmem>>, vector<1x8x16xf32>
      %191 = vector.shape_cast %190 : vector<1x8x16xf32> to vector<8x16xf32>
      %192 = vector.shape_cast %189 : vector<8x16xf32> to vector<1x8x16xf32>
      tpu.vector_store %arg7[%c0_56, %c0_57, %c0_58], %192 {strides = array<i32>} : memref<1x32x16xf32, #tpu.memory_space<vmem>>, vector<1x8x16xf32>,
    } else {
    }
    return
  }
  func.func @transform_0(%arg0: i32) -> (i32, i32) {
    %c0_i32 = arith.constant 0 : i32
    %c0_i32_0 = arith.constant 0 : i32
    %c0_i32_1 = arith.constant 0 : i32
    return %c0_i32, %c0_i32_0 : i32, i32
  }
  func.func @transform_1(%arg0: i32) -> (i32, i32) {
    %c0_i32 = arith.constant 0 : i32
    %c0_i32_0 = arith.constant 0 : i32
    %c0_i32_1 = arith.constant 0 : i32
    return %c0_i32, %c0_i32_0 : i32, i32
  }
  func.func @transform_2(%arg0: i32) -> (i32, i32, i32) {
    %c0_i32 = arith.constant 0 : i32
    %c0_i32_0 = arith.constant 0 : i32
    %c0_i32_1 = arith.constant 0 : i32
    return %arg0, %c0_i32, %c0_i32_0 : i32, i32, i32
  }
  func.func @transform_3(%arg0: i32) -> (i32, i32, i32) {
    %c0_i32 = arith.constant 0 : i32
    %c0_i32_0 = arith.constant 0 : i32
    %c0_i32_1 = arith.constant 0 : i32
    return %arg0, %c0_i32, %c0_i32_0 : i32, i32, i32
  }
  func.func @transform_4(%arg0: i32) -> (i32, i32, i32) {
    %c0_i32 = arith.constant 0 : i32
    %c0_i32_0 = arith.constant 0 : i32
    %c0_i32_1 = arith.constant 0 : i32
    return %arg0, %c0_i32, %c0_i32_0 : i32, i32, i32
  }
  func.func @transform_5(%arg0: i32) -> (i32, i32, i32) {
    %c0_i32 = arith.constant 0 : i32
    %c0_i32_0 = arith.constant 0 : i32
    %c0_i32_1 = arith.constant 0 : i32
    return %arg0, %c0_i32, %c0_i32_0 : i32, i32, i32
  }
  func.func @transform_6(%arg0: i32) -> (i32, i32, i32) {
    %c0_i32 = arith.constant 0 : i32
    %c0_i32_0 = arith.constant 0 : i32
    %c0_i32_1 = arith.constant 0 : i32
    return %arg0, %c0_i32, %c0_i32_0 : i32, i32, i32
  }
}

module attributes {stable_mosaic.version = 11 : i64} {
  func.func @_attn_kernel(%arg0: i32, %arg1: memref<8x32xf32, #tpu.memory_space<vmem>>, %arg2: memref<8x1xf32, #tpu.memory_space<vmem>>, %arg3: memref<1x32xf32, #tpu.memory_space<vmem>>, %arg4: memref<1x32xf32, #tpu.memory_space<vmem>>, %arg5: memref<32x16xf32, #tpu.memory_space<vmem>>, %arg6: memref<1x16xf32, #tpu.memory_space<vmem>>, %arg7: memref<1x16xf32, #tpu.memory_space<vmem>>, %arg8: memref<2x4xf32, #tpu.memory_space<vmem>>, %arg9: memref<2x32xf32, #tpu.memory_space<vmem>>) attributes {dimension_semantics = [#tpu.dimension_semantics<arbitrary>], iteration_bounds = array<i64: 1>, scalar_prefetch = 0 : i64, scratch_operands = 0 : i64, tpu.core_type = #tpu.core_type<tc>, window_params = [{pipeline_mode = #tpu.pipeline_mode<synchronous>, transform_indices = @transform_0, window_bounds = array<i64: 8, 32>}, {pipeline_mode = #tpu.pipeline_mode<synchronous>, transform_indices = @transform_1, window_bounds = array<i64: 8, 1>}, {pipeline_mode = #tpu.pipeline_mode<synchronous>, transform_indices = @transform_2, window_bounds = array<i64: 1, 32>}, {pipeline_mode = #tpu.pipeline_mode<synchronous>, transform_indices = @transform_3, window_bounds = array<i64: 1, 32>}, {pipeline_mode = #tpu.pipeline_mode<synchronous>, transform_indices = @transform_4, window_bounds = array<i64: 32, 16>}, {pipeline_mode = #tpu.pipeline_mode<synchronous>, transform_indices = @transform_5, window_bounds = array<i64: 1, 16>}, {pipeline_mode = #tpu.pipeline_mode<synchronous>, transform_indices = @transform_6, window_bounds = array<i64: 1, 16>}, {pipeline_mode = #tpu.pipeline_mode<synchronous>, transform_indices = @transform_7, window_bounds = array<i64: 2, 4>}, {pipeline_mode = #tpu.pipeline_mode<synchronous>, transform_indices = @transform_8, window_bounds = array<i64: 2, 32>}]} {
    %c0 = arith.constant 0 : index
    %c0_0 = arith.constant 0 : index
    %0 = vector.load %arg1[%c0, %c0_0] : memref<8x32xf32, #tpu.memory_space<vmem>>, vector<8x32xf32>
    %c0_1 = arith.constant 0 : index
    %c0_2 = arith.constant 0 : index
    %1 = vector.load %arg2[%c0_1, %c0_2] : memref<8x1xf32, #tpu.memory_space<vmem>>, vector<8x1xf32>
    %cst = arith.constant dense<0.000000e+00> : vector<8xf32>
    %2 = vector.multi_reduction <add>, %0, %cst [1] : vector<8x32xf32> to vector<8xf32>
    %3 = vector.shape_cast %2 : vector<8xf32> to vector<8x1xf32>
    %cst_3 = arith.constant 3.200000e+01 : f32
    %4 = vector.broadcast %cst_3 : f32 to vector<8x1xf32>
    %5 = arith.divf %3, %4 : vector<8x1xf32>
    %6 = vector.broadcast %5 : vector<8x1xf32> to vector<8x32xf32>
    %7 = arith.subf %0, %6 : vector<8x32xf32>
    %8 = arith.mulf %7, %7 : vector<8x32xf32>
    %cst_4 = arith.constant dense<0.000000e+00> : vector<8xf32>
    %9 = vector.multi_reduction <add>, %8, %cst_4 [1] : vector<8x32xf32> to vector<8xf32>
    %10 = vector.shape_cast %9 : vector<8xf32> to vector<8x1xf32>
    %cst_5 = arith.constant 3.200000e+01 : f32
    %11 = vector.broadcast %cst_5 : f32 to vector<8x1xf32>
    %12 = arith.divf %10, %11 : vector<8x1xf32>
    %13 = vector.broadcast %5 : vector<8x1xf32> to vector<8x32xf32>
    %14 = arith.subf %0, %13 : vector<8x32xf32>
    %cst_6 = arith.constant 9.99999974E-6 : f32
    %15 = vector.broadcast %cst_6 : f32 to vector<8x1xf32>
    %16 = arith.addf %12, %15 : vector<8x1xf32>
    %17 = math.rsqrt %16 : vector<8x1xf32>
    %18 = vector.broadcast %17 : vector<8x1xf32> to vector<8x32xf32>
    %19 = arith.mulf %14, %18 : vector<8x32xf32>
    %c0_7 = arith.constant 0 : index
    %c0_8 = arith.constant 0 : index
    %20 = vector.load %arg3[%c0_7, %c0_8] : memref<1x32xf32, #tpu.memory_space<vmem>>, vector<1x32xf32>
    %21 = vector.broadcast %20 : vector<1x32xf32> to vector<8x32xf32>
    %22 = arith.mulf %19, %21 : vector<8x32xf32>
    %c0_9 = arith.constant 0 : index
    %c0_10 = arith.constant 0 : index
    %23 = vector.load %arg4[%c0_9, %c0_10] : memref<1x32xf32, #tpu.memory_space<vmem>>, vector<1x32xf32>
    %24 = vector.broadcast %23 : vector<1x32xf32> to vector<8x32xf32>
    %25 = arith.addf %22, %24 : vector<8x32xf32>
    %26 = arith.truncf %25 : vector<8x32xf32> to vector<8x32xbf16>
    %c0_11 = arith.constant 0 : index
    %c0_12 = arith.constant 0 : index
    %27 = vector.load %arg5[%c0_11, %c0_12] : memref<32x16xf32, #tpu.memory_space<vmem>>, vector<32x16xf32>
    %28 = arith.truncf %27 : vector<32x16xf32> to vector<32x16xbf16>
    %cst_13 = arith.constant dense<0.000000e+00> : vector<8x16xf32>
    %29 = tpu.matmul %26, %28, %cst_13 {dimension_numbers = #tpu.dot_dimension_numbers<[1], [0], [0], [1], [0, 0, 1, 1], [], []>} : vector<8x32xbf16>, vector<32x16xbf16>, vector<8x16xf32> -> vector<8x16xf32>
    %c0_14 = arith.constant 0 : index
    %c0_15 = arith.constant 0 : index
    %30 = vector.load %arg6[%c0_14, %c0_15] : memref<1x16xf32, #tpu.memory_space<vmem>>, vector<1x16xf32>
    %31 = vector.broadcast %30 : vector<1x16xf32> to vector<8x16xf32>
    %32 = arith.addf %29, %31 : vector<8x16xf32>
    %33 = math.tanh %32 : vector<8x16xf32>
    %c0_16 = arith.constant 0 : index
    %c0_17 = arith.constant 0 : index
    %34 = vector.load %arg7[%c0_16, %c0_17] : memref<1x16xf32, #tpu.memory_space<vmem>>, vector<1x16xf32>
    %35 = vector.broadcast %34 : vector<1x16xf32> to vector<8x16xf32>
    %36 = arith.mulf %33, %35 : vector<8x16xf32>
    %cst_18 = arith.constant dense<0.000000e+00> : vector<8xf32>
    %37 = vector.multi_reduction <add>, %36, %cst_18 [1] : vector<8x16xf32> to vector<8xf32>
    %38 = vector.shape_cast %37 : vector<8xf32> to vector<8x1xf32>
    %cst_19 = arith.constant 0.000000e+00 : f32
    %39 = vector.broadcast %cst_19 : f32 to vector<8x1xf32>
    %40 = arith.cmpf ogt, %1, %39 : vector<8x1xf32>
    %cst_20 = arith.constant -3.400000e+38 : f32
    %41 = vector.broadcast %cst_20 : f32 to vector<8x1xf32>
    %42 = arith.select %40, %38, %41 : vector<8x1xi1>, vector<8x1xf32>
    %cst_21 = arith.constant dense<0xFF800000> : vector<1xf32>
    %43 = vector.multi_reduction <maximumf>, %42, %cst_21 [0] : vector<8x1xf32> to vector<1xf32>
    %44 = vector.shape_cast %43 : vector<1xf32> to vector<1x1xf32>
    %cst_22 = arith.constant 0.000000e+00 : f32
    %45 = vector.broadcast %cst_22 : f32 to vector<8x1xf32>
    %46 = arith.cmpf ogt, %1, %45 : vector<8x1xf32>
    %47 = vector.shape_cast %44 : vector<1x1xf32> to vector<1x1xf32>
    %48 = vector.broadcast %47 : vector<1x1xf32> to vector<8x1xf32>
    %49 = arith.select %46, %38, %48 : vector<8x1xi1>, vector<8x1xf32>
    %50 = vector.broadcast %44 : vector<1x1xf32> to vector<8x1xf32>
    %51 = arith.subf %49, %50 : vector<8x1xf32>
    %52 = math.exp %51 : vector<8x1xf32>
    %53 = arith.mulf %52, %1 : vector<8x1xf32>
    %54 = tpu.iota {dimensions = array<i32: 1>} : vector<2x8xi32>
    %55 = tpu.iota {dimensions = array<i32: 0>} : vector<2x8xi32>
    %c4_i32 = arith.constant 4 : i32
    %56 = vector.broadcast %c4_i32 : i32 to vector<2x8xi32>
    %57 = arith.muli %55, %56 : vector<2x8xi32>
    %58 = arith.cmpi sge, %54, %57 : vector<2x8xi32>
    %c4_i32_23 = arith.constant 4 : i32
    %59 = vector.broadcast %c4_i32_23 : i32 to vector<2x8xi32>
    %60 = arith.muli %55, %59 : vector<2x8xi32>
    %c4_i32_24 = arith.constant 4 : i32
    %61 = vector.broadcast %c4_i32_24 : i32 to vector<2x8xi32>
    %62 = arith.addi %60, %61 : vector<2x8xi32>
    %63 = arith.cmpi slt, %54, %62 : vector<2x8xi32>
    %64 = arith.andi %58, %63 : vector<2x8xi1>
    %65 = arith.extui %64 : vector<2x8xi1> to vector<2x8xi32>
    %66 = arith.sitofp %65 : vector<2x8xi32> to vector<2x8xf32>
    %67 = tpu.iota {dimensions = array<i32: 0>} : vector<8x2xi32>
    %68 = tpu.iota {dimensions = array<i32: 1>} : vector<8x2xi32>
    %c4_i32_25 = arith.constant 4 : i32
    %69 = vector.broadcast %c4_i32_25 : i32 to vector<8x2xi32>
    %70 = arith.muli %68, %69 : vector<8x2xi32>
    %71 = arith.cmpi sge, %67, %70 : vector<8x2xi32>
    %72 = arith.extui %71 : vector<8x2xi1> to vector<8x2xi32>
    %73 = arith.sitofp %72 : vector<8x2xi32> to vector<8x2xf32>
    %cst_26 = arith.constant dense<0.000000e+00> : vector<8xf32>
    %74 = vector.multi_reduction <add>, %73, %cst_26 [1] : vector<8x2xf32> to vector<8xf32>
    %75 = vector.shape_cast %74 : vector<8xf32> to vector<8x1xf32>
    %cst_27 = arith.constant 1.000000e+00 : f32
    %76 = vector.broadcast %cst_27 : f32 to vector<8x1xf32>
    %77 = arith.subf %75, %76 : vector<8x1xf32>
    %78 = tpu.iota {dimensions = array<i32: 0>} : vector<8x4xi32>
    %79 = arith.sitofp %78 : vector<8x4xi32> to vector<8x4xf32>
    %80 = tpu.iota {dimensions = array<i32: 1>} : vector<8x4xi32>
    %81 = arith.sitofp %80 : vector<8x4xi32> to vector<8x4xf32>
    %cst_28 = arith.constant 4.000000e+00 : f32
    %82 = vector.broadcast %cst_28 : f32 to vector<8x1xf32>
    %83 = arith.mulf %82, %77 : vector<8x1xf32>
    %84 = vector.broadcast %83 : vector<8x1xf32> to vector<8x4xf32>
    %85 = arith.subf %79, %84 : vector<8x4xf32>
    %86 = arith.cmpf oeq, %85, %81 : vector<8x4xf32>
    %87 = arith.extui %86 : vector<8x4xi1> to vector<8x4xi32>
    %88 = arith.sitofp %87 : vector<8x4xi32> to vector<8x4xf32>
    %89 = vector.broadcast %53 : vector<8x1xf32> to vector<8x4xf32>
    %90 = arith.mulf %89, %88 : vector<8x4xf32>
    %cst_29 = arith.constant dense<0.000000e+00> : vector<2x4xf32>
    %91 = tpu.matmul %66, %90, %cst_29 {dimension_numbers = #tpu.dot_dimension_numbers<[1], [0], [0], [1], [0, 0, 1, 1], [], []>} : vector<2x8xf32>, vector<8x4xf32>, vector<2x4xf32> -> vector<2x4xf32>
    %92 = vector.broadcast %53 : vector<8x1xf32> to vector<8x32xf32>
    %93 = arith.mulf %92, %0 : vector<8x32xf32>
    %cst_30 = arith.constant dense<0.000000e+00> : vector<2x32xf32>
    %94 = tpu.matmul %66, %93, %cst_30 {dimension_numbers = #tpu.dot_dimension_numbers<[1], [0], [0], [1], [0, 0, 1, 1], [], []>} : vector<2x8xf32>, vector<8x32xf32>, vector<2x32xf32> -> vector<2x32xf32>
    %cst_31 = arith.constant dense<0.000000e+00> : vector<2xf32>
    %95 = vector.multi_reduction <add>, %91, %cst_31 [1] : vector<2x4xf32> to vector<2xf32>
    %96 = vector.shape_cast %95 : vector<2xf32> to vector<2x1xf32>
    %cst_32 = arith.constant 0.000000e+00 : f32
    %97 = vector.broadcast %cst_32 : f32 to vector<2x1xf32>
    %98 = arith.cmpf ogt, %96, %97 : vector<2x1xf32>
    %cst_33 = arith.constant 1.000000e-30 : f32
    %99 = vector.broadcast %cst_33 : f32 to vector<2x1xf32>
    %100 = arith.maximumf %96, %99 : vector<2x1xf32>
    %cst_34 = arith.constant 1.000000e+00 : f32
    %101 = vector.broadcast %cst_34 : f32 to vector<2x1xf32>
    %102 = arith.divf %101, %100 : vector<2x1xf32>
    %cst_35 = arith.constant 0.000000e+00 : f32
    %103 = vector.broadcast %cst_35 : f32 to vector<2x1xf32>
    %104 = arith.select %98, %102, %103 : vector<2x1xi1>, vector<2x1xf32>
    %105 = vector.broadcast %104 : vector<2x1xf32> to vector<2x4xf32>
    %106 = arith.mulf %91, %105 : vector<2x4xf32>
    %c0_36 = arith.constant 0 : index
    %c0_37 = arith.constant 0 : index
    %107 = vector.load %arg8[%c0_36, %c0_37] : memref<2x4xf32, #tpu.memory_space<vmem>>, vector<2x4xf32>
    tpu.vector_store %arg8[%c0_36, %c0_37], %106 {strides = array<i32>} : memref<2x4xf32, #tpu.memory_space<vmem>>, vector<2x4xf32>,
    %108 = vector.broadcast %104 : vector<2x1xf32> to vector<2x32xf32>
    %109 = arith.mulf %94, %108 : vector<2x32xf32>
    %c0_38 = arith.constant 0 : index
    %c0_39 = arith.constant 0 : index
    %110 = vector.load %arg9[%c0_38, %c0_39] : memref<2x32xf32, #tpu.memory_space<vmem>>, vector<2x32xf32>
    tpu.vector_store %arg9[%c0_38, %c0_39], %109 {strides = array<i32>} : memref<2x32xf32, #tpu.memory_space<vmem>>, vector<2x32xf32>,
    return
  }
  func.func @transform_0(%arg0: i32) -> (i32, i32) {
    %c0_i32 = arith.constant 0 : i32
    %c0_i32_0 = arith.constant 0 : i32
    %c0_i32_1 = arith.constant 0 : i32
    return %c0_i32, %c0_i32_0 : i32, i32
  }
  func.func @transform_1(%arg0: i32) -> (i32, i32) {
    %c0_i32 = arith.constant 0 : i32
    %c0_i32_0 = arith.constant 0 : i32
    %c0_i32_1 = arith.constant 0 : i32
    return %c0_i32, %c0_i32_0 : i32, i32
  }
  func.func @transform_2(%arg0: i32) -> (i32, i32) {
    %c0_i32 = arith.constant 0 : i32
    %c0_i32_0 = arith.constant 0 : i32
    %c0_i32_1 = arith.constant 0 : i32
    return %c0_i32, %c0_i32_0 : i32, i32
  }
  func.func @transform_3(%arg0: i32) -> (i32, i32) {
    %c0_i32 = arith.constant 0 : i32
    %c0_i32_0 = arith.constant 0 : i32
    %c0_i32_1 = arith.constant 0 : i32
    return %c0_i32, %c0_i32_0 : i32, i32
  }
  func.func @transform_4(%arg0: i32) -> (i32, i32) {
    %c0_i32 = arith.constant 0 : i32
    %c0_i32_0 = arith.constant 0 : i32
    %c0_i32_1 = arith.constant 0 : i32
    return %c0_i32, %c0_i32_0 : i32, i32
  }
  func.func @transform_5(%arg0: i32) -> (i32, i32) {
    %c0_i32 = arith.constant 0 : i32
    %c0_i32_0 = arith.constant 0 : i32
    %c0_i32_1 = arith.constant 0 : i32
    return %c0_i32, %c0_i32_0 : i32, i32
  }
  func.func @transform_6(%arg0: i32) -> (i32, i32) {
    %c0_i32 = arith.constant 0 : i32
    %c0_i32_0 = arith.constant 0 : i32
    %c0_i32_1 = arith.constant 0 : i32
    return %c0_i32, %c0_i32_0 : i32, i32
  }
  func.func @transform_7(%arg0: i32) -> (i32, i32) {
    %c0_i32 = arith.constant 0 : i32
    %c0_i32_0 = arith.constant 0 : i32
    %c0_i32_1 = arith.constant 0 : i32
    return %c0_i32, %c0_i32_0 : i32, i32
  }
  func.func @transform_8(%arg0: i32) -> (i32, i32) {
    %c0_i32 = arith.constant 0 : i32
    %c0_i32_0 = arith.constant 0 : i32
    %c0_i32_1 = arith.constant 0 : i32
    return %c0_i32, %c0_i32_0 : i32, i32
  }
}

</mosaic_0001>

<llo_original>
// kernel: review_han_forward.4
$region0: #{review_han_forward.4}
  #allocation0 [shape = 'u32[]', space=smem, size = 0x4, offset = 0x4, fixed_abs, tag = 'smem constant byte address 0x4 - core index']
  #allocation1 [shape = 'u32[144,128]{1,0:T(1,128)}', space=vmem, size = 0x12000, scoped, tag = 'internal scratch']
  #allocation2 [shape = 'f32[48,48]{1,0:T(8,128)}', space=vmem, size = 0x6000, scoped, tag = 'scratch operand']
  %s0 = inlined_call_operand.vmem [shape: f32[48,32], index: 0, kind: input, shape index: {}]
  %s1 = inlined_call_operand.vmem [shape: s32[8,1], index: 1, kind: input, shape index: {}]
  %s2 = inlined_call_operand.vmem [shape: f32[2,32,48], index: 2, kind: input, shape index: {}]
  %s3 = inlined_call_operand.vmem [shape: f32[2,1,48], index: 3, kind: input, shape index: {}]
  %s4 = inlined_call_operand.vmem [shape: f32[2,16,48], index: 4, kind: input, shape index: {}]
  %s5 = inlined_call_operand.vmem [shape: f32[2,1,48], index: 5, kind: input, shape index: {}]
  %s6 = inlined_call_operand.vmem [shape: f32[2,48,16], index: 6, kind: output, shape index: {}]
  %s7 = sld [smem:[#allocation0]]
  $region65: #{review_han_forward.4} parent=0
    _
  %s9 = ssub.s32 1, %s7
  %s10 = scalar_select 0, %s9, %s7
  loop: start=0, step=1, limit=4
  $region2: #{review_han_forward.4} parent=0 // loop_pre_header
    _
  $region3: #{review_han_forward.4} parent=0 // loop_header
    %s12 = sphi 0, %s16
    %p13 = scmp.ge.s32.totalorder %s12, 4
    %s20 = sphi 0, %s20
    %s22 = sphi 0, %s20
    %s23 = sphi 0, %s22
    %s37 = sphi 0, %s23
    %s41 = sphi 0, %s41
    %s43 = sphi 0, %s41
    %s44 = sphi 0, %s43
    %s58 = sphi 0, %s44
    %s64 = sphi 0, %s66
    %s67 = sphi 0, %s64
    %s68 = sphi 0, %s67
    %s84 = sphi 0, %s68
    %s90 = sphi 0, %s92
    %s93 = sphi 0, %s90
    %s94 = sphi 0, %s93
    %s110 = sphi 0, %s94
    %s116 = sphi 0, %s118
    %s119 = sphi 0, %s116
    %s120 = sphi 0, %s119
    %s136 = sphi 0, %s120
    %s142 = sphi 0, %s144
    %s145 = sphi 0, %s142
    %s146 = sphi 0, %s145
    %s162 = sphi 0, %s146
    %s168 = sphi 0, %s170
    %s171 = sphi 0, %s168
    %s172 = sphi 0, %s171
    %s188 = sphi 0, %s172
  $region4: #{review_han_forward.4} parent=0 // loop_header_branch
    %15 = sbr.rel (%p13) target = $region8
  $region5: #{review_han_forward.4} parent=0 // loop_body
    %s17 = ssub.s32 %s12, 1
    %s18 = ssub.s32 %s12, 2
    %s19 = sadd.s32 %s12, 1
    %s21 = sadd.s32 %s20, 1
    %p24 = scmp.eq.s32.totalorder %s12, 1
    %p25 = scmp.ne.s32.totalorder %s20, %s22
    %p26 = scmp.eq.s32.totalorder %s12, 0
    %p27 = por %p25, %p26
    %p28 = scmp.ne.s32.totalorder %s20, %s22
    %p29 = scmp.eq.s32.totalorder %s17, 1
    %p30 = por %p28, %p29
    %p31 = scmp.ne.s32.totalorder %s22, %s23
    %p32 = scmp.eq.s32.totalorder %s17, 0
    %p33 = por %p31, %p32
    %p34 = scmp.ne.s32.totalorder %s22, %s23
    %p35 = scmp.eq.s32.totalorder %s18, 1
    %p36 = por %p34, %p35
    %p38 = scmp.ne.s32.totalorder %s23, %s37
    %p39 = scmp.eq.s32.totalorder %s18, 0
    %p40 = por %p38, %p39
    %s42 = sadd.s32 %s41, 1
    %p45 = scmp.eq.s32.totalorder %s12, 1
    %p46 = scmp.ne.s32.totalorder %s41, %s43
    %p47 = scmp.eq.s32.totalorder %s12, 0
    %p48 = por %p46, %p47
    %p49 = scmp.ne.s32.totalorder %s41, %s43
    %p50 = scmp.eq.s32.totalorder %s17, 1
    %p51 = por %p49, %p50
    %p52 = scmp.ne.s32.totalorder %s43, %s44
    %p53 = scmp.eq.s32.totalorder %s17, 0
    %p54 = por %p52, %p53
    %p55 = scmp.ne.s32.totalorder %s43, %s44
    %p56 = scmp.eq.s32.totalorder %s18, 1
    %p57 = por %p55, %p56
    %p59 = scmp.ne.s32.totalorder %s44, %s58
    %p60 = scmp.eq.s32.totalorder %s18, 0
    %p61 = por %p59, %p60
    %s62 = ssub.s32 %s12, %s19
    %p63 = scmp.eq.s32.totalorder %s62, 0
    %s65 = sadd.s32 %s64, 1
    %s66 = scalar_select %p63, %s64, %s65
    %p69 = pneg %p63
    %p70 = scmp.eq.s32.totalorder %s12, 1
    %p71 = por %p69, %p70
    %p72 = scmp.ne.s32.totalorder %s64, %s67
    %p73 = scmp.eq.s32.totalorder %s12, 0
    %p74 = por %p72, %p73
    %p75 = scmp.ne.s32.totalorder %s64, %s67
    %p76 = scmp.eq.s32.totalorder %s17, 1
    %p77 = por %p75, %p76
    %p78 = scmp.ne.s32.totalorder %s67, %s68
    %p79 = scmp.eq.s32.totalorder %s17, 0
    %p80 = por %p78, %p79
    %p81 = scmp.ne.s32.totalorder %s67, %s68
    %p82 = scmp.eq.s32.totalorder %s18, 1
    %p83 = por %p81, %p82
    %p85 = scmp.ne.s32.totalorder %s68, %s84
    %p86 = scmp.eq.s32.totalorder %s18, 0
    %p87 = por %p85, %p86
    %s88 = ssub.s32 %s12, %s19
    %p89 = scmp.eq.s32.totalorder %s88, 0
    %s91 = sadd.s32 %s90, 1
    %s92 = scalar_select %p89, %s90, %s91
    %p95 = pneg %p89
    %p96 = scmp.eq.s32.totalorder %s12, 1
    %p97 = por %p95, %p96
    %p98 = scmp.ne.s32.totalorder %s90, %s93
    %p99 = scmp.eq.s32.totalorder %s12, 0
    %p100 = por %p98, %p99
    %p101 = scmp.ne.s32.totalorder %s90, %s93
    %p102 = scmp.eq.s32.totalorder %s17, 1
    %p103 = por %p101, %p102
    %p104 = scmp.ne.s32.totalorder %s93, %s94
    %p105 = scmp.eq.s32.totalorder %s17, 0
    %p106 = por %p104, %p105
    %p107 = scmp.ne.s32.totalorder %s93, %s94
    %p108 = scmp.eq.s32.totalorder %s18, 1
    %p109 = por %p107, %p108
    %p111 = scmp.ne.s32.totalorder %s94, %s110
    %p112 = scmp.eq.s32.totalorder %s18, 0
    %p113 = por %p111, %p112
    %s114 = ssub.s32 %s12, %s19
    %p115 = scmp.eq.s32.totalorder %s114, 0
    %s117 = sadd.s32 %s116, 1
    %s118 = scalar_select %p115, %s116, %s117
    %p121 = pneg %p115
    %p122 = scmp.eq.s32.totalorder %s12, 1
    %p123 = por %p121, %p122
    %p124 = scmp.ne.s32.totalorder %s116, %s119
    %p125 = scmp.eq.s32.totalorder %s12, 0
    %p126 = por %p124, %p125
    %p127 = scmp.ne.s32.totalorder %s116, %s119
    %p128 = scmp.eq.s32.totalorder %s17, 1
    %p129 = por %p127, %p128
    %p130 = scmp.ne.s32.totalorder %s119, %s120
    %p131 = scmp.eq.s32.totalorder %s17, 0
    %p132 = por %p130, %p131
    %p133 = scmp.ne.s32.totalorder %s119, %s120
    %p134 = scmp.eq.s32.totalorder %s18, 1
    %p135 = por %p133, %p134
    %p137 = scmp.ne.s32.totalorder %s120, %s136
    %p138 = scmp.eq.s32.totalorder %s18, 0
    %p139 = por %p137, %p138
    %s140 = ssub.s32 %s12, %s19
    %p141 = scmp.eq.s32.totalorder %s140, 0
    %s143 = sadd.s32 %s142, 1
    %s144 = scalar_select %p141, %s142, %s143
    %p147 = pneg %p141
    %p148 = scmp.eq.s32.totalorder %s12, 1
    %p149 = por %p147, %p148
    %p150 = scmp.ne.s32.totalorder %s142, %s145
    %p151 = scmp.eq.s32.totalorder %s12, 0
    %p152 = por %p150, %p151
    %p153 = scmp.ne.s32.totalorder %s142, %s145
    %p154 = scmp.eq.s32.totalorder %s17, 1
    %p155 = por %p153, %p154
    %p156 = scmp.ne.s32.totalorder %s145, %s146
    %p157 = scmp.eq.s32.totalorder %s17, 0
    %p158 = por %p156, %p157
    %p159 = scmp.ne.s32.totalorder %s145, %s146
    %p160 = scmp.eq.s32.totalorder %s18, 1
    %p161 = por %p159, %p160
    %p163 = scmp.ne.s32.totalorder %s146, %s162
    %p164 = scmp.eq.s32.totalorder %s18, 0
    %p165 = por %p163, %p164
    %s166 = ssub.s32 %s12, %s19
    %p167 = scmp.eq.s32.totalorder %s166, 0
    %s169 = sadd.s32 %s168, 1
    %s170 = scalar_select %p167, %s168, %s169
    %p173 = pneg %p167
    %p174 = scmp.eq.s32.totalorder %s12, 1
    %p175 = por %p173, %p174
    %p176 = scmp.ne.s32.totalorder %s168, %s171
    %p177 = scmp.eq.s32.totalorder %s12, 0
    %p178 = por %p176, %p177
    %p179 = scmp.ne.s32.totalorder %s168, %s171
    %p180 = scmp.eq.s32.totalorder %s17, 1
    %p181 = por %p179, %p180
    %p182 = scmp.ne.s32.totalorder %s171, %s172
    %p183 = scmp.eq.s32.totalorder %s17, 0
    %p184 = por %p182, %p183
    %p185 = scmp.ne.s32.totalorder %s171, %s172
    %p186 = scmp.eq.s32.totalorder %s18, 1
    %p187 = por %p185, %p186
    %p189 = scmp.ne.s32.totalorder %s172, %s188
    %p190 = scmp.eq.s32.totalorder %s18, 0
    %p191 = por %p189, %p190
    %p192 = scmp.le.s32.totalorder 1, %s12
    %p193 = scmp.lt.s32.totalorder %s12, 3
    %p194 = pnand %p192, %p193
    %p195 = pneg %p194
    // Predicated region
    $region9: #{review_han_forward.4} parent=5 // pred_check
      _
    $region10: #{review_han_forward.4} parent=5 // pred_check_branch
      %197 = sbr.rel (%p194) target = $region12
    $region11: #{review_han_forward.4} parent=5 // pred_region
      %s198 = ssub.s32 %s12, 1
      // Predicated region
      $region13: #{review_han_forward.4} parent=11 // pred_check
        %p199 = pneg %p33
      $region14: #{review_han_forward.4} parent=11 // pred_check_branch
        %201 = sbr.rel (%p199) target = $region16
      $region15: #{review_han_forward.4} parent=11 // pred_region
        _
      $region16: #{review_han_forward.4} parent=11 // pred_fallthru
        _
      // Predicated region
      $region17: #{review_han_forward.4} parent=11 // pred_check
        %p202 = pneg %p54
      $region18: #{review_han_forward.4} parent=11 // pred_check_branch
        %204 = sbr.rel (%p202) target = $region20
      $region19: #{review_han_forward.4} parent=11 // pred_region
        _
      $region20: #{review_han_forward.4} parent=11 // pred_fallthru
        _
    $region12: #{review_han_forward.4} parent=5 // pred_fallthru
      _
    %p205 = scmp.lt.s32.totalorder %s12, 2
    // Predicated region
    $region21: #{review_han_forward.4} parent=5 // pred_check
      %p206 = pneg %p205
    $region22: #{review_han_forward.4} parent=5 // pred_check_branch
      %208 = sbr.rel (%p206) target = $region24
    $region23: #{review_han_forward.4} parent=5 // pred_region
      // Predicated region
      $region25: #{review_han_forward.4} parent=23 // pred_check
        %p209 = pneg %p74
      $region26: #{review_han_forward.4} parent=23 // pred_check_branch
        %211 = sbr.rel (%p209) target = $region28
      $region27: #{review_han_forward.4} parent=23 // pred_region
        %p212 = scmp.lt.s32.totalorder %s12, 1
        %s213 = scalar_select %p212, %s12, 1
        %s214 = smul.addr %s213, 4
        %s215 = smul.addr %s214, 8
        %s216 = scalar_lea.vmem %s2, %s215
      $region28: #{review_han_forward.4} parent=23 // pred_fallthru
        _
      // Predicated region
      $region29: #{review_han_forward.4} parent=23 // pred_check
        %p217 = pneg %p100
      $region30: #{review_han_forward.4} parent=23 // pred_check_branch
        %219 = sbr.rel (%p217) target = $region32
      $region31: #{review_han_forward.4} parent=23 // pred_region
        %p220 = scmp.lt.s32.totalorder %s12, 1
        %s221 = scalar_select %p220, %s12, 1
        %s222 = scalar_lea.vmem %s3, %s221
      $region32: #{review_han_forward.4} parent=23 // pred_fallthru
        _
      // Predicated region
      $region33: #{review_han_forward.4} parent=23 // pred_check
        %p223 = pneg %p126
      $region34: #{review_han_forward.4} parent=23 // pred_check_branch
        %225 = sbr.rel (%p223) target = $region36
      $region35: #{review_han_forward.4} parent=23 // pred_region
        %p226 = scmp.lt.s32.totalorder %s12, 1
        %s227 = scalar_select %p226, %s12, 1
        %s228 = smul.addr %s227, 2
        %s229 = smul.addr %s228, 8
        %s230 = scalar_lea.vmem %s4, %s229
      $region36: #{review_han_forward.4} parent=23 // pred_fallthru
        _
      // Predicated region
      $region37: #{review_han_forward.4} parent=23 // pred_check
        %p231 = pneg %p152
      $region38: #{review_han_forward.4} parent=23 // pred_check_branch
        %233 = sbr.rel (%p231) target = $region40
      $region39: #{review_han_forward.4} parent=23 // pred_region
        %p234 = scmp.lt.s32.totalorder %s12, 1
        %s235 = scalar_select %p234, %s12, 1
        %s236 = scalar_lea.vmem %s5, %s235
      $region40: #{review_han_forward.4} parent=23 // pred_fallthru
        _
    $region24: #{review_han_forward.4} parent=5 // pred_fallthru
      _
    %p237 = scmp.le.s32.totalorder 1, %s12
    %p238 = scmp.lt.s32.totalorder %s12, 3
    %p239 = pnand %p237, %p238
    %p240 = pneg %p239
    // Predicated region
    $region41: #{review_han_forward.4} parent=5 // pred_check
      _
    $region42: #{review_han_forward.4} parent=5 // pred_check_branch
      %242 = sbr.rel (%p239) target = $region44
    $region43: #{review_han_forward.4} parent=5 // pred_region
      %s243 = ssub.s32 %s12, 1
      %p244 = pneg %p33
      %p245 = pneg %p30
      %p246 = pneg %p54
      %p247 = pneg %p51
      %p248 = scmp.lt.s32.totalorder %s17, 1
      %s249 = scalar_select %p248, %s17, 1
      %s250 = smul.addr %s249, 4
      %s251 = smul.addr %s250, 8
      %s252 = scalar_lea.vmem %s2, %s251
      %p253 = pneg %p80
      %p254 = pneg %p77
      %p255 = scmp.lt.s32.totalorder %s17, 1
      %s256 = scalar_select %p255, %s17, 1
      %s257 = scalar_lea.vmem %s3, %s256
      %p258 = pneg %p106
      %p259 = pneg %p103
      %p260 = scmp.lt.s32.totalorder %s17, 1
      %s261 = scalar_select %p260, %s17, 1
      %s262 = smul.addr %s261, 2
      %s263 = smul.addr %s262, 8
      %s264 = scalar_lea.vmem %s4, %s263
      %p265 = pneg %p132
      %p266 = pneg %p129
      %p267 = scmp.lt.s32.totalorder %s17, 1
      %s268 = scalar_select %p267, %s17, 1
      %s269 = scalar_lea.vmem %s5, %s268
      %p270 = pneg %p158
      %p271 = pneg %p155
      %p272 = pneg %p184
      %p273 = pneg %p181
      %p274 = scmp.lt.s32.totalorder %s17, 1
      %s275 = scalar_select %p274, %s17, 1
      %s276 = smul.addr %s275, 6
      %s277 = smul.addr %s276, 8
      %s278 = scalar_lea.vmem %s6, %s277
      %p279 = scmp.lt.s32.totalorder %s17, 1
      %s280 = scalar_select %p279, %s17, 1
      %s281 = smul.addr %s280, 4
      %s282 = smul.addr %s281, 8
      %s283 = scalar_lea.vmem %s2, %s282
      %p284 = scmp.lt.s32.totalorder %s17, 1
      %s285 = scalar_select %p284, %s17, 1
      %s286 = scalar_lea.vmem %s3, %s285
      %p287 = scmp.lt.s32.totalorder %s17, 1
      %s288 = scalar_select %p287, %s17, 1
      %s289 = smul.addr %s288, 2
      %s290 = smul.addr %s289, 8
      %s291 = scalar_lea.vmem %s4, %s290
      %p292 = scmp.lt.s32.totalorder %s17, 1
      %s293 = scalar_select %p292, %s17, 1
      %s294 = scalar_lea.vmem %s5, %s293
      %p295 = scmp.lt.s32.totalorder %s17, 1
      %s296 = scalar_select %p295, %s17, 1
      %s297 = smul.addr %s296, 6
      %s298 = smul.addr %s297, 8
      %s299 = scalar_lea.vmem %s6, %s298
      %v301 = vld [vmem:[%s0] sm:$0xff]
      %v302 = vld [vmem:[%s0 + $0x8] sm:$0xff]
      %v303 = vld [vmem:[%s0 + $0x10] sm:$0xff]
      %v304 = vld [vmem:[%s0 + $0x18] sm:$0xff]
      %v305 = vld [vmem:[%s0 + $0x20] sm:$0xff]
      %v306 = vld [vmem:[%s0 + $0x28] sm:$0xff]
      %v307 = vpack.c.bf16 %v302, %v301
      %v308 = vpack.c.bf16 %v304, %v303
      %v309 = vpack.c.bf16 %v306, %v305
      %v310 = vld [vmem:[%s283] sm:$0xff]
      %v311 = vld [vmem:[%s283 + $0x8] sm:$0xff]
      %v312 = vld [vmem:[%s283 + $0x10] sm:$0xff]
      %v313 = vld [vmem:[%s283 + $0x18] sm:$0xff]
      %v314 = vpack.c.bf16 %v311, %v310
      %v315 = vpack.c.bf16 %v313, %v312
      %v316 = vld [vmem:[%s286] sm:$0x1]
      %v318 = vlaneseq
      %v319 = vshrl.u32 %v318, 7
      %v320 = vsub.s32 0, %v319
      %v321 = vrot.slane %v316, %v320
      %vm323 = vcmask 261120
      %v325 = vsel %vm323, %v307, 0
      %v328 = vsel %vm323, %v308, 0
      %v331 = vsel %vm323, %v309, 0
      %333 = vmatprep.subr.bf16.mxu0 0
      %334 = vmatpush1.bf16.msra.mxu0 %v314
      %335 = vmatprep.subr.bf16.mxu0 0
      %336 = vmatpush1.bf16.msra.mxu0 %v315
      %337 = vmatprep.subr.bf16.mxu0 0
      %338 = vmatpush1.bf16.msra.mxu0 0
      %339 = vmatprep.subr.bf16.mxu0 0
      %340 = vmatpush1.bf16.msra.mxu0 0
      %341 = vmatprep.subr.bf16.mxu0 0
      %342 = vmatpush1.bf16.msra.mxu0 0
      %343 = vmatprep.subr.bf16.mxu0 0
      %344 = vmatpush1.bf16.msra.mxu0 0
      %345 = vmatprep.subr.bf16.mxu0 0
      %346 = vmatpush1.bf16.msra.mxu0 0
      %347 = vmatprep.subr.bf16.mxu0 0
      %348 = vmatpush1.bf16.msra.mxu0 0
      %349 = vmatprep.subr.bf16.mxu0 0
      %350 = vmatpush1.bf16.msra.mxu0 0
      %351 = vmatprep.subr.bf16.mxu0 0
      %352 = vmatpush1.bf16.msra.mxu0 0
      %353 = vmatprep.subr.bf16.mxu0 0
      %354 = vmatpush1.bf16.msra.mxu0 0
      %355 = vmatprep.subr.bf16.mxu0 0
      %356 = vmatpush1.bf16.msra.mxu0 0
      %357 = vmatprep.subr.bf16.mxu0 0
      %358 = vmatpush1.bf16.msra.mxu0 0
      %359 = vmatprep.subr.bf16.mxu0 0
      %360 = vmatpush1.bf16.msra.mxu0 0
      %361 = vmatprep.subr.bf16.mxu0 0
      %362 = vmatpush1.bf16.msra.mxu0 0
      %363 = vmatprep.subr.bf16.mxu0 0
      %364 = vmatpush1.bf16.msra.mxu0 0
      %365 = vmatprep.mubr.bf16.mxu0 0
      %366 = vmatmul.mubr.bf16.gmra.mrb[0].mxu0 %v325
      %v367 = vpop.f32.mrb[0].mxu0
      %v368 = vadd.f32 %v321, %v367
      %v369 = vpop.f32.mrb[0].mxu0
      %v370 = vpop.f32.mrb[0].mxu0
      %v371 = vadd.f32 %v321, %v370
      %v372 = vpop.f32.mrb[0].mxu0
      %373 = vmatprep.mubr.bf16.mxu0 0
      %374 = vmatmul.mubr.bf16.gmra.mrb[0].mxu0 %v328
      %v375 = vpop.f32.mrb[0].mxu0
      %v376 = vadd.f32 %v321, %v375
      %v377 = vpop.f32.mrb[0].mxu0
      %v378 = vpop.f32.mrb[0].mxu0
      %v379 = vadd.f32 %v321, %v378
      %v380 = vpop.f32.mrb[0].mxu0
      %381 = vmatprep.mubr.bf16.mxu0 0
      %382 = vmatmul.mubr.bf16.gmra.mrb[0].mxu0 %v331
      %v383 = vpop.f32.mrb[0].mxu0
      %v384 = vadd.f32 %v321, %v383
      %v385 = vpop.f32.mrb[0].mxu0
      %v386 = vpop.f32.mrb[0].mxu0
      %v387 = vadd.f32 %v321, %v386
      %v388 = vpop.f32.mrb[0].mxu0
      %389 = vdwg.mxu0
      %vm390 = vcmask 392192
      %391 = vst.msk [vmem:[#allocation2] sm:$0xff] %vm390, %v368
      %392 = vst.msk [vmem:[#allocation2 + $0x8] sm:$0xff] %vm390, %v371
      %393 = vst.msk [vmem:[#allocation2 + $0x10] sm:$0xff] %vm390, %v376
      %394 = vst.msk [vmem:[#allocation2 + $0x18] sm:$0xff] %vm390, %v379
      %395 = vst.msk [vmem:[#allocation2 + $0x20] sm:$0xff] %vm390, %v384
      %396 = vst.msk [vmem:[#allocation2 + $0x28] sm:$0xff] %vm390, %v387
      %v397 = vld [vmem:[%s291] sm:$0xff]
      %v398 = vld [vmem:[%s291 + $0x8] sm:$0xff]
      %v399 = vpack.c.bf16 %v398, %v397
      %v400 = vld [vmem:[%s294] sm:$0x1]
      %v401 = vld [vmem:[%s1] sm:$0xff]
      %p402 = scmp.eq.s32.totalorder %s17, 0
      // Predicated region
      $region45: #{review_han_forward.4} parent=43 // pred_check
        %p403 = pneg %p402
      $region46: #{review_han_forward.4} parent=43 // pred_check_branch
        %405 = sbr.rel (%p403) target = $region48
      $region47: #{review_han_forward.4} parent=43 // pred_region
        %v406 = vld [vmem:[#allocation2] sm:$0xff]
        %v408 = vlaneseq
        %v409 = vshrl.u32 %v408, 7
        %v410 = vsub.s32 0, %v409
        %v411 = vrot.slane %v400, %v410
        %vm413 = vcmask 130048
        %v415 = vsel %vm413, 0, 0
        %417 = vmatprep.subr.bf16.mxu0 0
        %418 = vmatpush1.bf16.msra.mxu0 %v399
        %419 = vmatprep.subr.bf16.mxu0 0
        %420 = vmatpush1.bf16.msra.mxu0 0
        %421 = vmatprep.subr.bf16.mxu0 0
        %422 = vmatpush1.bf16.msra.mxu0 0
        %423 = vmatprep.subr.bf16.mxu0 0
        %424 = vmatpush1.bf16.msra.mxu0 0
        %425 = vmatprep.subr.bf16.mxu0 0
        %426 = vmatpush1.bf16.msra.mxu0 0
        %427 = vmatprep.subr.bf16.mxu0 0
        %428 = vmatpush1.bf16.msra.mxu0 0
        %429 = vmatprep.subr.bf16.mxu0 0
        %430 = vmatpush1.bf16.msra.mxu0 0
        %431 = vmatprep.subr.bf16.mxu0 0
        %432 = vmatpush1.bf16.msra.mxu0 0
        %433 = vmatprep.subr.bf16.mxu0 0
        %434 = vmatpush1.bf16.msra.mxu0 0
        %435 = vmatprep.subr.bf16.mxu0 0
        %436 = vmatpush1.bf16.msra.mxu0 0
        %437 = vmatprep.subr.bf16.mxu0 0
        %438 = vmatpush1.bf16.msra.mxu0 0
        %439 = vmatprep.subr.bf16.mxu0 0
        %440 = vmatpush1.bf16.msra.mxu0 0
        %441 = vmatprep.subr.bf16.mxu0 0
        %442 = vmatpush1.bf16.msra.mxu0 0
        %443 = vmatprep.subr.bf16.mxu0 0
        %444 = vmatpush1.bf16.msra.mxu0 0
        %445 = vmatprep.subr.bf16.mxu0 0
        %446 = vmatpush1.bf16.msra.mxu0 0
        %447 = vmatprep.subr.bf16.mxu0 0
        %448 = vmatpush1.bf16.msra.mxu0 0
        %449 = vmatprep.mubr.bf16.mxu0 0
        %450 = vmatmul.mubr.bf16.gmra.mrb[0].mxu0 %v415
        %v451 = vpop.f32.mrb[0].mxu0
        %v452 = vadd.f32 %v411, %v451
        %v453 = vpop.f32.mrb[0].mxu0
        %v454 = vpop.f32.mrb[0].mxu0
        %v455 = vpop.f32.mrb[0].mxu0
        %456 = vdwg.mxu0
        %v457 = vadd.f32 %v406, %v452
        %v458 = vxor.u32 %v457, 2147483648
        %v459 = vmul.f32 %v458, 1.442695
        %v460 = vpow.pop %v459
        %v461 = vadd.f32 %v460, 1.0
        %v462 = vrcp.pop %v461
        %v463 = vmul.f32 1.0, %v462
        %465 = vrot.lane.b32.xlu0 %v452, 96
        %v466 = vpop.permute.xlu0 %465
        %v468 = vmul.f32 %v463, %v466
        %470 = vrot.lane.b32.xlu0 %v468, 32
        %v471 = vpop.permute.xlu0 %470
        %v473 = vadd.f32 %v406, %v471
        %v474 = vtanh.pop %v473
        %v475 = vsub.f32 1.0, %v463
        %477 = vrot.lane.b32.xlu0 %v474, 112
        %v478 = vpop.permute.xlu0 %477
        %v480 = vmul.f32 %v475, %v478
        %v481 = vmul.f32 %v463, 0.0
        %v482 = vadd.f32 %v480, %v481
        %vm483 = vcmp.gt.s32.totalorder %v401, 0
        %v484 = vsel %vm483, 1, 0
        %485 = vset.pattern.permute.xlu0 0
        %486 = vperm.xlu0 %485, %v484
        %v487 = vpop.permute.xlu0 %486
        %vm488 = vcmp.eq.s32.totalorder %v487, 1
        %v489 = vsel %vm488, %v482, 0.0
        %491 = vrot.lane.b32.xlu0 %v489, 112
        %v492 = vpop.permute.xlu0 %491
        %494 = vst.msk [vmem:[%s299] sm:$0xff] %vm413, %v492
        %v495 = vld [vmem:[#allocation2 + $0x8] sm:$0xff]
        %v496 = vpack.c.bf16 %v489, %v489
        %498 = vrot.lane.b32.xlu0 %v496, 112
        %v499 = vpop.permute.xlu0 %498
        %v501 = vsel %vm413, %v499, 0
        %503 = vmatprep.subr.bf16.mxu0 0
        %504 = vmatpush1.bf16.msra.mxu0 %v399
        %505 = vmatprep.subr.bf16.mxu0 0
        %506 = vmatpush1.bf16.msra.mxu0 0
        %507 = vmatprep.subr.bf16.mxu0 0
        %508 = vmatpush1.bf16.msra.mxu0 0
        %509 = vmatprep.subr.bf16.mxu0 0
        %510 = vmatpush1.bf16.msra.mxu0 0
        %511 = vmatprep.subr.bf16.mxu0 0
        %512 = vmatpush1.bf16.msra.mxu0 0
        %513 = vmatprep.subr.bf16.mxu0 0
        %514 = vmatpush1.bf16.msra.mxu0 0
        %515 = vmatprep.subr.bf16.mxu0 0
        %516 = vmatpush1.bf16.msra.mxu0 0
        %517 = vmatprep.subr.bf16.mxu0 0
        %518 = vmatpush1.bf16.msra.mxu0 0
        %519 = vmatprep.subr.bf16.mxu0 0
        %520 = vmatpush1.bf16.msra.mxu0 0
        %521 = vmatprep.subr.bf16.mxu0 0
        %522 = vmatpush1.bf16.msra.mxu0 0
        %523 = vmatprep.subr.bf16.mxu0 0
        %524 = vmatpush1.bf16.msra.mxu0 0
        %525 = vmatprep.subr.bf16.mxu0 0
        %526 = vmatpush1.bf16.msra.mxu0 0
        %527 = vmatprep.subr.bf16.mxu0 0
        %528 = vmatpush1.bf16.msra.mxu0 0
        %529 = vmatprep.subr.bf16.mxu0 0
        %530 = vmatpush1.bf16.msra.mxu0 0
        %531 = vmatprep.subr.bf16.mxu0 0
        %532 = vmatpush1.bf16.msra.mxu0 0
        %533 = vmatprep.subr.bf16.mxu0 0
        %534 = vmatpush1.bf16.msra.mxu0 0
        %535 = vmatprep.mubr.bf16.mxu0 0
        %536 = vmatmul.mubr.bf16.gmra.mrb[0].mxu0 %v501
        %v537 = vpop.f32.mrb[0].mxu0
        %v538 = vadd.f32 %v411, %v537
        %v539 = vpop.f32.mrb[0].mxu0
        %v540 = vpop.f32.mrb[0].mxu0
        %v541 = vpop.f32.mrb[0].mxu0
        %542 = vdwg.mxu0
        %v543 = vadd.f32 %v495, %v538
        %v544 = vxor.u32 %v543, 2147483648
        %v545 = vmul.f32 %v544, 1.442695
        %v546 = vpow.pop %v545
        %v547 = vadd.f32 %v546, 1.0
        %v548 = vrcp.pop %v547
        %v549 = vmul.f32 1.0, %v548
        %551 = vrot.lane.b32.xlu0 %v538, 96
        %v552 = vpop.permute.xlu0 %551
        %v554 = vmul.f32 %v549, %v552
        %556 = vrot.lane.b32.xlu0 %v554, 32
        %v557 = vpop.permute.xlu0 %556
        %v559 = vadd.f32 %v495, %v557
        %v560 = vtanh.pop %v559
        %v561 = vsub.f32 1.0, %v549
        %563 = vrot.lane.b32.xlu0 %v560, 112
        %v564 = vpop.permute.xlu0 %563
        %v566 = vmul.f32 %v561, %v564
        %v567 = vmul.f32 %v549, %v489
        %v568 = vadd.f32 %v566, %v567
        %vm569 = vcmp.gt.s32.totalorder %v401, 1
        %v570 = vsel %vm569, 1, 0
        %571 = vset.pattern.permute.xlu0 0
        %572 = vperm.xlu0 %571, %v570
        %v573 = vpop.permute.xlu0 %572
        %vm574 = vcmp.eq.s32.totalorder %v573, 1
        %v575 = vsel %vm574, %v568, 0.0
        %577 = vrot.lane.b32.xlu0 %v575, 112
        %v578 = vpop.permute.xlu0 %577
        %580 = vst.msk [vmem:[%s299 + $0x8] sm:$0xff] %vm413, %v578
        %v581 = vsel %vm574, %v568, %v489
        %v582 = vld [vmem:[#allocation2 + $0x10] sm:$0xff]
        %v583 = vpack.c.bf16 %v581, %v581
        %585 = vrot.lane.b32.xlu0 %v583, 112
        %v586 = vpop.permute.xlu0 %585
        %v588 = vsel %vm413, %v586, 0
        %590 = vmatprep.subr.bf16.mxu0 0
        %591 = vmatpush1.bf16.msra.mxu0 %v399
        %592 = vmatprep.subr.bf16.mxu0 0
        %593 = vmatpush1.bf16.msra.mxu0 0
        %594 = vmatprep.subr.bf16.mxu0 0
        %595 = vmatpush1.bf16.msra.mxu0 0
        %596 = vmatprep.subr.bf16.mxu0 0
        %597 = vmatpush1.bf16.msra.mxu0 0
        %598 = vmatprep.subr.bf16.mxu0 0
        %599 = vmatpush1.bf16.msra.mxu0 0
        %600 = vmatprep.subr.bf16.mxu0 0
        %601 = vmatpush1.bf16.msra.mxu0 0
        %602 = vmatprep.subr.bf16.mxu0 0
        %603 = vmatpush1.bf16.msra.mxu0 0
        %604 = vmatprep.subr.bf16.mxu0 0
        %605 = vmatpush1.bf16.msra.mxu0 0
        %606 = vmatprep.subr.bf16.mxu0 0
        %607 = vmatpush1.bf16.msra.mxu0 0
        %608 = vmatprep.subr.bf16.mxu0 0
        %609 = vmatpush1.bf16.msra.mxu0 0
        %610 = vmatprep.subr.bf16.mxu0 0
        %611 = vmatpush1.bf16.msra.mxu0 0
        %612 = vmatprep.subr.bf16.mxu0 0
        %613 = vmatpush1.bf16.msra.mxu0 0
        %614 = vmatprep.subr.bf16.mxu0 0
        %615 = vmatpush1.bf16.msra.mxu0 0
        %616 = vmatprep.subr.bf16.mxu0 0
        %617 = vmatpush1.bf16.msra.mxu0 0
        %618 = vmatprep.subr.bf16.mxu0 0
        %619 = vmatpush1.bf16.msra.mxu0 0
        %620 = vmatprep.subr.bf16.mxu0 0
        %621 = vmatpush1.bf16.msra.mxu0 0
        %622 = vmatprep.mubr.bf16.mxu0 0
        %623 = vmatmul.mubr.bf16.gmra.mrb[0].mxu0 %v588
        %v624 = vpop.f32.mrb[0].mxu0
        %v625 = vadd.f32 %v411, %v624
        %v626 = vpop.f32.mrb[0].mxu0
        %v627 = vpop.f32.mrb[0].mxu0
        %v628 = vpop.f32.mrb[0].mxu0
        %629 = vdwg.mxu0
        %v630 = vadd.f32 %v582, %v625
        %v631 = vxor.u32 %v630, 2147483648
        %v632 = vmul.f32 %v631, 1.442695
        %v633 = vpow.pop %v632
        %v634 = vadd.f32 %v633, 1.0
        %v635 = vrcp.pop %v634
        %v636 = vmul.f32 1.0, %v635
        %638 = vrot.lane.b32.xlu0 %v625, 96
        %v639 = vpop.permute.xlu0 %638
        %v641 = vmul.f32 %v636, %v639
        %643 = vrot.lane.b32.xlu0 %v641, 32
        %v644 = vpop.permute.xlu0 %643
        %v646 = vadd.f32 %v582, %v644
        %v647 = vtanh.pop %v646
        %v648 = vsub.f32 1.0, %v636
        %650 = vrot.lane.b32.xlu0 %v647, 112
        %v651 = vpop.permute.xlu0 %650
        %v653 = vmul.f32 %v648, %v651
        %v654 = vmul.f32 %v636, %v581
        %v655 = vadd.f32 %v653, %v654
        %vm656 = vcmp.gt.s32.totalorder %v401, 2
        %v657 = vsel %vm656, 1, 0
        %658 = vset.pattern.permute.xlu0 0
        %659 = vperm.xlu0 %658, %v657
        %v660 = vpop.permute.xlu0 %659
        %vm661 = vcmp.eq.s32.totalorder %v660, 1
        %v662 = vsel %vm661, %v655, 0.0
        %664 = vrot.lane.b32.xlu0 %v662, 112
        %v665 = vpop.permute.xlu0 %664
        %667 = vst.msk [vmem:[%s299 + $0x10] sm:$0xff] %vm413, %v665
        %v668 = vsel %vm661, %v655, %v581
        %v669 = vld [vmem:[#allocation2 + $0x18] sm:$0xff]
        %v670 = vpack.c.bf16 %v668, %v668
        %672 = vrot.lane.b32.xlu0 %v670, 112
        %v673 = vpop.permute.xlu0 %672
        %v675 = vsel %vm413, %v673, 0
        %677 = vmatprep.subr.bf16.mxu0 0
        %678 = vmatpush1.bf16.msra.mxu0 %v399
        %679 = vmatprep.subr.bf16.mxu0 0
        %680 = vmatpush1.bf16.msra.mxu0 0
        %681 = vmatprep.subr.bf16.mxu0 0
        %682 = vmatpush1.bf16.msra.mxu0 0
        %683 = vmatprep.subr.bf16.mxu0 0
        %684 = vmatpush1.bf16.msra.mxu0 0
        %685 = vmatprep.subr.bf16.mxu0 0
        %686 = vmatpush1.bf16.msra.mxu0 0
        %687 = vmatprep.subr.bf16.mxu0 0
        %688 = vmatpush1.bf16.msra.mxu0 0
        %689 = vmatprep.subr.bf16.mxu0 0
        %690 = vmatpush1.bf16.msra.mxu0 0
        %691 = vmatprep.subr.bf16.mxu0 0
        %692 = vmatpush1.bf16.msra.mxu0 0
        %693 = vmatprep.subr.bf16.mxu0 0
        %694 = vmatpush1.bf16.msra.mxu0 0
        %695 = vmatprep.subr.bf16.mxu0 0
        %696 = vmatpush1.bf16.msra.mxu0 0
        %697 = vmatprep.subr.bf16.mxu0 0
        %698 = vmatpush1.bf16.msra.mxu0 0
        %699 = vmatprep.subr.bf16.mxu0 0
        %700 = vmatpush1.bf16.msra.mxu0 0
        %701 = vmatprep.subr.bf16.mxu0 0
        %702 = vmatpush1.bf16.msra.mxu0 0
        %703 = vmatprep.subr.bf16.mxu0 0
        %704 = vmatpush1.bf16.msra.mxu0 0
        %705 = vmatprep.subr.bf16.mxu0 0
        %706 = vmatpush1.bf16.msra.mxu0 0
        %707 = vmatprep.subr.bf16.mxu0 0
        %708 = vmatpush1.bf16.msra.mxu0 0
        %709 = vmatprep.mubr.bf16.mxu0 0
        %710 = vmatmul.mubr.bf16.gmra.mrb[0].mxu0 %v675
        %v711 = vpop.f32.mrb[0].mxu0
        %v712 = vadd.f32 %v411, %v711
        %v713 = vpop.f32.mrb[0].mxu0
        %v714 = vpop.f32.mrb[0].mxu0
        %v715 = vpop.f32.mrb[0].mxu0
        %716 = vdwg.mxu0
        %v717 = vadd.f32 %v669, %v712
        %v718 = vxor.u32 %v717, 2147483648
        %v719 = vmul.f32 %v718, 1.442695
        %v720 = vpow.pop %v719
        %v721 = vadd.f32 %v720, 1.0
        %v722 = vrcp.pop %v721
        %v723 = vmul.f32 1.0, %v722
        %725 = vrot.lane.b32.xlu0 %v712, 96
        %v726 = vpop.permute.xlu0 %725
        %v728 = vmul.f32 %v723, %v726
        %730 = vrot.lane.b32.xlu0 %v728, 32
        %v731 = vpop.permute.xlu0 %730
        %v733 = vadd.f32 %v669, %v731
        %v734 = vtanh.pop %v733
        %v735 = vsub.f32 1.0, %v723
        %737 = vrot.lane.b32.xlu0 %v734, 112
        %v738 = vpop.permute.xlu0 %737
        %v740 = vmul.f32 %v735, %v738
        %v741 = vmul.f32 %v723, %v668
        %v742 = vadd.f32 %v740, %v741
        %vm743 = vcmp.gt.s32.totalorder %v401, 3
        %v744 = vsel %vm743, 1, 0
        %745 = vset.pattern.permute.xlu0 0
        %746 = vperm.xlu0 %745, %v744
        %v747 = vpop.permute.xlu0 %746
        %vm748 = vcmp.eq.s32.totalorder %v747, 1
        %v749 = vsel %vm748, %v742, 0.0
        %751 = vrot.lane.b32.xlu0 %v749, 112
        %v752 = vpop.permute.xlu0 %751
        %754 = vst.msk [vmem:[%s299 + $0x18] sm:$0xff] %vm413, %v752
        %v755 = vsel %vm748, %v742, %v668
        %v756 = vld [vmem:[#allocation2 + $0x20] sm:$0xff]
        %v757 = vpack.c.bf16 %v755, %v755
        %759 = vrot.lane.b32.xlu0 %v757, 112
        %v760 = vpop.permute.xlu0 %759
        %v762 = vsel %vm413, %v760, 0
        %764 = vmatprep.subr.bf16.mxu0 0
        %765 = vmatpush1.bf16.msra.mxu0 %v399
        %766 = vmatprep.subr.bf16.mxu0 0
        %767 = vmatpush1.bf16.msra.mxu0 0
        %768 = vmatprep.subr.bf16.mxu0 0
        %769 = vmatpush1.bf16.msra.mxu0 0
        %770 = vmatprep.subr.bf16.mxu0 0
        %771 = vmatpush1.bf16.msra.mxu0 0
        %772 = vmatprep.subr.bf16.mxu0 0
        %773 = vmatpush1.bf16.msra.mxu0 0
        %774 = vmatprep.subr.bf16.mxu0 0
        %775 = vmatpush1.bf16.msra.mxu0 0
        %776 = vmatprep.subr.bf16.mxu0 0
        %777 = vmatpush1.bf16.msra.mxu0 0
        %778 = vmatprep.subr.bf16.mxu0 0
        %779 = vmatpush1.bf16.msra.mxu0 0
        %780 = vmatprep.subr.bf16.mxu0 0
        %781 = vmatpush1.bf16.msra.mxu0 0
        %782 = vmatprep.subr.bf16.mxu0 0
        %783 = vmatpush1.bf16.msra.mxu0 0
        %784 = vmatprep.subr.bf16.mxu0 0
        %785 = vmatpush1.bf16.msra.mxu0 0
        %786 = vmatprep.subr.bf16.mxu0 0
        %787 = vmatpush1.bf16.msra.mxu0 0
        %788 = vmatprep.subr.bf16.mxu0 0
        %789 = vmatpush1.bf16.msra.mxu0 0
        %790 = vmatprep.subr.bf16.mxu0 0
        %791 = vmatpush1.bf16.msra.mxu0 0
        %792 = vmatprep.subr.bf16.mxu0 0
        %793 = vmatpush1.bf16.msra.mxu0 0
        %794 = vmatprep.subr.bf16.mxu0 0
        %795 = vmatpush1.bf16.msra.mxu0 0
        %796 = vmatprep.mubr.bf16.mxu0 0
        %797 = vmatmul.mubr.bf16.gmra.mrb[0].mxu0 %v762
        %v798 = vpop.f32.mrb[0].mxu0
        %v799 = vadd.f32 %v411, %v798
        %v800 = vpop.f32.mrb[0].mxu0
        %v801 = vpop.f32.mrb[0].mxu0
        %v802 = vpop.f32.mrb[0].mxu0
        %803 = vdwg.mxu0
        %v804 = vadd.f32 %v756, %v799
        %v805 = vxor.u32 %v804, 2147483648
        %v806 = vmul.f32 %v805, 1.442695
        %v807 = vpow.pop %v806
        %v808 = vadd.f32 %v807, 1.0
        %v809 = vrcp.pop %v808
        %v810 = vmul.f32 1.0, %v809
        %812 = vrot.lane.b32.xlu0 %v799, 96
        %v813 = vpop.permute.xlu0 %812
        %v815 = vmul.f32 %v810, %v813
        %817 = vrot.lane.b32.xlu0 %v815, 32
        %v818 = vpop.permute.xlu0 %817
        %v820 = vadd.f32 %v756, %v818
        %v821 = vtanh.pop %v820
        %v822 = vsub.f32 1.0, %v810
        %824 = vrot.lane.b32.xlu0 %v821, 112
        %v825 = vpop.permute.xlu0 %824
        %v827 = vmul.f32 %v822, %v825
        %v828 = vmul.f32 %v810, %v755
        %v829 = vadd.f32 %v827, %v828
        %vm830 = vcmp.gt.s32.totalorder %v401, 4
        %v831 = vsel %vm830, 1, 0
        %832 = vset.pattern.permute.xlu0 0
        %833 = vperm.xlu0 %832, %v831
        %v834 = vpop.permute.xlu0 %833
        %vm835 = vcmp.eq.s32.totalorder %v834, 1
        %v836 = vsel %vm835, %v829, 0.0
        %838 = vrot.lane.b32.xlu0 %v836, 112
        %v839 = vpop.permute.xlu0 %838
        %841 = vst.msk [vmem:[%s299 + $0x20] sm:$0xff] %vm413, %v839
        %v842 = vsel %vm835, %v829, %v755
        %v843 = vld [vmem:[#allocation2 + $0x28] sm:$0xff]
        %v844 = vpack.c.bf16 %v842, %v842
        %846 = vrot.lane.b32.xlu0 %v844, 112
        %v847 = vpop.permute.xlu0 %846
        %v849 = vsel %vm413, %v847, 0
        %851 = vmatprep.subr.bf16.mxu0 0
        %852 = vmatpush1.bf16.msra.mxu0 %v399
        %853 = vmatprep.subr.bf16.mxu0 0
        %854 = vmatpush1.bf16.msra.mxu0 0
        %855 = vmatprep.subr.bf16.mxu0 0
        %856 = vmatpush1.bf16.msra.mxu0 0
        %857 = vmatprep.subr.bf16.mxu0 0
        %858 = vmatpush1.bf16.msra.mxu0 0
        %859 = vmatprep.subr.bf16.mxu0 0
        %860 = vmatpush1.bf16.msra.mxu0 0
        %861 = vmatprep.subr.bf16.mxu0 0
        %862 = vmatpush1.bf16.msra.mxu0 0
        %863 = vmatprep.subr.bf16.mxu0 0
        %864 = vmatpush1.bf16.msra.mxu0 0
        %865 = vmatprep.subr.bf16.mxu0 0
        %866 = vmatpush1.bf16.msra.mxu0 0
        %867 = vmatprep.subr.bf16.mxu0 0
        %868 = vmatpush1.bf16.msra.mxu0 0
        %869 = vmatprep.subr.bf16.mxu0 0
        %870 = vmatpush1.bf16.msra.mxu0 0
        %871 = vmatprep.subr.bf16.mxu0 0
        %872 = vmatpush1.bf16.msra.mxu0 0
        %873 = vmatprep.subr.bf16.mxu0 0
        %874 = vmatpush1.bf16.msra.mxu0 0
        %875 = vmatprep.subr.bf16.mxu0 0
        %876 = vmatpush1.bf16.msra.mxu0 0
        %877 = vmatprep.subr.bf16.mxu0 0
        %878 = vmatpush1.bf16.msra.mxu0 0
        %879 = vmatprep.subr.bf16.mxu0 0
        %880 = vmatpush1.bf16.msra.mxu0 0
        %881 = vmatprep.subr.bf16.mxu0 0
        %882 = vmatpush1.bf16.msra.mxu0 0
        %883 = vmatprep.mubr.bf16.mxu0 0
        %884 = vmatmul.mubr.bf16.gmra.mrb[0].mxu0 %v849
        %v885 = vpop.f32.mrb[0].mxu0
        %v886 = vadd.f32 %v411, %v885
        %v887 = vpop.f32.mrb[0].mxu0
        %v888 = vpop.f32.mrb[0].mxu0
        %v889 = vpop.f32.mrb[0].mxu0
        %890 = vdwg.mxu0
        %v891 = vadd.f32 %v843, %v886
        %v892 = vxor.u32 %v891, 2147483648
        %v893 = vmul.f32 %v892, 1.442695
        %v894 = vpow.pop %v893
        %v895 = vadd.f32 %v894, 1.0
        %v896 = vrcp.pop %v895
        %v897 = vmul.f32 1.0, %v896
        %899 = vrot.lane.b32.xlu0 %v886, 96
        %v900 = vpop.permute.xlu0 %899
        %v902 = vmul.f32 %v897, %v900
        %904 = vrot.lane.b32.xlu0 %v902, 32
        %v905 = vpop.permute.xlu0 %904
        %v907 = vadd.f32 %v843, %v905
        %v908 = vtanh.pop %v907
        %v909 = vsub.f32 1.0, %v897
        %911 = vrot.lane.b32.xlu0 %v908, 112
        %v912 = vpop.permute.xlu0 %911
        %v914 = vmul.f32 %v909, %v912
        %v915 = vmul.f32 %v897, %v842
        %v916 = vadd.f32 %v914, %v915
        %vm917 = vcmp.gt.s32.totalorder %v401, 5
        %v918 = vsel %vm917, 1, 0
        %919 = vset.pattern.permute.xlu0 0
        %920 = vperm.xlu0 %919, %v918
        %v921 = vpop.permute.xlu0 %920
        %vm922 = vcmp.eq.s32.totalorder %v921, 1
        %v923 = vsel %vm922, %v916, 0.0
        %925 = vrot.lane.b32.xlu0 %v923, 112
        %v926 = vpop.permute.xlu0 %925
        %928 = vst.msk [vmem:[%s299 + $0x28] sm:$0xff] %vm413, %v926
      $region48: #{review_han_forward.4} parent=43 // pred_fallthru
        _
      %p929 = scmp.eq.s32.totalorder %s17, 1
      // Predicated region
      $region49: #{review_han_forward.4} parent=43 // pred_check
        %p930 = pneg %p929
      $region50: #{review_han_forward.4} parent=43 // pred_check_branch
        %932 = sbr.rel (%p930) target = $region52
      $region51: #{review_han_forward.4} parent=43 // pred_region
        %v933 = vld [vmem:[#allocation2 + $0x28] sm:$0xff]
        %v935 = vlaneseq
        %v936 = vshrl.u32 %v935, 7
        %v937 = vsub.s32 0, %v936
        %v938 = vrot.slane %v400, %v937
        %vm940 = vcmask 130048
        %v942 = vsel %vm940, 0, 0
        %944 = vmatprep.subr.bf16.mxu0 0
        %945 = vmatpush1.bf16.msra.mxu0 %v399
        %946 = vmatprep.subr.bf16.mxu0 0
        %947 = vmatpush1.bf16.msra.mxu0 0
        %948 = vmatprep.subr.bf16.mxu0 0
        %949 = vmatpush1.bf16.msra.mxu0 0
        %950 = vmatprep.subr.bf16.mxu0 0
        %951 = vmatpush1.bf16.msra.mxu0 0
        %952 = vmatprep.subr.bf16.mxu0 0
        %953 = vmatpush1.bf16.msra.mxu0 0
        %954 = vmatprep.subr.bf16.mxu0 0
        %955 = vmatpush1.bf16.msra.mxu0 0
        %956 = vmatprep.subr.bf16.mxu0 0
        %957 = vmatpush1.bf16.msra.mxu0 0
        %958 = vmatprep.subr.bf16.mxu0 0
        %959 = vmatpush1.bf16.msra.mxu0 0
        %960 = vmatprep.subr.bf16.mxu0 0
        %961 = vmatpush1.bf16.msra.mxu0 0
        %962 = vmatprep.subr.bf16.mxu0 0
        %963 = vmatpush1.bf16.msra.mxu0 0
        %964 = vmatprep.subr.bf16.mxu0 0
        %965 = vmatpush1.bf16.msra.mxu0 0
        %966 = vmatprep.subr.bf16.mxu0 0
        %967 = vmatpush1.bf16.msra.mxu0 0
        %968 = vmatprep.subr.bf16.mxu0 0
        %969 = vmatpush1.bf16.msra.mxu0 0
        %970 = vmatprep.subr.bf16.mxu0 0
        %971 = vmatpush1.bf16.msra.mxu0 0
        %972 = vmatprep.subr.bf16.mxu0 0
        %973 = vmatpush1.bf16.msra.mxu0 0
        %974 = vmatprep.subr.bf16.mxu0 0
        %975 = vmatpush1.bf16.msra.mxu0 0
        %976 = vmatprep.mubr.bf16.mxu0 0
        %977 = vmatmul.mubr.bf16.gmra.mrb[0].mxu0 %v942
        %v978 = vpop.f32.mrb[0].mxu0
        %v979 = vadd.f32 %v938, %v978
        %v980 = vpop.f32.mrb[0].mxu0
        %v981 = vpop.f32.mrb[0].mxu0
        %v982 = vpop.f32.mrb[0].mxu0
        %983 = vdwg.mxu0
        %v984 = vadd.f32 %v933, %v979
        %v985 = vxor.u32 %v984, 2147483648
        %v986 = vmul.f32 %v985, 1.442695
        %v987 = vpow.pop %v986
        %v988 = vadd.f32 %v987, 1.0
        %v989 = vrcp.pop %v988
        %v990 = vmul.f32 1.0, %v989
        %992 = vrot.lane.b32.xlu0 %v979, 96
        %v993 = vpop.permute.xlu0 %992
        %v995 = vmul.f32 %v990, %v993
        %997 = vrot.lane.b32.xlu0 %v995, 32
        %v998 = vpop.permute.xlu0 %997
        %v1000 = vadd.f32 %v933, %v998
        %v1001 = vtanh.pop %v1000
        %v1002 = vsub.f32 1.0, %v990
        %1004 = vrot.lane.b32.xlu0 %v1001, 112
        %v1005 = vpop.permute.xlu0 %1004
        %v1007 = vmul.f32 %v1002, %v1005
        %v1008 = vmul.f32 %v990, 0.0
        %v1009 = vadd.f32 %v1007, %v1008
        %vm1010 = vcmp.gt.s32.totalorder %v401, 5
        %v1011 = vsel %vm1010, 1, 0
        %1012 = vset.pattern.permute.xlu0 0
        %1013 = vperm.xlu0 %1012, %v1011
        %v1014 = vpop.permute.xlu0 %1013
        %vm1015 = vcmp.eq.s32.totalorder %v1014, 1
        %v1016 = vsel %vm1015, %v1009, 0.0
        %1018 = vrot.lane.b32.xlu0 %v1016, 112
        %v1019 = vpop.permute.xlu0 %1018
        %1021 = vst.msk [vmem:[%s299 + $0x28] sm:$0xff] %vm940, %v1019
        %v1022 = vld [vmem:[#allocation2 + $0x20] sm:$0xff]
        %v1023 = vpack.c.bf16 %v1016, %v1016
        %1025 = vrot.lane.b32.xlu0 %v1023, 112
        %v1026 = vpop.permute.xlu0 %1025
        %v1028 = vsel %vm940, %v1026, 0
        %1030 = vmatprep.subr.bf16.mxu0 0
        %1031 = vmatpush1.bf16.msra.mxu0 %v399
        %1032 = vmatprep.subr.bf16.mxu0 0
        %1033 = vmatpush1.bf16.msra.mxu0 0
        %1034 = vmatprep.subr.bf16.mxu0 0
        %1035 = vmatpush1.bf16.msra.mxu0 0
        %1036 = vmatprep.subr.bf16.mxu0 0
        %1037 = vmatpush1.bf16.msra.mxu0 0
        %1038 = vmatprep.subr.bf16.mxu0 0
        %1039 = vmatpush1.bf16.msra.mxu0 0
        %1040 = vmatprep.subr.bf16.mxu0 0
        %1041 = vmatpush1.bf16.msra.mxu0 0
        %1042 = vmatprep.subr.bf16.mxu0 0
        %1043 = vmatpush1.bf16.msra.mxu0 0
        %1044 = vmatprep.subr.bf16.mxu0 0
        %1045 = vmatpush1.bf16.msra.mxu0 0
        %1046 = vmatprep.subr.bf16.mxu0 0
        %1047 = vmatpush1.bf16.msra.mxu0 0
        %1048 = vmatprep.subr.bf16.mxu0 0
        %1049 = vmatpush1.bf16.msra.mxu0 0
        %1050 = vmatprep.subr.bf16.mxu0 0
        %1051 = vmatpush1.bf16.msra.mxu0 0
        %1052 = vmatprep.subr.bf16.mxu0 0
        %1053 = vmatpush1.bf16.msra.mxu0 0
        %1054 = vmatprep.subr.bf16.mxu0 0
        %1055 = vmatpush1.bf16.msra.mxu0 0
        %1056 = vmatprep.subr.bf16.mxu0 0
        %1057 = vmatpush1.bf16.msra.mxu0 0
        %1058 = vmatprep.subr.bf16.mxu0 0
        %1059 = vmatpush1.bf16.msra.mxu0 0
        %1060 = vmatprep.subr.bf16.mxu0 0
        %1061 = vmatpush1.bf16.msra.mxu0 0
        %1062 = vmatprep.mubr.bf16.mxu0 0
        %1063 = vmatmul.mubr.bf16.gmra.mrb[0].mxu0 %v1028
        %v1064 = vpop.f32.mrb[0].mxu0
        %v1065 = vadd.f32 %v938, %v1064
        %v1066 = vpop.f32.mrb[0].mxu0
        %v1067 = vpop.f32.mrb[0].mxu0
        %v1068 = vpop.f32.mrb[0].mxu0
        %1069 = vdwg.mxu0
        %v1070 = vadd.f32 %v1022, %v1065
        %v1071 = vxor.u32 %v1070, 2147483648
        %v1072 = vmul.f32 %v1071, 1.442695
        %v1073 = vpow.pop %v1072
        %v1074 = vadd.f32 %v1073, 1.0
        %v1075 = vrcp.pop %v1074
        %v1076 = vmul.f32 1.0, %v1075
        %1078 = vrot.lane.b32.xlu0 %v1065, 96
        %v1079 = vpop.permute.xlu0 %1078
        %v1081 = vmul.f32 %v1076, %v1079
        %1083 = vrot.lane.b32.xlu0 %v1081, 32
        %v1084 = vpop.permute.xlu0 %1083
        %v1086 = vadd.f32 %v1022, %v1084
        %v1087 = vtanh.pop %v1086
        %v1088 = vsub.f32 1.0, %v1076
        %1090 = vrot.lane.b32.xlu0 %v1087, 112
        %v1091 = vpop.permute.xlu0 %1090
        %v1093 = vmul.f32 %v1088, %v1091
        %v1094 = vmul.f32 %v1076, %v1016
        %v1095 = vadd.f32 %v1093, %v1094
        %vm1096 = vcmp.gt.s32.totalorder %v401, 4
        %v1097 = vsel %vm1096, 1, 0
        %1098 = vset.pattern.permute.xlu0 0
        %1099 = vperm.xlu0 %1098, %v1097
        %v1100 = vpop.permute.xlu0 %1099
        %vm1101 = vcmp.eq.s32.totalorder %v1100, 1
        %v1102 = vsel %vm1101, %v1095, 0.0
        %1104 = vrot.lane.b32.xlu0 %v1102, 112
        %v1105 = vpop.permute.xlu0 %1104
        %1107 = vst.msk [vmem:[%s299 + $0x20] sm:$0xff] %vm940, %v1105
        %v1108 = vsel %vm1101, %v1095, %v1016
        %v1109 = vld [vmem:[#allocation2 + $0x18] sm:$0xff]
        %v1110 = vpack.c.bf16 %v1108, %v1108
        %1112 = vrot.lane.b32.xlu0 %v1110, 112
        %v1113 = vpop.permute.xlu0 %1112
        %v1115 = vsel %vm940, %v1113, 0
        %1117 = vmatprep.subr.bf16.mxu0 0
        %1118 = vmatpush1.bf16.msra.mxu0 %v399
        %1119 = vmatprep.subr.bf16.mxu0 0
        %1120 = vmatpush1.bf16.msra.mxu0 0
        %1121 = vmatprep.subr.bf16.mxu0 0
        %1122 = vmatpush1.bf16.msra.mxu0 0
        %1123 = vmatprep.subr.bf16.mxu0 0
        %1124 = vmatpush1.bf16.msra.mxu0 0
        %1125 = vmatprep.subr.bf16.mxu0 0
        %1126 = vmatpush1.bf16.msra.mxu0 0
        %1127 = vmatprep.subr.bf16.mxu0 0
        %1128 = vmatpush1.bf16.msra.mxu0 0
        %1129 = vmatprep.subr.bf16.mxu0 0
        %1130 = vmatpush1.bf16.msra.mxu0 0
        %1131 = vmatprep.subr.bf16.mxu0 0
        %1132 = vmatpush1.bf16.msra.mxu0 0
        %1133 = vmatprep.subr.bf16.mxu0 0
        %1134 = vmatpush1.bf16.msra.mxu0 0
        %1135 = vmatprep.subr.bf16.mxu0 0
        %1136 = vmatpush1.bf16.msra.mxu0 0
        %1137 = vmatprep.subr.bf16.mxu0 0
        %1138 = vmatpush1.bf16.msra.mxu0 0
        %1139 = vmatprep.subr.bf16.mxu0 0
        %1140 = vmatpush1.bf16.msra.mxu0 0
        %1141 = vmatprep.subr.bf16.mxu0 0
        %1142 = vmatpush1.bf16.msra.mxu0 0
        %1143 = vmatprep.subr.bf16.mxu0 0
        %1144 = vmatpush1.bf16.msra.mxu0 0
        %1145 = vmatprep.subr.bf16.mxu0 0
        %1146 = vmatpush1.bf16.msra.mxu0 0
        %1147 = vmatprep.subr.bf16.mxu0 0
        %1148 = vmatpush1.bf16.msra.mxu0 0
        %1149 = vmatprep.mubr.bf16.mxu0 0
        %1150 = vmatmul.mubr.bf16.gmra.mrb[0].mxu0 %v1115
        %v1151 = vpop.f32.mrb[0].mxu0
        %v1152 = vadd.f32 %v938, %v1151
        %v1153 = vpop.f32.mrb[0].mxu0
        %v1154 = vpop.f32.mrb[0].mxu0
        %v1155 = vpop.f32.mrb[0].mxu0
        %1156 = vdwg.mxu0
        %v1157 = vadd.f32 %v1109, %v1152
        %v1158 = vxor.u32 %v1157, 2147483648
        %v1159 = vmul.f32 %v1158, 1.442695
        %v1160 = vpow.pop %v1159
        %v1161 = vadd.f32 %v1160, 1.0
        %v1162 = vrcp.pop %v1161
        %v1163 = vmul.f32 1.0, %v1162
        %1165 = vrot.lane.b32.xlu0 %v1152, 96
        %v1166 = vpop.permute.xlu0 %1165
        %v1168 = vmul.f32 %v1163, %v1166
        %1170 = vrot.lane.b32.xlu0 %v1168, 32
        %v1171 = vpop.permute.xlu0 %1170
        %v1173 = vadd.f32 %v1109, %v1171
        %v1174 = vtanh.pop %v1173
        %v1175 = vsub.f32 1.0, %v1163
        %1177 = vrot.lane.b32.xlu0 %v1174, 112
        %v1178 = vpop.permute.xlu0 %1177
        %v1180 = vmul.f32 %v1175, %v1178
        %v1181 = vmul.f32 %v1163, %v1108
        %v1182 = vadd.f32 %v1180, %v1181
        %vm1183 = vcmp.gt.s32.totalorder %v401, 3
        %v1184 = vsel %vm1183, 1, 0
        %1185 = vset.pattern.permute.xlu0 0
        %1186 = vperm.xlu0 %1185, %v1184
        %v1187 = vpop.permute.xlu0 %1186
        %vm1188 = vcmp.eq.s32.totalorder %v1187, 1
        %v1189 = vsel %vm1188, %v1182, 0.0
        %1191 = vrot.lane.b32.xlu0 %v1189, 112
        %v1192 = vpop.permute.xlu0 %1191
        %1194 = vst.msk [vmem:[%s299 + $0x18] sm:$0xff] %vm940, %v1192
        %v1195 = vsel %vm1188, %v1182, %v1108
        %v1196 = vld [vmem:[#allocation2 + $0x10] sm:$0xff]
        %v1197 = vpack.c.bf16 %v1195, %v1195
        %1199 = vrot.lane.b32.xlu0 %v1197, 112
        %v1200 = vpop.permute.xlu0 %1199
        %v1202 = vsel %vm940, %v1200, 0
        %1204 = vmatprep.subr.bf16.mxu0 0
        %1205 = vmatpush1.bf16.msra.mxu0 %v399
        %1206 = vmatprep.subr.bf16.mxu0 0
        %1207 = vmatpush1.bf16.msra.mxu0 0
        %1208 = vmatprep.subr.bf16.mxu0 0
        %1209 = vmatpush1.bf16.msra.mxu0 0
        %1210 = vmatprep.subr.bf16.mxu0 0
        %1211 = vmatpush1.bf16.msra.mxu0 0
        %1212 = vmatprep.subr.bf16.mxu0 0
        %1213 = vmatpush1.bf16.msra.mxu0 0
        %1214 = vmatprep.subr.bf16.mxu0 0
        %1215 = vmatpush1.bf16.msra.mxu0 0
        %1216 = vmatprep.subr.bf16.mxu0 0
        %1217 = vmatpush1.bf16.msra.mxu0 0
        %1218 = vmatprep.subr.bf16.mxu0 0
        %1219 = vmatpush1.bf16.msra.mxu0 0
        %1220 = vmatprep.subr.bf16.mxu0 0
        %1221 = vmatpush1.bf16.msra.mxu0 0
        %1222 = vmatprep.subr.bf16.mxu0 0
        %1223 = vmatpush1.bf16.msra.mxu0 0
        %1224 = vmatprep.subr.bf16.mxu0 0
        %1225 = vmatpush1.bf16.msra.mxu0 0
        %1226 = vmatprep.subr.bf16.mxu0 0
        %1227 = vmatpush1.bf16.msra.mxu0 0
        %1228 = vmatprep.subr.bf16.mxu0 0
        %1229 = vmatpush1.bf16.msra.mxu0 0
        %1230 = vmatprep.subr.bf16.mxu0 0
        %1231 = vmatpush1.bf16.msra.mxu0 0
        %1232 = vmatprep.subr.bf16.mxu0 0
        %1233 = vmatpush1.bf16.msra.mxu0 0
        %1234 = vmatprep.subr.bf16.mxu0 0
        %1235 = vmatpush1.bf16.msra.mxu0 0
        %1236 = vmatprep.mubr.bf16.mxu0 0
        %1237 = vmatmul.mubr.bf16.gmra.mrb[0].mxu0 %v1202
        %v1238 = vpop.f32.mrb[0].mxu0
        %v1239 = vadd.f32 %v938, %v1238
        %v1240 = vpop.f32.mrb[0].mxu0
        %v1241 = vpop.f32.mrb[0].mxu0
        %v1242 = vpop.f32.mrb[0].mxu0
        %1243 = vdwg.mxu0
        %v1244 = vadd.f32 %v1196, %v1239
        %v1245 = vxor.u32 %v1244, 2147483648
        %v1246 = vmul.f32 %v1245, 1.442695
        %v1247 = vpow.pop %v1246
        %v1248 = vadd.f32 %v1247, 1.0
        %v1249 = vrcp.pop %v1248
        %v1250 = vmul.f32 1.0, %v1249
        %1252 = vrot.lane.b32.xlu0 %v1239, 96
        %v1253 = vpop.permute.xlu0 %1252
        %v1255 = vmul.f32 %v1250, %v1253
        %1257 = vrot.lane.b32.xlu0 %v1255, 32
        %v1258 = vpop.permute.xlu0 %1257
        %v1260 = vadd.f32 %v1196, %v1258
        %v1261 = vtanh.pop %v1260
        %v1262 = vsub.f32 1.0, %v1250
        %1264 = vrot.lane.b32.xlu0 %v1261, 112
        %v1265 = vpop.permute.xlu0 %1264
        %v1267 = vmul.f32 %v1262, %v1265
        %v1268 = vmul.f32 %v1250, %v1195
        %v1269 = vadd.f32 %v1267, %v1268
        %vm1270 = vcmp.gt.s32.totalorder %v401, 2
        %v1271 = vsel %vm1270, 1, 0
        %1272 = vset.pattern.permute.xlu0 0
        %1273 = vperm.xlu0 %1272, %v1271
        %v1274 = vpop.permute.xlu0 %1273
        %vm1275 = vcmp.eq.s32.totalorder %v1274, 1
        %v1276 = vsel %vm1275, %v1269, 0.0
        %1278 = vrot.lane.b32.xlu0 %v1276, 112
        %v1279 = vpop.permute.xlu0 %1278
        %1281 = vst.msk [vmem:[%s299 + $0x10] sm:$0xff] %vm940, %v1279
        %v1282 = vsel %vm1275, %v1269, %v1195
        %v1283 = vld [vmem:[#allocation2 + $0x8] sm:$0xff]
        %v1284 = vpack.c.bf16 %v1282, %v1282
        %1286 = vrot.lane.b32.xlu0 %v1284, 112
        %v1287 = vpop.permute.xlu0 %1286
        %v1289 = vsel %vm940, %v1287, 0
        %1291 = vmatprep.subr.bf16.mxu0 0
        %1292 = vmatpush1.bf16.msra.mxu0 %v399
        %1293 = vmatprep.subr.bf16.mxu0 0
        %1294 = vmatpush1.bf16.msra.mxu0 0
        %1295 = vmatprep.subr.bf16.mxu0 0
        %1296 = vmatpush1.bf16.msra.mxu0 0
        %1297 = vmatprep.subr.bf16.mxu0 0
        %1298 = vmatpush1.bf16.msra.mxu0 0
        %1299 = vmatprep.subr.bf16.mxu0 0
        %1300 = vmatpush1.bf16.msra.mxu0 0
        %1301 = vmatprep.subr.bf16.mxu0 0
        %1302 = vmatpush1.bf16.msra.mxu0 0
        %1303 = vmatprep.subr.bf16.mxu0 0
        %1304 = vmatpush1.bf16.msra.mxu0 0
        %1305 = vmatprep.subr.bf16.mxu0 0
        %1306 = vmatpush1.bf16.msra.mxu0 0
        %1307 = vmatprep.subr.bf16.mxu0 0
        %1308 = vmatpush1.bf16.msra.mxu0 0
        %1309 = vmatprep.subr.bf16.mxu0 0
        %1310 = vmatpush1.bf16.msra.mxu0 0
        %1311 = vmatprep.subr.bf16.mxu0 0
        %1312 = vmatpush1.bf16.msra.mxu0 0
        %1313 = vmatprep.subr.bf16.mxu0 0
        %1314 = vmatpush1.bf16.msra.mxu0 0
        %1315 = vmatprep.subr.bf16.mxu0 0
        %1316 = vmatpush1.bf16.msra.mxu0 0
        %1317 = vmatprep.subr.bf16.mxu0 0
        %1318 = vmatpush1.bf16.msra.mxu0 0
        %1319 = vmatprep.subr.bf16.mxu0 0
        %1320 = vmatpush1.bf16.msra.mxu0 0
        %1321 = vmatprep.subr.bf16.mxu0 0
        %1322 = vmatpush1.bf16.msra.mxu0 0
        %1323 = vmatprep.mubr.bf16.mxu0 0
        %1324 = vmatmul.mubr.bf16.gmra.mrb[0].mxu0 %v1289
        %v1325 = vpop.f32.mrb[0].mxu0
        %v1326 = vadd.f32 %v938, %v1325
        %v1327 = vpop.f32.mrb[0].mxu0
        %v1328 = vpop.f32.mrb[0].mxu0
        %v1329 = vpop.f32.mrb[0].mxu0
        %1330 = vdwg.mxu0
        %v1331 = vadd.f32 %v1283, %v1326
        %v1332 = vxor.u32 %v1331, 2147483648
        %v1333 = vmul.f32 %v1332, 1.442695
        %v1334 = vpow.pop %v1333
        %v1335 = vadd.f32 %v1334, 1.0
        %v1336 = vrcp.pop %v1335
        %v1337 = vmul.f32 1.0, %v1336
        %1339 = vrot.lane.b32.xlu0 %v1326, 96
        %v1340 = vpop.permute.xlu0 %1339
        %v1342 = vmul.f32 %v1337, %v1340
        %1344 = vrot.lane.b32.xlu0 %v1342, 32
        %v1345 = vpop.permute.xlu0 %1344
        %v1347 = vadd.f32 %v1283, %v1345
        %v1348 = vtanh.pop %v1347
        %v1349 = vsub.f32 1.0, %v1337
        %1351 = vrot.lane.b32.xlu0 %v1348, 112
        %v1352 = vpop.permute.xlu0 %1351
        %v1354 = vmul.f32 %v1349, %v1352
        %v1355 = vmul.f32 %v1337, %v1282
        %v1356 = vadd.f32 %v1354, %v1355
        %vm1357 = vcmp.gt.s32.totalorder %v401, 1
        %v1358 = vsel %vm1357, 1, 0
        %1359 = vset.pattern.permute.xlu0 0
        %1360 = vperm.xlu0 %1359, %v1358
        %v1361 = vpop.permute.xlu0 %1360
        %vm1362 = vcmp.eq.s32.totalorder %v1361, 1
        %v1363 = vsel %vm1362, %v1356, 0.0
        %1365 = vrot.lane.b32.xlu0 %v1363, 112
        %v1366 = vpop.permute.xlu0 %1365
        %1368 = vst.msk [vmem:[%s299 + $0x8] sm:$0xff] %vm940, %v1366
        %v1369 = vsel %vm1362, %v1356, %v1282
        %v1370 = vld [vmem:[#allocation2] sm:$0xff]
        %v1371 = vpack.c.bf16 %v1369, %v1369
        %1373 = vrot.lane.b32.xlu0 %v1371, 112
        %v1374 = vpop.permute.xlu0 %1373
        %v1376 = vsel %vm940, %v1374, 0
        %1378 = vmatprep.subr.bf16.mxu0 0
        %1379 = vmatpush1.bf16.msra.mxu0 %v399
        %1380 = vmatprep.subr.bf16.mxu0 0
        %1381 = vmatpush1.bf16.msra.mxu0 0
        %1382 = vmatprep.subr.bf16.mxu0 0
        %1383 = vmatpush1.bf16.msra.mxu0 0
        %1384 = vmatprep.subr.bf16.mxu0 0
        %1385 = vmatpush1.bf16.msra.mxu0 0
        %1386 = vmatprep.subr.bf16.mxu0 0
        %1387 = vmatpush1.bf16.msra.mxu0 0
        %1388 = vmatprep.subr.bf16.mxu0 0
        %1389 = vmatpush1.bf16.msra.mxu0 0
        %1390 = vmatprep.subr.bf16.mxu0 0
        %1391 = vmatpush1.bf16.msra.mxu0 0
        %1392 = vmatprep.subr.bf16.mxu0 0
        %1393 = vmatpush1.bf16.msra.mxu0 0
        %1394 = vmatprep.subr.bf16.mxu0 0
        %1395 = vmatpush1.bf16.msra.mxu0 0
        %1396 = vmatprep.subr.bf16.mxu0 0
        %1397 = vmatpush1.bf16.msra.mxu0 0
        %1398 = vmatprep.subr.bf16.mxu0 0
        %1399 = vmatpush1.bf16.msra.mxu0 0
        %1400 = vmatprep.subr.bf16.mxu0 0
        %1401 = vmatpush1.bf16.msra.mxu0 0
        %1402 = vmatprep.subr.bf16.mxu0 0
        %1403 = vmatpush1.bf16.msra.mxu0 0
        %1404 = vmatprep.subr.bf16.mxu0 0
        %1405 = vmatpush1.bf16.msra.mxu0 0
        %1406 = vmatprep.subr.bf16.mxu0 0
        %1407 = vmatpush1.bf16.msra.mxu0 0
        %1408 = vmatprep.subr.bf16.mxu0 0
        %1409 = vmatpush1.bf16.msra.mxu0 0
        %1410 = vmatprep.mubr.bf16.mxu0 0
        %1411 = vmatmul.mubr.bf16.gmra.mrb[0].mxu0 %v1376
        %v1412 = vpop.f32.mrb[0].mxu0
        %v1413 = vadd.f32 %v938, %v1412
        %v1414 = vpop.f32.mrb[0].mxu0
        %v1415 = vpop.f32.mrb[0].mxu0
        %v1416 = vpop.f32.mrb[0].mxu0
        %1417 = vdwg.mxu0
        %v1418 = vadd.f32 %v1370, %v1413
        %v1419 = vxor.u32 %v1418, 2147483648
        %v1420 = vmul.f32 %v1419, 1.442695
        %v1421 = vpow.pop %v1420
        %v1422 = vadd.f32 %v1421, 1.0
        %v1423 = vrcp.pop %v1422
        %v1424 = vmul.f32 1.0, %v1423
        %1426 = vrot.lane.b32.xlu0 %v1413, 96
        %v1427 = vpop.permute.xlu0 %1426
        %v1429 = vmul.f32 %v1424, %v1427
        %1431 = vrot.lane.b32.xlu0 %v1429, 32
        %v1432 = vpop.permute.xlu0 %1431
        %v1434 = vadd.f32 %v1370, %v1432
        %v1435 = vtanh.pop %v1434
        %v1436 = vsub.f32 1.0, %v1424
        %1438 = vrot.lane.b32.xlu0 %v1435, 112
        %v1439 = vpop.permute.xlu0 %1438
        %v1441 = vmul.f32 %v1436, %v1439
        %v1442 = vmul.f32 %v1424, %v1369
        %v1443 = vadd.f32 %v1441, %v1442
        %vm1444 = vcmp.gt.s32.totalorder %v401, 0
        %v1445 = vsel %vm1444, 1, 0
        %1446 = vset.pattern.permute.xlu0 0
        %1447 = vperm.xlu0 %1446, %v1445
        %v1448 = vpop.permute.xlu0 %1447
        %vm1449 = vcmp.eq.s32.totalorder %v1448, 1
        %v1450 = vsel %vm1449, %v1443, 0.0
        %1452 = vrot.lane.b32.xlu0 %v1450, 112
        %v1453 = vpop.permute.xlu0 %1452
        %1455 = vst.msk [vmem:[%s299] sm:$0xff] %vm940, %v1453
      $region52: #{review_han_forward.4} parent=43 // pred_fallthru
        _
      %p1456 = scmp.lt.s32.totalorder %s17, 1
      %s1457 = scalar_select %p1456, %s17, 1
      %s1458 = smul.addr %s1457, 6
      %s1459 = smul.addr %s1458, 8
      %s1460 = scalar_lea.vmem %s6, %s1459
      // Predicated region
      $region53: #{review_han_forward.4} parent=43 // pred_check
        %p1461 = pneg %p181
      $region54: #{review_han_forward.4} parent=43 // pred_check_branch
        %1463 = sbr.rel (%p1461) target = $region56
      $region55: #{review_han_forward.4} parent=43 // pred_region
        _
      $region56: #{review_han_forward.4} parent=43 // pred_fallthru
        _
    $region44: #{review_han_forward.4} parent=5 // pred_fallthru
      _
    %p1464 = scmp.le.s32.totalorder 2, %s12
    // Predicated region
    $region57: #{review_han_forward.4} parent=5 // pred_check
      %p1465 = pneg %p1464
    $region58: #{review_han_forward.4} parent=5 // pred_check_branch
      %1467 = sbr.rel (%p1465) target = $region60
    $region59: #{review_han_forward.4} parent=5 // pred_region
      %s1468 = ssub.s32 %s12, 2
      // Predicated region
      $region61: #{review_han_forward.4} parent=59 // pred_check
        %p1469 = pneg %p187
      $region62: #{review_han_forward.4} parent=59 // pred_check_branch
        %1471 = sbr.rel (%p1469) target = $region64
      $region63: #{review_han_forward.4} parent=59 // pred_region
        %p1472 = scmp.lt.s32.totalorder %s18, 1
        %s1473 = scalar_select %p1472, %s18, 1
        %s1474 = smul.addr %s1473, 6
        %s1475 = smul.addr %s1474, 8
        %s1476 = scalar_lea.vmem %s6, %s1475
      $region64: #{review_han_forward.4} parent=59 // pred_fallthru
        _
    $region60: #{review_han_forward.4} parent=5 // pred_fallthru
      _
  $region6: #{review_han_forward.4} parent=0 // loop_footer
    %s16 = sadd.s32 1, %s12
  $region7: #{review_han_forward.4} parent=0 // loop_footer_branch
    %11 = sbr.rel target = $region3
  $region8: #{review_han_forward.4} parent=0 // loop_exit
    _

// kernel: review_han_forward.5
$region0: #{review_han_forward.5}
  #allocation0 [shape = 'u32[]', space=smem, size = 0x4, offset = 0x4, fixed_abs, tag = 'smem constant byte address 0x4 - core index']
  #allocation1 [shape = 'u32[144,128]{1,0:T(1,128)}', space=vmem, size = 0x12000, scoped, tag = 'internal scratch']
  %s0 = inlined_call_operand.vmem [shape: f32[48,32], index: 0, kind: input, shape index: {}]
  %s1 = inlined_call_operand.vmem [shape: f32[48,1], index: 1, kind: input, shape index: {}]
  %s2 = inlined_call_operand.vmem [shape: f32[1,32], index: 2, kind: input, shape index: {}]
  %s3 = inlined_call_operand.vmem [shape: f32[1,32], index: 3, kind: input, shape index: {}]
  %s4 = inlined_call_operand.vmem [shape: f32[32,16], index: 4, kind: input, shape index: {}]
  %s5 = inlined_call_operand.vmem [shape: f32[1,16], index: 5, kind: input, shape index: {}]
  %s6 = inlined_call_operand.vmem [shape: f32[1,16], index: 6, kind: input, shape index: {}]
  %s7 = inlined_call_operand.hbm [shape: f32[8,6], index: 7, kind: output, shape index: {0}]
  %s8 = inlined_call_operand.vmem [shape: f32[8,32], index: 8, kind: output, shape index: {1}]
  %9 = xla_tuple %s7, %s8
  %s10 = sld [smem:[#allocation0]]
  $region46: #{review_han_forward.5} parent=0
    _
  %s12 = ssub.s32 1, %s10
  %s13 = scalar_select 0, %s12, %s10
  $region1: #{review_han_forward.5} parent=0
    #allocation2 [shape = 'u8[4096]{0}', space=vmem, size = 0x1000, scoped, tag = 'output window, operand 0, single buffered']
    #allocation3 [shape = 's32[1]{0}', space=sflag, size = 0x4, scoped, tag = 'scoped memory for review_han_forward.5']
    %14 = vsyncpa [#allocation3], 0
    // Predicated region
    $region2: #{review_han_forward.5} parent=1 // pred_check
      _
    $region3: #{review_han_forward.5} parent=1 // pred_check_branch
      %16 = sbr.rel (0) target = $region5
    $region4: #{review_han_forward.5} parent=1 // pred_region
      _
    $region5: #{review_han_forward.5} parent=1 // pred_fallthru
      _
    // Predicated region
    $region6: #{review_han_forward.5} parent=1 // pred_check
      _
    $region7: #{review_han_forward.5} parent=1 // pred_check_branch
      %18 = sbr.rel (0) target = $region9
    $region8: #{review_han_forward.5} parent=1 // pred_region
      _
    $region9: #{review_han_forward.5} parent=1 // pred_fallthru
      _
    // Predicated region
    $region10: #{review_han_forward.5} parent=1 // pred_check
      _
    $region11: #{review_han_forward.5} parent=1 // pred_check_branch
      %20 = sbr.rel (0) target = $region13
    $region12: #{review_han_forward.5} parent=1 // pred_region
      _
    $region13: #{review_han_forward.5} parent=1 // pred_fallthru
      _
    // Predicated region
    $region14: #{review_han_forward.5} parent=1 // pred_check
      _
    $region15: #{review_han_forward.5} parent=1 // pred_check_branch
      %22 = sbr.rel (0) target = $region17
    $region16: #{review_han_forward.5} parent=1 // pred_region
      _
    $region17: #{review_han_forward.5} parent=1 // pred_fallthru
      _
    // Predicated region
    $region18: #{review_han_forward.5} parent=1 // pred_check
      _
    $region19: #{review_han_forward.5} parent=1 // pred_check_branch
      %24 = sbr.rel (0) target = $region21
    $region20: #{review_han_forward.5} parent=1 // pred_region
      _
    $region21: #{review_han_forward.5} parent=1 // pred_fallthru
      _
    // Predicated region
    $region22: #{review_han_forward.5} parent=1 // pred_check
      _
    $region23: #{review_han_forward.5} parent=1 // pred_check_branch
      %26 = sbr.rel (0) target = $region25
    $region24: #{review_han_forward.5} parent=1 // pred_region
      _
    $region25: #{review_han_forward.5} parent=1 // pred_fallthru
      _
    // Predicated region
    $region26: #{review_han_forward.5} parent=1 // pred_check
      _
    $region27: #{review_han_forward.5} parent=1 // pred_check_branch
      %28 = sbr.rel (0) target = $region29
    $region28: #{review_han_forward.5} parent=1 // pred_region
      _
    $region29: #{review_han_forward.5} parent=1 // pred_fallthru
      _
    %v30 = vld [vmem:[%s0] sm:$0xff]
    %v31 = vld [vmem:[%s0 + $0x8] sm:$0xff]
    %v32 = vld [vmem:[%s0 + $0x10] sm:$0xff]
    %v33 = vld [vmem:[%s0 + $0x18] sm:$0xff]
    %v34 = vld [vmem:[%s0 + $0x20] sm:$0xff]
    %v35 = vld [vmem:[%s0 + $0x28] sm:$0xff]
    %v36 = vld [vmem:[%s1] sm:$0xff]
    %v37 = vld [vmem:[%s1 + $0x8] sm:$0xff]
    %v38 = vld [vmem:[%s1 + $0x10] sm:$0xff]
    %v39 = vld [vmem:[%s1 + $0x18] sm:$0xff]
    %v40 = vld [vmem:[%s1 + $0x20] sm:$0xff]
    %v41 = vld [vmem:[%s1 + $0x28] sm:$0xff]
    %vm42 = vcmask 261120
    %v43 = vsel %vm42, %v30, 0.0
    %44 = vadd.xlane.f32.xlu0 %v43
    %v45 = vpop.xlane.xlu0 %44
    %v46 = vsel %vm42, %v31, 0.0
    %47 = vadd.xlane.f32.xlu0 %v46
    %v48 = vpop.xlane.xlu0 %47
    %v49 = vsel %vm42, %v32, 0.0
    %50 = vadd.xlane.f32.xlu0 %v49
    %v51 = vpop.xlane.xlu0 %50
    %v52 = vsel %vm42, %v33, 0.0
    %53 = vadd.xlane.f32.xlu0 %v52
    %v54 = vpop.xlane.xlu0 %53
    %v55 = vsel %vm42, %v34, 0.0
    %56 = vadd.xlane.f32.xlu0 %v55
    %v57 = vpop.xlane.xlu0 %56
    %v58 = vsel %vm42, %v35, 0.0
    %59 = vadd.xlane.f32.xlu0 %v58
    %v60 = vpop.xlane.xlu0 %59
    %v61 = vrcp.pop 32.0
    %v62 = vmul.f32 %v45, %v61
    %v63 = vmul.f32 %v48, %v61
    %v64 = vmul.f32 %v51, %v61
    %v65 = vmul.f32 %v54, %v61
    %v66 = vmul.f32 %v57, %v61
    %v67 = vmul.f32 %v60, %v61
    %v68 = vsub.f32 %v30, %v62
    %v69 = vsub.f32 %v31, %v63
    %v70 = vsub.f32 %v32, %v64
    %v71 = vsub.f32 %v33, %v65
    %v72 = vsub.f32 %v34, %v66
    %v73 = vsub.f32 %v35, %v67
    %v74 = vmul.f32 %v68, %v68
    %v75 = vmul.f32 %v69, %v69
    %v76 = vmul.f32 %v70, %v70
    %v77 = vmul.f32 %v71, %v71
    %v78 = vmul.f32 %v72, %v72
    %v79 = vmul.f32 %v73, %v73
    %v80 = vsel %vm42, %v74, 0.0
    %81 = vadd.xlane.f32.xlu0 %v80
    %v82 = vpop.xlane.xlu0 %81
    %v83 = vsel %vm42, %v75, 0.0
    %84 = vadd.xlane.f32.xlu0 %v83
    %v85 = vpop.xlane.xlu0 %84
    %v86 = vsel %vm42, %v76, 0.0
    %87 = vadd.xlane.f32.xlu0 %v86
    %v88 = vpop.xlane.xlu0 %87
    %v89 = vsel %vm42, %v77, 0.0
    %90 = vadd.xlane.f32.xlu0 %v89
    %v91 = vpop.xlane.xlu0 %90
    %v92 = vsel %vm42, %v78, 0.0
    %93 = vadd.xlane.f32.xlu0 %v92
    %v94 = vpop.xlane.xlu0 %93
    %v95 = vsel %vm42, %v79, 0.0
    %96 = vadd.xlane.f32.xlu0 %v95
    %v97 = vpop.xlane.xlu0 %96
    %v98 = vmul.f32 %v82, %v61
    %v99 = vmul.f32 %v85, %v61
    %v100 = vmul.f32 %v88, %v61
    %v101 = vmul.f32 %v91, %v61
    %v102 = vmul.f32 %v94, %v61
    %v103 = vmul.f32 %v97, %v61
    %v104 = vadd.f32 %v98, 1e-05
    %v105 = vadd.f32 %v99, 1e-05
    %v106 = vadd.f32 %v100, 1e-05
    %v107 = vadd.f32 %v101, 1e-05
    %v108 = vadd.f32 %v102, 1e-05
    %v109 = vadd.f32 %v103, 1e-05
    %v110 = vrsqrt.pop %v104
    %v111 = vrsqrt.pop %v105
    %v112 = vrsqrt.pop %v106
    %v113 = vrsqrt.pop %v107
    %v114 = vrsqrt.pop %v108
    %v115 = vrsqrt.pop %v109
    %v116 = vmul.f32 %v68, %v110
    %v117 = vmul.f32 %v69, %v111
    %v118 = vmul.f32 %v70, %v112
    %v119 = vmul.f32 %v71, %v113
    %v120 = vmul.f32 %v72, %v114
    %v121 = vmul.f32 %v73, %v115
    %v122 = vld [vmem:[%s2] sm:$0x1]
    %v124 = vlaneseq
    %v125 = vshrl.u32 %v124, 7
    %v126 = vsub.s32 0, %v125
    %v127 = vrot.slane %v122, %v126
    %v129 = vmul.f32 %v116, %v127
    %v130 = vmul.f32 %v117, %v127
    %v131 = vmul.f32 %v118, %v127
    %v132 = vmul.f32 %v119, %v127
    %v133 = vmul.f32 %v120, %v127
    %v134 = vmul.f32 %v121, %v127
    %v135 = vld [vmem:[%s3] sm:$0x1]
    %v137 = vlaneseq
    %v138 = vshrl.u32 %v137, 7
    %v139 = vsub.s32 0, %v138
    %v140 = vrot.slane %v135, %v139
    %v142 = vadd.f32 %v129, %v140
    %v143 = vadd.f32 %v130, %v140
    %v144 = vadd.f32 %v131, %v140
    %v145 = vadd.f32 %v132, %v140
    %v146 = vadd.f32 %v133, %v140
    %v147 = vadd.f32 %v134, %v140
    %v148 = vpack.c.bf16 %v143, %v142
    %v149 = vpack.c.bf16 %v145, %v144
    %v150 = vpack.c.bf16 %v147, %v146
    %v151 = vld [vmem:[%s4] sm:$0xff]
    %v152 = vld [vmem:[%s4 + $0x8] sm:$0xff]
    %v153 = vld [vmem:[%s4 + $0x10] sm:$0xff]
    %v154 = vld [vmem:[%s4 + $0x18] sm:$0xff]
    %v155 = vpack.c.bf16 %v152, %v151
    %v156 = vpack.c.bf16 %v154, %v153
    %v157 = vld [vmem:[%s5] sm:$0x1]
    %v159 = vlaneseq
    %v160 = vshrl.u32 %v159, 7
    %v161 = vsub.s32 0, %v160
    %v162 = vrot.slane %v157, %v161
    %v165 = vsel %vm42, %v148, 0
    %v168 = vsel %vm42, %v149, 0
    %v171 = vsel %vm42, %v150, 0
    %173 = vmatprep.subr.bf16.mxu0 0
    %174 = vmatpush1.bf16.msra.mxu0 %v155
    %175 = vmatprep.subr.bf16.mxu0 0
    %176 = vmatpush1.bf16.msra.mxu0 %v156
    %177 = vmatprep.subr.bf16.mxu0 0
    %178 = vmatpush1.bf16.msra.mxu0 0
    %179 = vmatprep.subr.bf16.mxu0 0
    %180 = vmatpush1.bf16.msra.mxu0 0
    %181 = vmatprep.subr.bf16.mxu0 0
    %182 = vmatpush1.bf16.msra.mxu0 0
    %183 = vmatprep.subr.bf16.mxu0 0
    %184 = vmatpush1.bf16.msra.mxu0 0
    %185 = vmatprep.subr.bf16.mxu0 0
    %186 = vmatpush1.bf16.msra.mxu0 0
    %187 = vmatprep.subr.bf16.mxu0 0
    %188 = vmatpush1.bf16.msra.mxu0 0
    %189 = vmatprep.subr.bf16.mxu0 0
    %190 = vmatpush1.bf16.msra.mxu0 0
    %191 = vmatprep.subr.bf16.mxu0 0
    %192 = vmatpush1.bf16.msra.mxu0 0
    %193 = vmatprep.subr.bf16.mxu0 0
    %194 = vmatpush1.bf16.msra.mxu0 0
    %195 = vmatprep.subr.bf16.mxu0 0
    %196 = vmatpush1.bf16.msra.mxu0 0
    %197 = vmatprep.subr.bf16.mxu0 0
    %198 = vmatpush1.bf16.msra.mxu0 0
    %199 = vmatprep.subr.bf16.mxu0 0
    %200 = vmatpush1.bf16.msra.mxu0 0
    %201 = vmatprep.subr.bf16.mxu0 0
    %202 = vmatpush1.bf16.msra.mxu0 0
    %203 = vmatprep.subr.bf16.mxu0 0
    %204 = vmatpush1.bf16.msra.mxu0 0
    %205 = vmatprep.mubr.bf16.mxu0 0
    %206 = vmatmul.mubr.bf16.gmra.mrb[0].mxu0 %v165
    %v207 = vpop.f32.mrb[0].mxu0
    %v208 = vadd.f32 %v162, %v207
    %v209 = vpop.f32.mrb[0].mxu0
    %v210 = vpop.f32.mrb[0].mxu0
    %v211 = vadd.f32 %v162, %v210
    %v212 = vpop.f32.mrb[0].mxu0
    %213 = vmatprep.mubr.bf16.mxu0 0
    %214 = vmatmul.mubr.bf16.gmra.mrb[0].mxu0 %v168
    %v215 = vpop.f32.mrb[0].mxu0
    %v216 = vadd.f32 %v162, %v215
    %v217 = vpop.f32.mrb[0].mxu0
    %v218 = vpop.f32.mrb[0].mxu0
    %v219 = vadd.f32 %v162, %v218
    %v220 = vpop.f32.mrb[0].mxu0
    %221 = vmatprep.mubr.bf16.mxu0 0
    %222 = vmatmul.mubr.bf16.gmra.mrb[0].mxu0 %v171
    %v223 = vpop.f32.mrb[0].mxu0
    %v224 = vadd.f32 %v162, %v223
    %v225 = vpop.f32.mrb[0].mxu0
    %v226 = vpop.f32.mrb[0].mxu0
    %v227 = vadd.f32 %v162, %v226
    %v228 = vpop.f32.mrb[0].mxu0
    %229 = vdwg.mxu0
    %v230 = vtanh.pop %v208
    %v231 = vtanh.pop %v211
    %v232 = vtanh.pop %v216
    %v233 = vtanh.pop %v219
    %v234 = vtanh.pop %v224
    %v235 = vtanh.pop %v227
    %v236 = vld [vmem:[%s6] sm:$0x1]
    %v238 = vlaneseq
    %v239 = vshrl.u32 %v238, 7
    %v240 = vsub.s32 0, %v239
    %v241 = vrot.slane %v236, %v240
    %v243 = vmul.f32 %v230, %v241
    %v244 = vmul.f32 %v231, %v241
    %v245 = vmul.f32 %v232, %v241
    %v246 = vmul.f32 %v233, %v241
    %v247 = vmul.f32 %v234, %v241
    %v248 = vmul.f32 %v235, %v241
    %vm249 = vcmask 130048
    %v250 = vsel %vm249, %v243, 0.0
    %251 = vadd.xlane.f32.xlu0 %v250
    %v252 = vpop.xlane.xlu0 %251
    %v253 = vsel %vm249, %v244, 0.0
    %254 = vadd.xlane.f32.xlu0 %v253
    %v255 = vpop.xlane.xlu0 %254
    %v256 = vsel %vm249, %v245, 0.0
    %257 = vadd.xlane.f32.xlu0 %v256
    %v258 = vpop.xlane.xlu0 %257
    %v259 = vsel %vm249, %v246, 0.0
    %260 = vadd.xlane.f32.xlu0 %v259
    %v261 = vpop.xlane.xlu0 %260
    %v262 = vsel %vm249, %v247, 0.0
    %263 = vadd.xlane.f32.xlu0 %v262
    %v264 = vpop.xlane.xlu0 %263
    %v265 = vsel %vm249, %v248, 0.0
    %266 = vadd.xlane.f32.xlu0 %v265
    %v267 = vpop.xlane.xlu0 %266
    %vm268 = vcmp.gt.f32.partialorder %v36, 0.0
    %vm269 = vcmp.gt.f32.partialorder %v37, 0.0
    %vm270 = vcmp.gt.f32.partialorder %v38, 0.0
    %vm271 = vcmp.gt.f32.partialorder %v39, 0.0
    %vm272 = vcmp.gt.f32.partialorder %v40, 0.0
    %vm273 = vcmp.gt.f32.partialorder %v41, 0.0
    %v274 = vsel %vm268, %v252, -3.4e+38
    %v275 = vsel %vm269, %v255, -3.4e+38
    %v276 = vsel %vm270, %v258, -3.4e+38
    %v277 = vsel %vm271, %v261, -3.4e+38
    %v278 = vsel %vm272, %v264, -3.4e+38
    %v279 = vsel %vm273, %v267, -3.4e+38
    %vm280 = vcmask 7168
    %v281 = vsel %vm280, %v274, -inf
    %v282 = vsel %vm280, %v275, -inf
    %v283 = vsel %vm280, %v276, -inf
    %v284 = vsel %vm280, %v277, -inf
    %v285 = vsel %vm280, %v278, -inf
    %v286 = vmax.f32 %v281, %v285
    %v287 = vsel %vm280, %v279, -inf
    %v288 = vmax.f32 %v282, %v287
    %v289 = vmax.f32 %v286, %v288
    %v290 = vmax.f32 %v283, %v284
    %v291 = vmax.f32 %v289, %v290
    %v292 = vrot.slane %v291, 4
    %v293 = vmax.f32 %v291, %v292
    %v294 = vrot.slane %v293, 2
    %v295 = vmax.f32 %v293, %v294
    %v296 = vrot.slane %v295, 1
    %v297 = vmax.f32 %v295, %v296
    %v298 = vsel %vm268, %v252, %v297
    %v299 = vsel %vm269, %v255, %v297
    %v300 = vsel %vm270, %v258, %v297
    %v301 = vsel %vm271, %v261, %v297
    %v302 = vsel %vm272, %v264, %v297
    %v303 = vsel %vm273, %v267, %v297
    %v304 = vsub.f32 %v298, %v297
    %v305 = vsub.f32 %v299, %v297
    %v306 = vsub.f32 %v300, %v297
    %v307 = vsub.f32 %v301, %v297
    %v308 = vsub.f32 %v302, %v297
    %v309 = vsub.f32 %v303, %v297
    %v310 = vmul.f32 %v304, 1.442695
    %v311 = vpow.pop %v310
    %v312 = vmul.f32 %v305, 1.442695
    %v313 = vpow.pop %v312
    %v314 = vmul.f32 %v306, 1.442695
    %v315 = vpow.pop %v314
    %v316 = vmul.f32 %v307, 1.442695
    %v317 = vpow.pop %v316
    %v318 = vmul.f32 %v308, 1.442695
    %v319 = vpow.pop %v318
    %v320 = vmul.f32 %v309, 1.442695
    %v321 = vpow.pop %v320
    %v322 = vmul.f32 %v311, %v36
    %v323 = vmul.f32 %v313, %v37
    %v324 = vmul.f32 %v315, %v38
    %v325 = vmul.f32 %v317, %v39
    %v326 = vmul.f32 %v319, %v40
    %v327 = vmul.f32 %v321, %v41
    %v328 = vlaneseq
    %v329 = vand.u32 %v328, 127
    %v330 = vlaneseq
    %v331 = vshrl.u32 %v330, 7
    %v332 = vmul.u32 %v331, 6
    %vm333 = vcmp.ge.s32.totalorder %v329, %v332
    %v334 = vadd.s32 %v332, 6
    %vm335 = vcmp.lt.s32.totalorder %v329, %v334
    %vm336 = vmand %vm333, %vm335
    %v337 = vsel %vm336, 1, 0
    %v338 = vcvt.s32.f32 %v337
    %v339 = vadd.s32 %v331, 8
    %v340 = vadd.s32 %v331, 16
    %v341 = vadd.s32 %v331, 24
    %v342 = vadd.s32 %v331, 32
    %v343 = vadd.s32 %v331, 40
    %v344 = vmul.u32 %v329, 6
    %vm345 = vcmp.ge.s32.totalorder %v331, %v344
    %vm346 = vcmp.ge.s32.totalorder %v339, %v344
    %vm347 = vcmp.ge.s32.totalorder %v340, %v344
    %vm348 = vcmp.ge.s32.totalorder %v341, %v344
    %vm349 = vcmp.ge.s32.totalorder %v342, %v344
    %vm350 = vcmp.ge.s32.totalorder %v343, %v344
    %v351 = vsel %vm345, 1, 0
    %v352 = vsel %vm346, 1, 0
    %v353 = vsel %vm347, 1, 0
    %v354 = vsel %vm348, 1, 0
    %v355 = vsel %vm349, 1, 0
    %v356 = vsel %vm350, 1, 0
    %v357 = vcvt.s32.f32 %v351
    %v358 = vcvt.s32.f32 %v352
    %v359 = vcvt.s32.f32 %v353
    %v360 = vcvt.s32.f32 %v354
    %v361 = vcvt.s32.f32 %v355
    %v362 = vcvt.s32.f32 %v356
    %vm363 = vcmask 64512
    %v364 = vsel %vm363, %v357, 0.0
    %365 = vadd.xlane.f32.xlu0 %v364
    %v366 = vpop.xlane.xlu0 %365
    %v367 = vsel %vm363, %v358, 0.0
    %368 = vadd.xlane.f32.xlu0 %v367
    %v369 = vpop.xlane.xlu0 %368
    %v370 = vsel %vm363, %v359, 0.0
    %371 = vadd.xlane.f32.xlu0 %v370
    %v372 = vpop.xlane.xlu0 %371
    %v373 = vsel %vm363, %v360, 0.0
    %374 = vadd.xlane.f32.xlu0 %v373
    %v375 = vpop.xlane.xlu0 %374
    %v376 = vsel %vm363, %v361, 0.0
    %377 = vadd.xlane.f32.xlu0 %v376
    %v378 = vpop.xlane.xlu0 %377
    %v379 = vsel %vm363, %v362, 0.0
    %380 = vadd.xlane.f32.xlu0 %v379
    %v381 = vpop.xlane.xlu0 %380
    %v382 = vsub.f32 %v366, 1.0
    %v383 = vsub.f32 %v369, 1.0
    %v384 = vsub.f32 %v372, 1.0
    %v385 = vsub.f32 %v375, 1.0
    %v386 = vsub.f32 %v378, 1.0
    %v387 = vsub.f32 %v381, 1.0
    %v388 = vcvt.s32.f32 %v331
    %v389 = vcvt.s32.f32 %v339
    %v390 = vcvt.s32.f32 %v340
    %v391 = vcvt.s32.f32 %v341
    %v392 = vcvt.s32.f32 %v342
    %v393 = vcvt.s32.f32 %v343
    %v394 = vcvt.s32.f32 %v329
    %v395 = vmul.f32 %v382, 6.0
    %v396 = vmul.f32 %v383, 6.0
    %v397 = vmul.f32 %v384, 6.0
    %v398 = vmul.f32 %v385, 6.0
    %v399 = vmul.f32 %v386, 6.0
    %v400 = vmul.f32 %v387, 6.0
    %v401 = vsub.f32 %v388, %v395
    %v402 = vsub.f32 %v389, %v396
    %v403 = vsub.f32 %v390, %v397
    %v404 = vsub.f32 %v391, %v398
    %v405 = vsub.f32 %v392, %v399
    %v406 = vsub.f32 %v393, %v400
    %vm407 = vcmp.eq.f32.partialorder %v401, %v394
    %vm408 = vcmp.eq.f32.partialorder %v402, %v394
    %vm409 = vcmp.eq.f32.partialorder %v403, %v394
    %vm410 = vcmp.eq.f32.partialorder %v404, %v394
    %vm411 = vcmp.eq.f32.partialorder %v405, %v394
    %vm412 = vcmp.eq.f32.partialorder %v406, %v394
    %v413 = vsel %vm407, 1, 0
    %v414 = vsel %vm408, 1, 0
    %v415 = vsel %vm409, 1, 0
    %v416 = vsel %vm410, 1, 0
    %v417 = vsel %vm411, 1, 0
    %v418 = vsel %vm412, 1, 0
    %v419 = vcvt.s32.f32 %v413
    %v420 = vcvt.s32.f32 %v414
    %v421 = vcvt.s32.f32 %v415
    %v422 = vcvt.s32.f32 %v416
    %v423 = vcvt.s32.f32 %v417
    %v424 = vcvt.s32.f32 %v418
    %426 = vset.pattern.permute.xlu0 0
    %427 = vperm.xlu0 %426, %v322
    %v428 = vpop.permute.xlu0 %427
    %431 = vset.pattern.permute.xlu0 0
    %432 = vperm.xlu0 %431, %v323
    %v433 = vpop.permute.xlu0 %432
    %436 = vset.pattern.permute.xlu0 0
    %437 = vperm.xlu0 %436, %v324
    %v438 = vpop.permute.xlu0 %437
    %441 = vset.pattern.permute.xlu0 0
    %442 = vperm.xlu0 %441, %v325
    %v443 = vpop.permute.xlu0 %442
    %446 = vset.pattern.permute.xlu0 0
    %447 = vperm.xlu0 %446, %v326
    %v448 = vpop.permute.xlu0 %447
    %451 = vset.pattern.permute.xlu0 0
    %452 = vperm.xlu0 %451, %v327
    %v453 = vpop.permute.xlu0 %452
    %v455 = vmul.f32 %v428, %v419
    %v456 = vmul.f32 %v433, %v420
    %v457 = vmul.f32 %v438, %v421
    %v458 = vmul.f32 %v443, %v422
    %v459 = vmul.f32 %v448, %v423
    %v460 = vmul.f32 %v453, %v424
    %vm461 = vcmask 392192
    %v463 = vsel %vm461, %v338, 0
    %465 = vmatprep.subr.mxu0 0.0
    %466 = vmatpush1.msra.mxu0 %v455
    %467 = vmatprep.subr.mxu0 0.0
    %468 = vmatpush1.msra.mxu0 %v456
    %469 = vmatprep.subr.mxu0 0.0
    %470 = vmatpush1.msra.mxu0 %v457
    %471 = vmatprep.subr.mxu0 0.0
    %472 = vmatpush1.msra.mxu0 %v458
    %473 = vmatprep.subr.mxu0 0.0
    %474 = vmatpush1.msra.mxu0 %v459
    %475 = vmatprep.subr.mxu0 0.0
    %476 = vmatpush1.msra.mxu0 %v460
    %477 = vmatprep.subr.mxu0 0.0
    %478 = vmatpush1.msra.mxu0 0.0
    %479 = vmatprep.subr.mxu0 0.0
    %480 = vmatpush1.msra.mxu0 0.0
    %481 = vmatprep.subr.mxu0 0.0
    %482 = vmatpush1.msra.mxu0 0.0
    %483 = vmatprep.subr.mxu0 0.0
    %484 = vmatpush1.msra.mxu0 0.0
    %485 = vmatprep.subr.mxu0 0.0
    %486 = vmatpush1.msra.mxu0 0.0
    %487 = vmatprep.subr.mxu0 0.0
    %488 = vmatpush1.msra.mxu0 0.0
    %489 = vmatprep.subr.mxu0 0.0
    %490 = vmatpush1.msra.mxu0 0.0
    %491 = vmatprep.subr.mxu0 0.0
    %492 = vmatpush1.msra.mxu0 0.0
    %493 = vmatprep.subr.mxu0 0.0
    %494 = vmatpush1.msra.mxu0 0.0
    %495 = vmatprep.subr.mxu0 0.0
    %496 = vmatpush1.msra.mxu0 0.0
    %497 = vmatprep.subr.mxu0 0.0
    %498 = vmatpush1.msra.mxu0 0.0
    %499 = vmatprep.subr.mxu0 0.0
    %500 = vmatpush1.msra.mxu0 0.0
    %501 = vmatprep.subr.mxu0 0.0
    %502 = vmatpush1.msra.mxu0 0.0
    %503 = vmatprep.subr.mxu0 0.0
    %504 = vmatpush1.msra.mxu0 0.0
    %505 = vmatprep.subr.mxu0 0.0
    %506 = vmatpush1.msra.mxu0 0.0
    %507 = vmatprep.subr.mxu0 0.0
    %508 = vmatpush1.msra.mxu0 0.0
    %509 = vmatprep.subr.mxu0 0.0
    %510 = vmatpush1.msra.mxu0 0.0
    %511 = vmatprep.subr.mxu0 0.0
    %512 = vmatpush1.msra.mxu0 0.0
    %513 = vmatprep.subr.mxu0 0.0
    %514 = vmatpush1.msra.mxu0 0.0
    %515 = vmatprep.subr.mxu0 0.0
    %516 = vmatpush1.msra.mxu0 0.0
    %517 = vmatprep.subr.mxu0 0.0
    %518 = vmatpush1.msra.mxu0 0.0
    %519 = vmatprep.subr.mxu0 0.0
    %520 = vmatpush1.msra.mxu0 0.0
    %521 = vmatprep.subr.mxu0 0.0
    %522 = vmatpush1.msra.mxu0 0.0
    %523 = vmatprep.subr.mxu0 0.0
    %524 = vmatpush1.msra.mxu0 0.0
    %525 = vmatprep.subr.mxu0 0.0
    %526 = vmatpush1.msra.mxu0 0.0
    %527 = vmatprep.subr.mxu0 0.0
    %528 = vmatpush1.msra.mxu0 0.0
    %529 = vmatprep.mubr.f32.mxu0 0.0
    %530 = vmatmul.mubr.f32.gmra.mrb[0].mxu0 %v463
    %v531 = vpop.f32.mrb[0].mxu0
    %v532 = vadd.f32 0.0, %v531
    %v533 = vpop.f32.mrb[0].mxu0
    %534 = vdwg.mxu0
    %v535 = vmul.f32 %v428, %v30
    %v536 = vmul.f32 %v433, %v31
    %v537 = vmul.f32 %v438, %v32
    %v538 = vmul.f32 %v443, %v33
    %v539 = vmul.f32 %v448, %v34
    %v540 = vmul.f32 %v453, %v35
    %541 = vmatprep.subr.mxu0 0.0
    %542 = vmatpush1.msra.mxu0 %v535
    %543 = vmatprep.subr.mxu0 0.0
    %544 = vmatpush1.msra.mxu0 %v536
    %545 = vmatprep.subr.mxu0 0.0
    %546 = vmatpush1.msra.mxu0 %v537
    %547 = vmatprep.subr.mxu0 0.0
    %548 = vmatpush1.msra.mxu0 %v538
    %549 = vmatprep.subr.mxu0 0.0
    %550 = vmatpush1.msra.mxu0 %v539
    %551 = vmatprep.subr.mxu0 0.0
    %552 = vmatpush1.msra.mxu0 %v540
    %553 = vmatprep.subr.mxu0 0.0
    %554 = vmatpush1.msra.mxu0 0.0
    %555 = vmatprep.subr.mxu0 0.0
    %556 = vmatpush1.msra.mxu0 0.0
    %557 = vmatprep.subr.mxu0 0.0
    %558 = vmatpush1.msra.mxu0 0.0
    %559 = vmatprep.subr.mxu0 0.0
    %560 = vmatpush1.msra.mxu0 0.0
    %561 = vmatprep.subr.mxu0 0.0
    %562 = vmatpush1.msra.mxu0 0.0
    %563 = vmatprep.subr.mxu0 0.0
    %564 = vmatpush1.msra.mxu0 0.0
    %565 = vmatprep.subr.mxu0 0.0
    %566 = vmatpush1.msra.mxu0 0.0
    %567 = vmatprep.subr.mxu0 0.0
    %568 = vmatpush1.msra.mxu0 0.0
    %569 = vmatprep.subr.mxu0 0.0
    %570 = vmatpush1.msra.mxu0 0.0
    %571 = vmatprep.subr.mxu0 0.0
    %572 = vmatpush1.msra.mxu0 0.0
    %573 = vmatprep.subr.mxu0 0.0
    %574 = vmatpush1.msra.mxu0 0.0
    %575 = vmatprep.subr.mxu0 0.0
    %576 = vmatpush1.msra.mxu0 0.0
    %577 = vmatprep.subr.mxu0 0.0
    %578 = vmatpush1.msra.mxu0 0.0
    %579 = vmatprep.subr.mxu0 0.0
    %580 = vmatpush1.msra.mxu0 0.0
    %581 = vmatprep.subr.mxu0 0.0
    %582 = vmatpush1.msra.mxu0 0.0
    %583 = vmatprep.subr.mxu0 0.0
    %584 = vmatpush1.msra.mxu0 0.0
    %585 = vmatprep.subr.mxu0 0.0
    %586 = vmatpush1.msra.mxu0 0.0
    %587 = vmatprep.subr.mxu0 0.0
    %588 = vmatpush1.msra.mxu0 0.0
    %589 = vmatprep.subr.mxu0 0.0
    %590 = vmatpush1.msra.mxu0 0.0
    %591 = vmatprep.subr.mxu0 0.0
    %592 = vmatpush1.msra.mxu0 0.0
    %593 = vmatprep.subr.mxu0 0.0
    %594 = vmatpush1.msra.mxu0 0.0
    %595 = vmatprep.subr.mxu0 0.0
    %596 = vmatpush1.msra.mxu0 0.0
    %597 = vmatprep.subr.mxu0 0.0
    %598 = vmatpush1.msra.mxu0 0.0
    %599 = vmatprep.subr.mxu0 0.0
    %600 = vmatpush1.msra.mxu0 0.0
    %601 = vmatprep.subr.mxu0 0.0
    %602 = vmatpush1.msra.mxu0 0.0
    %603 = vmatprep.subr.mxu0 0.0
    %604 = vmatpush1.msra.mxu0 0.0
    %605 = vmatprep.mubr.f32.mxu0 0.0
    %606 = vmatmul.mubr.f32.gmra.mrb[0].mxu0 %v463
    %v607 = vpop.f32.mrb[0].mxu0
    %v608 = vadd.f32 0.0, %v607
    %v609 = vpop.f32.mrb[0].mxu0
    %610 = vdwg.mxu0
    %vm611 = vcmask 48128
    %v612 = vsel %vm611, %v532, 0.0
    %613 = vadd.xlane.f32.xlu0 %v612
    %v614 = vpop.xlane.xlu0 %613
    %vm615 = vcmp.gt.f32.partialorder %v614, 0.0
    %v616 = vmax.f32 %v614, 1e-30
    %v617 = vrcp.pop %v616
    %v618 = vmul.f32 1.0, %v617
    %v619 = vsel %vm615, %v618, 0.0
    %v620 = vmul.f32 %v532, %v619
    %621 = vst.msk [vmem:[#allocation2] sm:$0xff] %vm611, %v620
    %v622 = vmul.f32 %v608, %v619
    %623 = vst.msk [vmem:[%s8] sm:$0xff] %vm42, %v622
    // Predicated region
    $region30: #{review_han_forward.5} parent=1 // pred_check
      _
    $region31: #{review_han_forward.5} parent=1 // pred_check_branch
      %625 = sbr.rel (0) target = $region33
    $region32: #{review_han_forward.5} parent=1 // pred_region
      %s627 = ssub.s32 128, 128
      %628 = vsyncadd [#allocation3], %s627
      %s630 = sshll.u32 [#allocation2], 4
      %s631 = int_to_ptr.vmem [resolvable:$true] %s630
      %633 = dma.vmem_to_hbm [thread:$0]  %s631, 128, %s7, [#allocation3]
    $region33: #{review_han_forward.5} parent=1 // pred_fallthru
      _
    // Predicated region
    $region34: #{review_han_forward.5} parent=1 // pred_check
      _
    $region35: #{review_han_forward.5} parent=1 // pred_check_branch
      %635 = sbr.rel (0) target = $region37
    $region36: #{review_han_forward.5} parent=1 // pred_region
      _
    $region37: #{review_han_forward.5} parent=1 // pred_fallthru
      _
    // Predicated region
    $region38: #{review_han_forward.5} parent=1 // pred_check
      _
    $region39: #{review_han_forward.5} parent=1 // pred_check_branch
      %637 = sbr.rel (0) target = $region41
    $region40: #{review_han_forward.5} parent=1 // pred_region
      %638 = dma.done [#allocation3], 128
    $region41: #{review_han_forward.5} parent=1 // pred_fallthru
      _
    // Predicated region
    $region42: #{review_han_forward.5} parent=1 // pred_check
      _
    $region43: #{review_han_forward.5} parent=1 // pred_check_branch
      %640 = sbr.rel (0) target = $region45
    $region44: #{review_han_forward.5} parent=1 // pred_region
      _
    $region45: #{review_han_forward.5} parent=1 // pred_fallthru
      _
    %641 = vsyncpa [#allocation3], 1

// kernel: review_han_forward.7
$region0: #{review_han_forward.7}
  #allocation0 [shape = 'u32[]', space=smem, size = 0x4, offset = 0x4, fixed_abs, tag = 'smem constant byte address 0x4 - core index']
  #allocation1 [shape = 'u32[144,128]{1,0:T(1,128)}', space=vmem, size = 0x12000, scoped, tag = 'internal scratch']
  %s0 = inlined_call_operand.vmem [shape: f32[8,32], index: 0, kind: input, shape index: {}]
  %s1 = inlined_call_operand.vmem [shape: f32[8,1], index: 1, kind: input, shape index: {}]
  %s2 = inlined_call_operand.vmem [shape: f32[1,32], index: 2, kind: input, shape index: {}]
  %s3 = inlined_call_operand.vmem [shape: f32[1,32], index: 3, kind: input, shape index: {}]
  %s4 = inlined_call_operand.vmem [shape: f32[32,16], index: 4, kind: input, shape index: {}]
  %s5 = inlined_call_operand.vmem [shape: f32[1,16], index: 5, kind: input, shape index: {}]
  %s6 = inlined_call_operand.vmem [shape: f32[1,16], index: 6, kind: input, shape index: {}]
  %s7 = inlined_call_operand.hbm [shape: f32[2,4], index: 7, kind: output, shape index: {0}]
  %s8 = inlined_call_operand.hbm [shape: f32[2,32], index: 8, kind: output, shape index: {1}]
  %9 = xla_tuple %s7, %s8
  %s10 = sld [smem:[#allocation0]]
  $region46: #{review_han_forward.7} parent=0
    _
  %s12 = ssub.s32 1, %s10
  %s13 = scalar_select 0, %s12, %s10
  $region1: #{review_han_forward.7} parent=0
    #allocation2 [shape = 'u8[1024]{0}', space=vmem, size = 0x400, scoped, tag = 'output window, operand 0, single buffered']
    #allocation3 [shape = 's32[1]{0}', space=sflag, size = 0x4, scoped, tag = 'scoped memory for review_han_forward.7']
    #allocation4 [shape = 'u8[1024]{0}', space=vmem, size = 0x400, scoped, tag = 'output window, operand 1, single buffered']
    #allocation5 [shape = 's32[1]{0}', space=sflag, size = 0x4, scoped, tag = 'scoped memory for review_han_forward.7']
    %14 = vsyncpa [#allocation3], 0
    %15 = vsyncpa [#allocation5], 0
    // Predicated region
    $region2: #{review_han_forward.7} parent=1 // pred_check
      _
    $region3: #{review_han_forward.7} parent=1 // pred_check_branch
      %17 = sbr.rel (0) target = $region5
    $region4: #{review_han_forward.7} parent=1 // pred_region
      _
    $region5: #{review_han_forward.7} parent=1 // pred_fallthru
      _
    // Predicated region
    $region6: #{review_han_forward.7} parent=1 // pred_check
      _
    $region7: #{review_han_forward.7} parent=1 // pred_check_branch
      %19 = sbr.rel (0) target = $region9
    $region8: #{review_han_forward.7} parent=1 // pred_region
      _
    $region9: #{review_han_forward.7} parent=1 // pred_fallthru
      _
    // Predicated region
    $region10: #{review_han_forward.7} parent=1 // pred_check
      _
    $region11: #{review_han_forward.7} parent=1 // pred_check_branch
      %21 = sbr.rel (0) target = $region13
    $region12: #{review_han_forward.7} parent=1 // pred_region
      _
    $region13: #{review_han_forward.7} parent=1 // pred_fallthru
      _
    // Predicated region
    $region14: #{review_han_forward.7} parent=1 // pred_check
      _
    $region15: #{review_han_forward.7} parent=1 // pred_check_branch
      %23 = sbr.rel (0) target = $region17
    $region16: #{review_han_forward.7} parent=1 // pred_region
      _
    $region17: #{review_han_forward.7} parent=1 // pred_fallthru
      _
    // Predicated region
    $region18: #{review_han_forward.7} parent=1 // pred_check
      _
    $region19: #{review_han_forward.7} parent=1 // pred_check_branch
      %25 = sbr.rel (0) target = $region21
    $region20: #{review_han_forward.7} parent=1 // pred_region
      _
    $region21: #{review_han_forward.7} parent=1 // pred_fallthru
      _
    // Predicated region
    $region22: #{review_han_forward.7} parent=1 // pred_check
      _
    $region23: #{review_han_forward.7} parent=1 // pred_check_branch
      %27 = sbr.rel (0) target = $region25
    $region24: #{review_han_forward.7} parent=1 // pred_region
      _
    $region25: #{review_han_forward.7} parent=1 // pred_fallthru
      _
    // Predicated region
    $region26: #{review_han_forward.7} parent=1 // pred_check
      _
    $region27: #{review_han_forward.7} parent=1 // pred_check_branch
      %29 = sbr.rel (0) target = $region29
    $region28: #{review_han_forward.7} parent=1 // pred_region
      _
    $region29: #{review_han_forward.7} parent=1 // pred_fallthru
      _
    %v31 = vld [vmem:[%s0] sm:$0xff]
    %v32 = vld [vmem:[%s1] sm:$0xff]
    %vm33 = vcmask 261120
    %v34 = vsel %vm33, %v31, 0.0
    %35 = vadd.xlane.f32.xlu0 %v34
    %v36 = vpop.xlane.xlu0 %35
    %v37 = vrcp.pop 32.0
    %v38 = vmul.f32 %v36, %v37
    %v39 = vsub.f32 %v31, %v38
    %v40 = vmul.f32 %v39, %v39
    %v41 = vsel %vm33, %v40, 0.0
    %42 = vadd.xlane.f32.xlu0 %v41
    %v43 = vpop.xlane.xlu0 %42
    %v44 = vmul.f32 %v43, %v37
    %v45 = vadd.f32 %v44, 1e-05
    %v46 = vrsqrt.pop %v45
    %v47 = vmul.f32 %v39, %v46
    %v48 = vld [vmem:[%s2] sm:$0x1]
    %v50 = vlaneseq
    %v51 = vshrl.u32 %v50, 7
    %v52 = vsub.s32 0, %v51
    %v53 = vrot.slane %v48, %v52
    %v55 = vmul.f32 %v47, %v53
    %v56 = vld [vmem:[%s3] sm:$0x1]
    %v58 = vlaneseq
    %v59 = vshrl.u32 %v58, 7
    %v60 = vsub.s32 0, %v59
    %v61 = vrot.slane %v56, %v60
    %v63 = vadd.f32 %v55, %v61
    %v64 = vpack.c.bf16 %v63, %v63
    %v65 = vld [vmem:[%s4] sm:$0xff]
    %v66 = vld [vmem:[%s4 + $0x8] sm:$0xff]
    %v67 = vld [vmem:[%s4 + $0x10] sm:$0xff]
    %v68 = vld [vmem:[%s4 + $0x18] sm:$0xff]
    %v69 = vpack.c.bf16 %v66, %v65
    %v70 = vpack.c.bf16 %v68, %v67
    %v71 = vld [vmem:[%s5] sm:$0x1]
    %v73 = vlaneseq
    %v74 = vshrl.u32 %v73, 7
    %v75 = vsub.s32 0, %v74
    %v76 = vrot.slane %v71, %v75
    %v79 = vsel %vm33, %v64, 0
    %81 = vmatprep.subr.bf16.mxu0 0
    %82 = vmatpush1.bf16.msra.mxu0 %v69
    %83 = vmatprep.subr.bf16.mxu0 0
    %84 = vmatpush1.bf16.msra.mxu0 %v70
    %85 = vmatprep.subr.bf16.mxu0 0
    %86 = vmatpush1.bf16.msra.mxu0 0
    %87 = vmatprep.subr.bf16.mxu0 0
    %88 = vmatpush1.bf16.msra.mxu0 0
    %89 = vmatprep.subr.bf16.mxu0 0
    %90 = vmatpush1.bf16.msra.mxu0 0
    %91 = vmatprep.subr.bf16.mxu0 0
    %92 = vmatpush1.bf16.msra.mxu0 0
    %93 = vmatprep.subr.bf16.mxu0 0
    %94 = vmatpush1.bf16.msra.mxu0 0
    %95 = vmatprep.subr.bf16.mxu0 0
    %96 = vmatpush1.bf16.msra.mxu0 0
    %97 = vmatprep.subr.bf16.mxu0 0
    %98 = vmatpush1.bf16.msra.mxu0 0
    %99 = vmatprep.subr.bf16.mxu0 0
    %100 = vmatpush1.bf16.msra.mxu0 0
    %101 = vmatprep.subr.bf16.mxu0 0
    %102 = vmatpush1.bf16.msra.mxu0 0
    %103 = vmatprep.subr.bf16.mxu0 0
    %104 = vmatpush1.bf16.msra.mxu0 0
    %105 = vmatprep.subr.bf16.mxu0 0
    %106 = vmatpush1.bf16.msra.mxu0 0
    %107 = vmatprep.subr.bf16.mxu0 0
    %108 = vmatpush1.bf16.msra.mxu0 0
    %109 = vmatprep.subr.bf16.mxu0 0
    %110 = vmatpush1.bf16.msra.mxu0 0
    %111 = vmatprep.subr.bf16.mxu0 0
    %112 = vmatpush1.bf16.msra.mxu0 0
    %113 = vmatprep.mubr.bf16.mxu0 0
    %114 = vmatmul.mubr.bf16.gmra.mrb[0].mxu0 %v79
    %v115 = vpop.f32.mrb[0].mxu0
    %v116 = vadd.f32 %v76, %v115
    %v117 = vpop.f32.mrb[0].mxu0
    %v118 = vpop.f32.mrb[0].mxu0
    %v119 = vpop.f32.mrb[0].mxu0
    %120 = vdwg.mxu0
    %v121 = vtanh.pop %v116
    %v122 = vld [vmem:[%s6] sm:$0x1]
    %v124 = vlaneseq
    %v125 = vshrl.u32 %v124, 7
    %v126 = vsub.s32 0, %v125
    %v127 = vrot.slane %v122, %v126
    %v129 = vmul.f32 %v121, %v127
    %vm130 = vcmask 130048
    %v131 = vsel %vm130, %v129, 0.0
    %132 = vadd.xlane.f32.xlu0 %v131
    %v133 = vpop.xlane.xlu0 %132
    %vm134 = vcmp.gt.f32.partialorder %v32, 0.0
    %v135 = vsel %vm134, %v133, -3.4e+38
    %vm136 = vcmask 7168
    %v137 = vsel %vm136, %v135, -inf
    %v138 = vrot.slane %v137, 4
    %v139 = vmax.f32 %v137, %v138
    %v140 = vrot.slane %v139, 2
    %v141 = vmax.f32 %v139, %v140
    %v142 = vrot.slane %v141, 1
    %v143 = vmax.f32 %v141, %v142
    %v144 = vsel %vm134, %v133, %v143
    %v145 = vsub.f32 %v144, %v143
    %v146 = vmul.f32 %v145, 1.442695
    %v147 = vpow.pop %v146
    %v148 = vmul.f32 %v147, %v32
    %v149 = vlaneseq
    %v150 = vand.u32 %v149, 127
    %v151 = vlaneseq
    %v152 = vshrl.u32 %v151, 7
    %v153 = vmul.u32 %v152, 4
    %vm154 = vcmp.ge.s32.totalorder %v150, %v153
    %v155 = vadd.s32 %v153, 4
    %vm156 = vcmp.lt.s32.totalorder %v150, %v155
    %vm157 = vmand %vm154, %vm156
    %v158 = vsel %vm157, 1, 0
    %v159 = vcvt.s32.f32 %v158
    %v160 = vmul.u32 %v150, 4
    %vm161 = vcmp.ge.s32.totalorder %v152, %v160
    %v162 = vsel %vm161, 1, 0
    %v163 = vcvt.s32.f32 %v162
    %vm164 = vcmask 15360
    %v165 = vsel %vm164, %v163, 0.0
    %166 = vadd.xlane.f32.xlu0 %v165
    %v167 = vpop.xlane.xlu0 %166
    %v168 = vsub.f32 %v167, 1.0
    %v169 = vcvt.s32.f32 %v152
    %v170 = vcvt.s32.f32 %v150
    %v171 = vmul.f32 %v168, 4.0
    %v172 = vsub.f32 %v169, %v171
    %vm173 = vcmp.eq.f32.partialorder %v172, %v170
    %v174 = vsel %vm173, 1, 0
    %v175 = vcvt.s32.f32 %v174
    %177 = vset.pattern.permute.xlu0 0
    %178 = vperm.xlu0 %177, %v148
    %v179 = vpop.permute.xlu0 %178
    %v181 = vmul.f32 %v179, %v175
    %vm182 = vcmask 64512
    %v184 = vsel %vm182, %v159, 0
    %186 = vmatprep.subr.mxu0 0.0
    %187 = vmatpush1.msra.mxu0 %v181
    %188 = vmatprep.subr.mxu0 0.0
    %189 = vmatpush1.msra.mxu0 0.0
    %190 = vmatprep.subr.mxu0 0.0
    %191 = vmatpush1.msra.mxu0 0.0
    %192 = vmatprep.subr.mxu0 0.0
    %193 = vmatpush1.msra.mxu0 0.0
    %194 = vmatprep.subr.mxu0 0.0
    %195 = vmatpush1.msra.mxu0 0.0
    %196 = vmatprep.subr.mxu0 0.0
    %197 = vmatpush1.msra.mxu0 0.0
    %198 = vmatprep.subr.mxu0 0.0
    %199 = vmatpush1.msra.mxu0 0.0
    %200 = vmatprep.subr.mxu0 0.0
    %201 = vmatpush1.msra.mxu0 0.0
    %202 = vmatprep.subr.mxu0 0.0
    %203 = vmatpush1.msra.mxu0 0.0
    %204 = vmatprep.subr.mxu0 0.0
    %205 = vmatpush1.msra.mxu0 0.0
    %206 = vmatprep.subr.mxu0 0.0
    %207 = vmatpush1.msra.mxu0 0.0
    %208 = vmatprep.subr.mxu0 0.0
    %209 = vmatpush1.msra.mxu0 0.0
    %210 = vmatprep.subr.mxu0 0.0
    %211 = vmatpush1.msra.mxu0 0.0
    %212 = vmatprep.subr.mxu0 0.0
    %213 = vmatpush1.msra.mxu0 0.0
    %214 = vmatprep.subr.mxu0 0.0
    %215 = vmatpush1.msra.mxu0 0.0
    %216 = vmatprep.subr.mxu0 0.0
    %217 = vmatpush1.msra.mxu0 0.0
    %218 = vmatprep.subr.mxu0 0.0
    %219 = vmatpush1.msra.mxu0 0.0
    %220 = vmatprep.subr.mxu0 0.0
    %221 = vmatpush1.msra.mxu0 0.0
    %222 = vmatprep.subr.mxu0 0.0
    %223 = vmatpush1.msra.mxu0 0.0
    %224 = vmatprep.subr.mxu0 0.0
    %225 = vmatpush1.msra.mxu0 0.0
    %226 = vmatprep.subr.mxu0 0.0
    %227 = vmatpush1.msra.mxu0 0.0
    %228 = vmatprep.subr.mxu0 0.0
    %229 = vmatpush1.msra.mxu0 0.0
    %230 = vmatprep.subr.mxu0 0.0
    %231 = vmatpush1.msra.mxu0 0.0
    %232 = vmatprep.subr.mxu0 0.0
    %233 = vmatpush1.msra.mxu0 0.0
    %234 = vmatprep.subr.mxu0 0.0
    %235 = vmatpush1.msra.mxu0 0.0
    %236 = vmatprep.subr.mxu0 0.0
    %237 = vmatpush1.msra.mxu0 0.0
    %238 = vmatprep.subr.mxu0 0.0
    %239 = vmatpush1.msra.mxu0 0.0
    %240 = vmatprep.subr.mxu0 0.0
    %241 = vmatpush1.msra.mxu0 0.0
    %242 = vmatprep.subr.mxu0 0.0
    %243 = vmatpush1.msra.mxu0 0.0
    %244 = vmatprep.subr.mxu0 0.0
    %245 = vmatpush1.msra.mxu0 0.0
    %246 = vmatprep.subr.mxu0 0.0
    %247 = vmatpush1.msra.mxu0 0.0
    %248 = vmatprep.subr.mxu0 0.0
    %249 = vmatpush1.msra.mxu0 0.0
    %250 = vmatprep.mubr.f32.mxu0 0.0
    %251 = vmatmul.mubr.f32.gmra.mrb[0].mxu0 %v184
    %v252 = vpop.f32.mrb[0].mxu0
    %v253 = vadd.f32 0.0, %v252
    %v254 = vpop.f32.mrb[0].mxu0
    %255 = vdwg.mxu0
    %v256 = vmul.f32 %v179, %v31
    %257 = vmatprep.subr.mxu0 0.0
    %258 = vmatpush1.msra.mxu0 %v256
    %259 = vmatprep.subr.mxu0 0.0
    %260 = vmatpush1.msra.mxu0 0.0
    %261 = vmatprep.subr.mxu0 0.0
    %262 = vmatpush1.msra.mxu0 0.0
    %263 = vmatprep.subr.mxu0 0.0
    %264 = vmatpush1.msra.mxu0 0.0
    %265 = vmatprep.subr.mxu0 0.0
    %266 = vmatpush1.msra.mxu0 0.0
    %267 = vmatprep.subr.mxu0 0.0
    %268 = vmatpush1.msra.mxu0 0.0
    %269 = vmatprep.subr.mxu0 0.0
    %270 = vmatpush1.msra.mxu0 0.0
    %271 = vmatprep.subr.mxu0 0.0
    %272 = vmatpush1.msra.mxu0 0.0
    %273 = vmatprep.subr.mxu0 0.0
    %274 = vmatpush1.msra.mxu0 0.0
    %275 = vmatprep.subr.mxu0 0.0
    %276 = vmatpush1.msra.mxu0 0.0
    %277 = vmatprep.subr.mxu0 0.0
    %278 = vmatpush1.msra.mxu0 0.0
    %279 = vmatprep.subr.mxu0 0.0
    %280 = vmatpush1.msra.mxu0 0.0
    %281 = vmatprep.subr.mxu0 0.0
    %282 = vmatpush1.msra.mxu0 0.0
    %283 = vmatprep.subr.mxu0 0.0
    %284 = vmatpush1.msra.mxu0 0.0
    %285 = vmatprep.subr.mxu0 0.0
    %286 = vmatpush1.msra.mxu0 0.0
    %287 = vmatprep.subr.mxu0 0.0
    %288 = vmatpush1.msra.mxu0 0.0
    %289 = vmatprep.subr.mxu0 0.0
    %290 = vmatpush1.msra.mxu0 0.0
    %291 = vmatprep.subr.mxu0 0.0
    %292 = vmatpush1.msra.mxu0 0.0
    %293 = vmatprep.subr.mxu0 0.0
    %294 = vmatpush1.msra.mxu0 0.0
    %295 = vmatprep.subr.mxu0 0.0
    %296 = vmatpush1.msra.mxu0 0.0
    %297 = vmatprep.subr.mxu0 0.0
    %298 = vmatpush1.msra.mxu0 0.0
    %299 = vmatprep.subr.mxu0 0.0
    %300 = vmatpush1.msra.mxu0 0.0
    %301 = vmatprep.subr.mxu0 0.0
    %302 = vmatpush1.msra.mxu0 0.0
    %303 = vmatprep.subr.mxu0 0.0
    %304 = vmatpush1.msra.mxu0 0.0
    %305 = vmatprep.subr.mxu0 0.0
    %306 = vmatpush1.msra.mxu0 0.0
    %307 = vmatprep.subr.mxu0 0.0
    %308 = vmatpush1.msra.mxu0 0.0
    %309 = vmatprep.subr.mxu0 0.0
    %310 = vmatpush1.msra.mxu0 0.0
    %311 = vmatprep.subr.mxu0 0.0
    %312 = vmatpush1.msra.mxu0 0.0
    %313 = vmatprep.subr.mxu0 0.0
    %314 = vmatpush1.msra.mxu0 0.0
    %315 = vmatprep.subr.mxu0 0.0
    %316 = vmatpush1.msra.mxu0 0.0
    %317 = vmatprep.subr.mxu0 0.0
    %318 = vmatpush1.msra.mxu0 0.0
    %319 = vmatprep.subr.mxu0 0.0
    %320 = vmatpush1.msra.mxu0 0.0
    %321 = vmatprep.mubr.f32.mxu0 0.0
    %322 = vmatmul.mubr.f32.gmra.mrb[0].mxu0 %v184
    %v323 = vpop.f32.mrb[0].mxu0
    %v324 = vadd.f32 0.0, %v323
    %v325 = vpop.f32.mrb[0].mxu0
    %326 = vdwg.mxu0
    %vm327 = vcmask 25600
    %v328 = vsel %vm327, %v253, 0.0
    %329 = vadd.xlane.f32.xlu0 %v328
    %v330 = vpop.xlane.xlu0 %329
    %vm331 = vcmp.gt.f32.partialorder %v330, 0.0
    %v332 = vmax.f32 %v330, 1e-30
    %v333 = vrcp.pop %v332
    %v334 = vmul.f32 1.0, %v333
    %v335 = vsel %vm331, %v334, 0.0
    %v336 = vmul.f32 %v253, %v335
    %337 = vst.msk [vmem:[#allocation2] sm:$0x3] %vm327, %v336
    %v338 = vmul.f32 %v324, %v335
    %vm339 = vcmask 254976
    %340 = vst.msk [vmem:[#allocation4] sm:$0x3] %vm339, %v338
    // Predicated region
    $region30: #{review_han_forward.7} parent=1 // pred_check
      _
    $region31: #{review_han_forward.7} parent=1 // pred_check_branch
      %342 = sbr.rel (0) target = $region33
    $region32: #{review_han_forward.7} parent=1 // pred_region
      %s344 = ssub.s32 32, 32
      %345 = vsyncadd [#allocation3], %s344
      %s347 = sshll.u32 [#allocation2], 4
      %s348 = int_to_ptr.vmem [resolvable:$true] %s347
      %350 = dma.vmem_to_hbm [thread:$0]  %s348, 32, %s7, [#allocation3]
    $region33: #{review_han_forward.7} parent=1 // pred_fallthru
      _
    // Predicated region
    $region34: #{review_han_forward.7} parent=1 // pred_check
      _
    $region35: #{review_han_forward.7} parent=1 // pred_check_branch
      %352 = sbr.rel (0) target = $region37
    $region36: #{review_han_forward.7} parent=1 // pred_region
      %s354 = ssub.s32 32, 32
      %355 = vsyncadd [#allocation5], %s354
      %s357 = sshll.u32 [#allocation4], 4
      %s358 = int_to_ptr.vmem [resolvable:$true] %s357
      %360 = dma.vmem_to_hbm [thread:$0]  %s358, 32, %s8, [#allocation5]
    $region37: #{review_han_forward.7} parent=1 // pred_fallthru
      _
    // Predicated region
    $region38: #{review_han_forward.7} parent=1 // pred_check
      _
    $region39: #{review_han_forward.7} parent=1 // pred_check_branch
      %362 = sbr.rel (0) target = $region41
    $region40: #{review_han_forward.7} parent=1 // pred_region
      %363 = dma.done [#allocation3], 32
    $region41: #{review_han_forward.7} parent=1 // pred_fallthru
      _
    // Predicated region
    $region42: #{review_han_forward.7} parent=1 // pred_check
      _
    $region43: #{review_han_forward.7} parent=1 // pred_check_branch
      %365 = sbr.rel (0) target = $region45
    $region44: #{review_han_forward.7} parent=1 // pred_region
      %366 = dma.done [#allocation5], 32
    $region45: #{review_han_forward.7} parent=1 // pred_fallthru
      _
    %367 = vsyncpa [#allocation3], 1
    %368 = vsyncpa [#allocation5], 1

// kernel: review_han_forward.6
$region0: #{review_han_forward.6}
  #allocation0 [shape = 'u32[]', space=smem, size = 0x4, offset = 0x4, fixed_abs, tag = 'smem constant byte address 0x4 - core index']
  #allocation1 [shape = 'u32[144,128]{1,0:T(1,128)}', space=vmem, size = 0x12000, scoped, tag = 'internal scratch']
  #allocation2 [shape = 'f32[32,48]{1,0:T(8,128)}', space=vmem, size = 0x4000, scoped, tag = 'scratch operand']
  %s0 = inlined_call_operand.vmem [shape: f32[32,32], index: 0, kind: input, shape index: {}]
  %s1 = inlined_call_operand.vmem [shape: s32[8,1], index: 1, kind: input, shape index: {}]
  %s2 = inlined_call_operand.vmem [shape: f32[2,32,48], index: 2, kind: input, shape index: {}]
  %s3 = inlined_call_operand.vmem [shape: f32[2,1,48], index: 3, kind: input, shape index: {}]
  %s4 = inlined_call_operand.vmem [shape: f32[2,16,48], index: 4, kind: input, shape index: {}]
  %s5 = inlined_call_operand.vmem [shape: f32[2,1,48], index: 5, kind: input, shape index: {}]
  %s6 = inlined_call_operand.vmem [shape: f32[2,32,16], index: 6, kind: output, shape index: {}]
  %s7 = sld [smem:[#allocation0]]
  $region65: #{review_han_forward.6} parent=0
    _
  %s9 = ssub.s32 1, %s7
  %s10 = scalar_select 0, %s9, %s7
  loop: start=0, step=1, limit=4
  $region2: #{review_han_forward.6} parent=0 // loop_pre_header
    _
  $region3: #{review_han_forward.6} parent=0 // loop_header
    %s12 = sphi 0, %s16
    %p13 = scmp.ge.s32.totalorder %s12, 4
    %s20 = sphi 0, %s20
    %s22 = sphi 0, %s20
    %s23 = sphi 0, %s22
    %s37 = sphi 0, %s23
    %s41 = sphi 0, %s41
    %s43 = sphi 0, %s41
    %s44 = sphi 0, %s43
    %s58 = sphi 0, %s44
    %s64 = sphi 0, %s66
    %s67 = sphi 0, %s64
    %s68 = sphi 0, %s67
    %s84 = sphi 0, %s68
    %s90 = sphi 0, %s92
    %s93 = sphi 0, %s90
    %s94 = sphi 0, %s93
    %s110 = sphi 0, %s94
    %s116 = sphi 0, %s118
    %s119 = sphi 0, %s116
    %s120 = sphi 0, %s119
    %s136 = sphi 0, %s120
    %s142 = sphi 0, %s144
    %s145 = sphi 0, %s142
    %s146 = sphi 0, %s145
    %s162 = sphi 0, %s146
    %s168 = sphi 0, %s170
    %s171 = sphi 0, %s168
    %s172 = sphi 0, %s171
    %s188 = sphi 0, %s172
  $region4: #{review_han_forward.6} parent=0 // loop_header_branch
    %15 = sbr.rel (%p13) target = $region8
  $region5: #{review_han_forward.6} parent=0 // loop_body
    %s17 = ssub.s32 %s12, 1
    %s18 = ssub.s32 %s12, 2
    %s19 = sadd.s32 %s12, 1
    %s21 = sadd.s32 %s20, 1
    %p24 = scmp.eq.s32.totalorder %s12, 1
    %p25 = scmp.ne.s32.totalorder %s20, %s22
    %p26 = scmp.eq.s32.totalorder %s12, 0
    %p27 = por %p25, %p26
    %p28 = scmp.ne.s32.totalorder %s20, %s22
    %p29 = scmp.eq.s32.totalorder %s17, 1
    %p30 = por %p28, %p29
    %p31 = scmp.ne.s32.totalorder %s22, %s23
    %p32 = scmp.eq.s32.totalorder %s17, 0
    %p33 = por %p31, %p32
    %p34 = scmp.ne.s32.totalorder %s22, %s23
    %p35 = scmp.eq.s32.totalorder %s18, 1
    %p36 = por %p34, %p35
    %p38 = scmp.ne.s32.totalorder %s23, %s37
    %p39 = scmp.eq.s32.totalorder %s18, 0
    %p40 = por %p38, %p39
    %s42 = sadd.s32 %s41, 1
    %p45 = scmp.eq.s32.totalorder %s12, 1
    %p46 = scmp.ne.s32.totalorder %s41, %s43
    %p47 = scmp.eq.s32.totalorder %s12, 0
    %p48 = por %p46, %p47
    %p49 = scmp.ne.s32.totalorder %s41, %s43
    %p50 = scmp.eq.s32.totalorder %s17, 1
    %p51 = por %p49, %p50
    %p52 = scmp.ne.s32.totalorder %s43, %s44
    %p53 = scmp.eq.s32.totalorder %s17, 0
    %p54 = por %p52, %p53
    %p55 = scmp.ne.s32.totalorder %s43, %s44
    %p56 = scmp.eq.s32.totalorder %s18, 1
    %p57 = por %p55, %p56
    %p59 = scmp.ne.s32.totalorder %s44, %s58
    %p60 = scmp.eq.s32.totalorder %s18, 0
    %p61 = por %p59, %p60
    %s62 = ssub.s32 %s12, %s19
    %p63 = scmp.eq.s32.totalorder %s62, 0
    %s65 = sadd.s32 %s64, 1
    %s66 = scalar_select %p63, %s64, %s65
    %p69 = pneg %p63
    %p70 = scmp.eq.s32.totalorder %s12, 1
    %p71 = por %p69, %p70
    %p72 = scmp.ne.s32.totalorder %s64, %s67
    %p73 = scmp.eq.s32.totalorder %s12, 0
    %p74 = por %p72, %p73
    %p75 = scmp.ne.s32.totalorder %s64, %s67
    %p76 = scmp.eq.s32.totalorder %s17, 1
    %p77 = por %p75, %p76
    %p78 = scmp.ne.s32.totalorder %s67, %s68
    %p79 = scmp.eq.s32.totalorder %s17, 0
    %p80 = por %p78, %p79
    %p81 = scmp.ne.s32.totalorder %s67, %s68
    %p82 = scmp.eq.s32.totalorder %s18, 1
    %p83 = por %p81, %p82
    %p85 = scmp.ne.s32.totalorder %s68, %s84
    %p86 = scmp.eq.s32.totalorder %s18, 0
    %p87 = por %p85, %p86
    %s88 = ssub.s32 %s12, %s19
    %p89 = scmp.eq.s32.totalorder %s88, 0
    %s91 = sadd.s32 %s90, 1
    %s92 = scalar_select %p89, %s90, %s91
    %p95 = pneg %p89
    %p96 = scmp.eq.s32.totalorder %s12, 1
    %p97 = por %p95, %p96
    %p98 = scmp.ne.s32.totalorder %s90, %s93
    %p99 = scmp.eq.s32.totalorder %s12, 0
    %p100 = por %p98, %p99
    %p101 = scmp.ne.s32.totalorder %s90, %s93
    %p102 = scmp.eq.s32.totalorder %s17, 1
    %p103 = por %p101, %p102
    %p104 = scmp.ne.s32.totalorder %s93, %s94
    %p105 = scmp.eq.s32.totalorder %s17, 0
    %p106 = por %p104, %p105
    %p107 = scmp.ne.s32.totalorder %s93, %s94
    %p108 = scmp.eq.s32.totalorder %s18, 1
    %p109 = por %p107, %p108
    %p111 = scmp.ne.s32.totalorder %s94, %s110
    %p112 = scmp.eq.s32.totalorder %s18, 0
    %p113 = por %p111, %p112
    %s114 = ssub.s32 %s12, %s19
    %p115 = scmp.eq.s32.totalorder %s114, 0
    %s117 = sadd.s32 %s116, 1
    %s118 = scalar_select %p115, %s116, %s117
    %p121 = pneg %p115
    %p122 = scmp.eq.s32.totalorder %s12, 1
    %p123 = por %p121, %p122
    %p124 = scmp.ne.s32.totalorder %s116, %s119
    %p125 = scmp.eq.s32.totalorder %s12, 0
    %p126 = por %p124, %p125
    %p127 = scmp.ne.s32.totalorder %s116, %s119
    %p128 = scmp.eq.s32.totalorder %s17, 1
    %p129 = por %p127, %p128
    %p130 = scmp.ne.s32.totalorder %s119, %s120
    %p131 = scmp.eq.s32.totalorder %s17, 0
    %p132 = por %p130, %p131
    %p133 = scmp.ne.s32.totalorder %s119, %s120
    %p134 = scmp.eq.s32.totalorder %s18, 1
    %p135 = por %p133, %p134
    %p137 = scmp.ne.s32.totalorder %s120, %s136
    %p138 = scmp.eq.s32.totalorder %s18, 0
    %p139 = por %p137, %p138
    %s140 = ssub.s32 %s12, %s19
    %p141 = scmp.eq.s32.totalorder %s140, 0
    %s143 = sadd.s32 %s142, 1
    %s144 = scalar_select %p141, %s142, %s143
    %p147 = pneg %p141
    %p148 = scmp.eq.s32.totalorder %s12, 1
    %p149 = por %p147, %p148
    %p150 = scmp.ne.s32.totalorder %s142, %s145
    %p151 = scmp.eq.s32.totalorder %s12, 0
    %p152 = por %p150, %p151
    %p153 = scmp.ne.s32.totalorder %s142, %s145
    %p154 = scmp.eq.s32.totalorder %s17, 1
    %p155 = por %p153, %p154
    %p156 = scmp.ne.s32.totalorder %s145, %s146
    %p157 = scmp.eq.s32.totalorder %s17, 0
    %p158 = por %p156, %p157
    %p159 = scmp.ne.s32.totalorder %s145, %s146
    %p160 = scmp.eq.s32.totalorder %s18, 1
    %p161 = por %p159, %p160
    %p163 = scmp.ne.s32.totalorder %s146, %s162
    %p164 = scmp.eq.s32.totalorder %s18, 0
    %p165 = por %p163, %p164
    %s166 = ssub.s32 %s12, %s19
    %p167 = scmp.eq.s32.totalorder %s166, 0
    %s169 = sadd.s32 %s168, 1
    %s170 = scalar_select %p167, %s168, %s169
    %p173 = pneg %p167
    %p174 = scmp.eq.s32.totalorder %s12, 1
    %p175 = por %p173, %p174
    %p176 = scmp.ne.s32.totalorder %s168, %s171
    %p177 = scmp.eq.s32.totalorder %s12, 0
    %p178 = por %p176, %p177
    %p179 = scmp.ne.s32.totalorder %s168, %s171
    %p180 = scmp.eq.s32.totalorder %s17, 1
    %p181 = por %p179, %p180
    %p182 = scmp.ne.s32.totalorder %s171, %s172
    %p183 = scmp.eq.s32.totalorder %s17, 0
    %p184 = por %p182, %p183
    %p185 = scmp.ne.s32.totalorder %s171, %s172
    %p186 = scmp.eq.s32.totalorder %s18, 1
    %p187 = por %p185, %p186
    %p189 = scmp.ne.s32.totalorder %s172, %s188
    %p190 = scmp.eq.s32.totalorder %s18, 0
    %p191 = por %p189, %p190
    %p192 = scmp.le.s32.totalorder 1, %s12
    %p193 = scmp.lt.s32.totalorder %s12, 3
    %p194 = pnand %p192, %p193
    %p195 = pneg %p194
    // Predicated region
    $region9: #{review_han_forward.6} parent=5 // pred_check
      _
    $region10: #{review_han_forward.6} parent=5 // pred_check_branch
      %197 = sbr.rel (%p194) target = $region12
    $region11: #{review_han_forward.6} parent=5 // pred_region
      %s198 = ssub.s32 %s12, 1
      // Predicated region
      $region13: #{review_han_forward.6} parent=11 // pred_check
        %p199 = pneg %p33
      $region14: #{review_han_forward.6} parent=11 // pred_check_branch
        %201 = sbr.rel (%p199) target = $region16
      $region15: #{review_han_forward.6} parent=11 // pred_region
        _
      $region16: #{review_han_forward.6} parent=11 // pred_fallthru
        _
      // Predicated region
      $region17: #{review_han_forward.6} parent=11 // pred_check
        %p202 = pneg %p54
      $region18: #{review_han_forward.6} parent=11 // pred_check_branch
        %204 = sbr.rel (%p202) target = $region20
      $region19: #{review_han_forward.6} parent=11 // pred_region
        _
      $region20: #{review_han_forward.6} parent=11 // pred_fallthru
        _
    $region12: #{review_han_forward.6} parent=5 // pred_fallthru
      _
    %p205 = scmp.lt.s32.totalorder %s12, 2
    // Predicated region
    $region21: #{review_han_forward.6} parent=5 // pred_check
      %p206 = pneg %p205
    $region22: #{review_han_forward.6} parent=5 // pred_check_branch
      %208 = sbr.rel (%p206) target = $region24
    $region23: #{review_han_forward.6} parent=5 // pred_region
      // Predicated region
      $region25: #{review_han_forward.6} parent=23 // pred_check
        %p209 = pneg %p74
      $region26: #{review_han_forward.6} parent=23 // pred_check_branch
        %211 = sbr.rel (%p209) target = $region28
      $region27: #{review_han_forward.6} parent=23 // pred_region
        %p212 = scmp.lt.s32.totalorder %s12, 1
        %s213 = scalar_select %p212, %s12, 1
        %s214 = smul.addr %s213, 4
        %s215 = smul.addr %s214, 8
        %s216 = scalar_lea.vmem %s2, %s215
      $region28: #{review_han_forward.6} parent=23 // pred_fallthru
        _
      // Predicated region
      $region29: #{review_han_forward.6} parent=23 // pred_check
        %p217 = pneg %p100
      $region30: #{review_han_forward.6} parent=23 // pred_check_branch
        %219 = sbr.rel (%p217) target = $region32
      $region31: #{review_han_forward.6} parent=23 // pred_region
        %p220 = scmp.lt.s32.totalorder %s12, 1
        %s221 = scalar_select %p220, %s12, 1
        %s222 = scalar_lea.vmem %s3, %s221
      $region32: #{review_han_forward.6} parent=23 // pred_fallthru
        _
      // Predicated region
      $region33: #{review_han_forward.6} parent=23 // pred_check
        %p223 = pneg %p126
      $region34: #{review_han_forward.6} parent=23 // pred_check_branch
        %225 = sbr.rel (%p223) target = $region36
      $region35: #{review_han_forward.6} parent=23 // pred_region
        %p226 = scmp.lt.s32.totalorder %s12, 1
        %s227 = scalar_select %p226, %s12, 1
        %s228 = smul.addr %s227, 2
        %s229 = smul.addr %s228, 8
        %s230 = scalar_lea.vmem %s4, %s229
      $region36: #{review_han_forward.6} parent=23 // pred_fallthru
        _
      // Predicated region
      $region37: #{review_han_forward.6} parent=23 // pred_check
        %p231 = pneg %p152
      $region38: #{review_han_forward.6} parent=23 // pred_check_branch
        %233 = sbr.rel (%p231) target = $region40
      $region39: #{review_han_forward.6} parent=23 // pred_region
        %p234 = scmp.lt.s32.totalorder %s12, 1
        %s235 = scalar_select %p234, %s12, 1
        %s236 = scalar_lea.vmem %s5, %s235
      $region40: #{review_han_forward.6} parent=23 // pred_fallthru
        _
    $region24: #{review_han_forward.6} parent=5 // pred_fallthru
      _
    %p237 = scmp.le.s32.totalorder 1, %s12
    %p238 = scmp.lt.s32.totalorder %s12, 3
    %p239 = pnand %p237, %p238
    %p240 = pneg %p239
    // Predicated region
    $region41: #{review_han_forward.6} parent=5 // pred_check
      _
    $region42: #{review_han_forward.6} parent=5 // pred_check_branch
      %242 = sbr.rel (%p239) target = $region44
    $region43: #{review_han_forward.6} parent=5 // pred_region
      %s243 = ssub.s32 %s12, 1
      %p244 = pneg %p33
      %p245 = pneg %p30
      %p246 = pneg %p54
      %p247 = pneg %p51
      %p248 = scmp.lt.s32.totalorder %s17, 1
      %s249 = scalar_select %p248, %s17, 1
      %s250 = smul.addr %s249, 4
      %s251 = smul.addr %s250, 8
      %s252 = scalar_lea.vmem %s2, %s251
      %p253 = pneg %p80
      %p254 = pneg %p77
      %p255 = scmp.lt.s32.totalorder %s17, 1
      %s256 = scalar_select %p255, %s17, 1
      %s257 = scalar_lea.vmem %s3, %s256
      %p258 = pneg %p106
      %p259 = pneg %p103
      %p260 = scmp.lt.s32.totalorder %s17, 1
      %s261 = scalar_select %p260, %s17, 1
      %s262 = smul.addr %s261, 2
      %s263 = smul.addr %s262, 8
      %s264 = scalar_lea.vmem %s4, %s263
      %p265 = pneg %p132
      %p266 = pneg %p129
      %p267 = scmp.lt.s32.totalorder %s17, 1
      %s268 = scalar_select %p267, %s17, 1
      %s269 = scalar_lea.vmem %s5, %s268
      %p270 = pneg %p158
      %p271 = pneg %p155
      %p272 = pneg %p184
      %p273 = pneg %p181
      %p274 = scmp.lt.s32.totalorder %s17, 1
      %s275 = scalar_select %p274, %s17, 1
      %s276 = smul.addr %s275, 4
      %s277 = smul.addr %s276, 8
      %s278 = scalar_lea.vmem %s6, %s277
      %p279 = scmp.lt.s32.totalorder %s17, 1
      %s280 = scalar_select %p279, %s17, 1
      %s281 = smul.addr %s280, 4
      %s282 = smul.addr %s281, 8
      %s283 = scalar_lea.vmem %s2, %s282
      %p284 = scmp.lt.s32.totalorder %s17, 1
      %s285 = scalar_select %p284, %s17, 1
      %s286 = scalar_lea.vmem %s3, %s285
      %p287 = scmp.lt.s32.totalorder %s17, 1
      %s288 = scalar_select %p287, %s17, 1
      %s289 = smul.addr %s288, 2
      %s290 = smul.addr %s289, 8
      %s291 = scalar_lea.vmem %s4, %s290
      %p292 = scmp.lt.s32.totalorder %s17, 1
      %s293 = scalar_select %p292, %s17, 1
      %s294 = scalar_lea.vmem %s5, %s293
      %p295 = scmp.lt.s32.totalorder %s17, 1
      %s296 = scalar_select %p295, %s17, 1
      %s297 = smul.addr %s296, 4
      %s298 = smul.addr %s297, 8
      %s299 = scalar_lea.vmem %s6, %s298
      %v301 = vld [vmem:[%s0] sm:$0xff]
      %v302 = vld [vmem:[%s0 + $0x8] sm:$0xff]
      %v303 = vld [vmem:[%s0 + $0x10] sm:$0xff]
      %v304 = vld [vmem:[%s0 + $0x18] sm:$0xff]
      %v305 = vpack.c.bf16 %v302, %v301
      %v306 = vpack.c.bf16 %v304, %v303
      %v307 = vld [vmem:[%s283] sm:$0xff]
      %v308 = vld [vmem:[%s283 + $0x8] sm:$0xff]
      %v309 = vld [vmem:[%s283 + $0x10] sm:$0xff]
      %v310 = vld [vmem:[%s283 + $0x18] sm:$0xff]
      %v311 = vpack.c.bf16 %v308, %v307
      %v312 = vpack.c.bf16 %v310, %v309
      %v313 = vld [vmem:[%s286] sm:$0x1]
      %v315 = vlaneseq
      %v316 = vshrl.u32 %v315, 7
      %v317 = vsub.s32 0, %v316
      %v318 = vrot.slane %v313, %v317
      %vm320 = vcmask 261120
      %v322 = vsel %vm320, %v305, 0
      %v325 = vsel %vm320, %v306, 0
      %327 = vmatprep.subr.bf16.mxu0 0
      %328 = vmatpush1.bf16.msra.mxu0 %v311
      %329 = vmatprep.subr.bf16.mxu0 0
      %330 = vmatpush1.bf16.msra.mxu0 %v312
      %331 = vmatprep.subr.bf16.mxu0 0
      %332 = vmatpush1.bf16.msra.mxu0 0
      %333 = vmatprep.subr.bf16.mxu0 0
      %334 = vmatpush1.bf16.msra.mxu0 0
      %335 = vmatprep.subr.bf16.mxu0 0
      %336 = vmatpush1.bf16.msra.mxu0 0
      %337 = vmatprep.subr.bf16.mxu0 0
      %338 = vmatpush1.bf16.msra.mxu0 0
      %339 = vmatprep.subr.bf16.mxu0 0
      %340 = vmatpush1.bf16.msra.mxu0 0
      %341 = vmatprep.subr.bf16.mxu0 0
      %342 = vmatpush1.bf16.msra.mxu0 0
      %343 = vmatprep.subr.bf16.mxu0 0
      %344 = vmatpush1.bf16.msra.mxu0 0
      %345 = vmatprep.subr.bf16.mxu0 0
      %346 = vmatpush1.bf16.msra.mxu0 0
      %347 = vmatprep.subr.bf16.mxu0 0
      %348 = vmatpush1.bf16.msra.mxu0 0
      %349 = vmatprep.subr.bf16.mxu0 0
      %350 = vmatpush1.bf16.msra.mxu0 0
      %351 = vmatprep.subr.bf16.mxu0 0
      %352 = vmatpush1.bf16.msra.mxu0 0
      %353 = vmatprep.subr.bf16.mxu0 0
      %354 = vmatpush1.bf16.msra.mxu0 0
      %355 = vmatprep.subr.bf16.mxu0 0
      %356 = vmatpush1.bf16.msra.mxu0 0
      %357 = vmatprep.subr.bf16.mxu0 0
      %358 = vmatpush1.bf16.msra.mxu0 0
      %359 = vmatprep.mubr.bf16.mxu0 0
      %360 = vmatmul.mubr.bf16.gmra.mrb[0].mxu0 %v322
      %v361 = vpop.f32.mrb[0].mxu0
      %v362 = vadd.f32 %v318, %v361
      %v363 = vpop.f32.mrb[0].mxu0
      %v364 = vpop.f32.mrb[0].mxu0
      %v365 = vadd.f32 %v318, %v364
      %v366 = vpop.f32.mrb[0].mxu0
      %367 = vmatprep.mubr.bf16.mxu0 0
      %368 = vmatmul.mubr.bf16.gmra.mrb[0].mxu0 %v325
      %v369 = vpop.f32.mrb[0].mxu0
      %v370 = vadd.f32 %v318, %v369
      %v371 = vpop.f32.mrb[0].mxu0
      %v372 = vpop.f32.mrb[0].mxu0
      %v373 = vadd.f32 %v318, %v372
      %v374 = vpop.f32.mrb[0].mxu0
      %375 = vdwg.mxu0
      %vm376 = vcmask 392192
      %377 = vst.msk [vmem:[#allocation2] sm:$0xff] %vm376, %v362
      %378 = vst.msk [vmem:[#allocation2 + $0x8] sm:$0xff] %vm376, %v365
      %379 = vst.msk [vmem:[#allocation2 + $0x10] sm:$0xff] %vm376, %v370
      %380 = vst.msk [vmem:[#allocation2 + $0x18] sm:$0xff] %vm376, %v373
      %v381 = vld [vmem:[%s291] sm:$0xff]
      %v382 = vld [vmem:[%s291 + $0x8] sm:$0xff]
      %v383 = vpack.c.bf16 %v382, %v381
      %v384 = vld [vmem:[%s294] sm:$0x1]
      %v385 = vld [vmem:[%s1] sm:$0xff]
      %p386 = scmp.eq.s32.totalorder %s17, 0
      // Predicated region
      $region45: #{review_han_forward.6} parent=43 // pred_check
        %p387 = pneg %p386
      $region46: #{review_han_forward.6} parent=43 // pred_check_branch
        %389 = sbr.rel (%p387) target = $region48
      $region47: #{review_han_forward.6} parent=43 // pred_region
        %v390 = vld [vmem:[#allocation2] sm:$0xff]
        %v392 = vlaneseq
        %v393 = vshrl.u32 %v392, 7
        %v394 = vsub.s32 0, %v393
        %v395 = vrot.slane %v384, %v394
        %vm397 = vcmask 130048
        %v399 = vsel %vm397, 0, 0
        %401 = vmatprep.subr.bf16.mxu0 0
        %402 = vmatpush1.bf16.msra.mxu0 %v383
        %403 = vmatprep.subr.bf16.mxu0 0
        %404 = vmatpush1.bf16.msra.mxu0 0
        %405 = vmatprep.subr.bf16.mxu0 0
        %406 = vmatpush1.bf16.msra.mxu0 0
        %407 = vmatprep.subr.bf16.mxu0 0
        %408 = vmatpush1.bf16.msra.mxu0 0
        %409 = vmatprep.subr.bf16.mxu0 0
        %410 = vmatpush1.bf16.msra.mxu0 0
        %411 = vmatprep.subr.bf16.mxu0 0
        %412 = vmatpush1.bf16.msra.mxu0 0
        %413 = vmatprep.subr.bf16.mxu0 0
        %414 = vmatpush1.bf16.msra.mxu0 0
        %415 = vmatprep.subr.bf16.mxu0 0
        %416 = vmatpush1.bf16.msra.mxu0 0
        %417 = vmatprep.subr.bf16.mxu0 0
        %418 = vmatpush1.bf16.msra.mxu0 0
        %419 = vmatprep.subr.bf16.mxu0 0
        %420 = vmatpush1.bf16.msra.mxu0 0
        %421 = vmatprep.subr.bf16.mxu0 0
        %422 = vmatpush1.bf16.msra.mxu0 0
        %423 = vmatprep.subr.bf16.mxu0 0
        %424 = vmatpush1.bf16.msra.mxu0 0
        %425 = vmatprep.subr.bf16.mxu0 0
        %426 = vmatpush1.bf16.msra.mxu0 0
        %427 = vmatprep.subr.bf16.mxu0 0
        %428 = vmatpush1.bf16.msra.mxu0 0
        %429 = vmatprep.subr.bf16.mxu0 0
        %430 = vmatpush1.bf16.msra.mxu0 0
        %431 = vmatprep.subr.bf16.mxu0 0
        %432 = vmatpush1.bf16.msra.mxu0 0
        %433 = vmatprep.mubr.bf16.mxu0 0
        %434 = vmatmul.mubr.bf16.gmra.mrb[0].mxu0 %v399
        %v435 = vpop.f32.mrb[0].mxu0
        %v436 = vadd.f32 %v395, %v435
        %v437 = vpop.f32.mrb[0].mxu0
        %v438 = vpop.f32.mrb[0].mxu0
        %v439 = vpop.f32.mrb[0].mxu0
        %440 = vdwg.mxu0
        %v441 = vadd.f32 %v390, %v436
        %v442 = vxor.u32 %v441, 2147483648
        %v443 = vmul.f32 %v442, 1.442695
        %v444 = vpow.pop %v443
        %v445 = vadd.f32 %v444, 1.0
        %v446 = vrcp.pop %v445
        %v447 = vmul.f32 1.0, %v446
        %449 = vrot.lane.b32.xlu0 %v436, 96
        %v450 = vpop.permute.xlu0 %449
        %v452 = vmul.f32 %v447, %v450
        %454 = vrot.lane.b32.xlu0 %v452, 32
        %v455 = vpop.permute.xlu0 %454
        %v457 = vadd.f32 %v390, %v455
        %v458 = vtanh.pop %v457
        %v459 = vsub.f32 1.0, %v447
        %461 = vrot.lane.b32.xlu0 %v458, 112
        %v462 = vpop.permute.xlu0 %461
        %v464 = vmul.f32 %v459, %v462
        %v465 = vmul.f32 %v447, 0.0
        %v466 = vadd.f32 %v464, %v465
        %vm467 = vcmp.gt.s32.totalorder %v385, 0
        %v468 = vsel %vm467, 1, 0
        %469 = vset.pattern.permute.xlu0 0
        %470 = vperm.xlu0 %469, %v468
        %v471 = vpop.permute.xlu0 %470
        %vm472 = vcmp.eq.s32.totalorder %v471, 1
        %v473 = vsel %vm472, %v466, 0.0
        %475 = vrot.lane.b32.xlu0 %v473, 112
        %v476 = vpop.permute.xlu0 %475
        %478 = vst.msk [vmem:[%s299] sm:$0xff] %vm397, %v476
        %v479 = vld [vmem:[#allocation2 + $0x8] sm:$0xff]
        %v480 = vpack.c.bf16 %v473, %v473
        %482 = vrot.lane.b32.xlu0 %v480, 112
        %v483 = vpop.permute.xlu0 %482
        %v485 = vsel %vm397, %v483, 0
        %487 = vmatprep.subr.bf16.mxu0 0
        %488 = vmatpush1.bf16.msra.mxu0 %v383
        %489 = vmatprep.subr.bf16.mxu0 0
        %490 = vmatpush1.bf16.msra.mxu0 0
        %491 = vmatprep.subr.bf16.mxu0 0
        %492 = vmatpush1.bf16.msra.mxu0 0
        %493 = vmatprep.subr.bf16.mxu0 0
        %494 = vmatpush1.bf16.msra.mxu0 0
        %495 = vmatprep.subr.bf16.mxu0 0
        %496 = vmatpush1.bf16.msra.mxu0 0
        %497 = vmatprep.subr.bf16.mxu0 0
        %498 = vmatpush1.bf16.msra.mxu0 0
        %499 = vmatprep.subr.bf16.mxu0 0
        %500 = vmatpush1.bf16.msra.mxu0 0
        %501 = vmatprep.subr.bf16.mxu0 0
        %502 = vmatpush1.bf16.msra.mxu0 0
        %503 = vmatprep.subr.bf16.mxu0 0
        %504 = vmatpush1.bf16.msra.mxu0 0
        %505 = vmatprep.subr.bf16.mxu0 0
        %506 = vmatpush1.bf16.msra.mxu0 0
        %507 = vmatprep.subr.bf16.mxu0 0
        %508 = vmatpush1.bf16.msra.mxu0 0
        %509 = vmatprep.subr.bf16.mxu0 0
        %510 = vmatpush1.bf16.msra.mxu0 0
        %511 = vmatprep.subr.bf16.mxu0 0
        %512 = vmatpush1.bf16.msra.mxu0 0
        %513 = vmatprep.subr.bf16.mxu0 0
        %514 = vmatpush1.bf16.msra.mxu0 0
        %515 = vmatprep.subr.bf16.mxu0 0
        %516 = vmatpush1.bf16.msra.mxu0 0
        %517 = vmatprep.subr.bf16.mxu0 0
        %518 = vmatpush1.bf16.msra.mxu0 0
        %519 = vmatprep.mubr.bf16.mxu0 0
        %520 = vmatmul.mubr.bf16.gmra.mrb[0].mxu0 %v485
        %v521 = vpop.f32.mrb[0].mxu0
        %v522 = vadd.f32 %v395, %v521
        %v523 = vpop.f32.mrb[0].mxu0
        %v524 = vpop.f32.mrb[0].mxu0
        %v525 = vpop.f32.mrb[0].mxu0
        %526 = vdwg.mxu0
        %v527 = vadd.f32 %v479, %v522
        %v528 = vxor.u32 %v527, 2147483648
        %v529 = vmul.f32 %v528, 1.442695
        %v530 = vpow.pop %v529
        %v531 = vadd.f32 %v530, 1.0
        %v532 = vrcp.pop %v531
        %v533 = vmul.f32 1.0, %v532
        %535 = vrot.lane.b32.xlu0 %v522, 96
        %v536 = vpop.permute.xlu0 %535
        %v538 = vmul.f32 %v533, %v536
        %540 = vrot.lane.b32.xlu0 %v538, 32
        %v541 = vpop.permute.xlu0 %540
        %v543 = vadd.f32 %v479, %v541
        %v544 = vtanh.pop %v543
        %v545 = vsub.f32 1.0, %v533
        %547 = vrot.lane.b32.xlu0 %v544, 112
        %v548 = vpop.permute.xlu0 %547
        %v550 = vmul.f32 %v545, %v548
        %v551 = vmul.f32 %v533, %v473
        %v552 = vadd.f32 %v550, %v551
        %vm553 = vcmp.gt.s32.totalorder %v385, 1
        %v554 = vsel %vm553, 1, 0
        %555 = vset.pattern.permute.xlu0 0
        %556 = vperm.xlu0 %555, %v554
        %v557 = vpop.permute.xlu0 %556
        %vm558 = vcmp.eq.s32.totalorder %v557, 1
        %v559 = vsel %vm558, %v552, 0.0
        %561 = vrot.lane.b32.xlu0 %v559, 112
        %v562 = vpop.permute.xlu0 %561
        %564 = vst.msk [vmem:[%s299 + $0x8] sm:$0xff] %vm397, %v562
        %v565 = vsel %vm558, %v552, %v473
        %v566 = vld [vmem:[#allocation2 + $0x10] sm:$0xff]
        %v567 = vpack.c.bf16 %v565, %v565
        %569 = vrot.lane.b32.xlu0 %v567, 112
        %v570 = vpop.permute.xlu0 %569
        %v572 = vsel %vm397, %v570, 0
        %574 = vmatprep.subr.bf16.mxu0 0
        %575 = vmatpush1.bf16.msra.mxu0 %v383
        %576 = vmatprep.subr.bf16.mxu0 0
        %577 = vmatpush1.bf16.msra.mxu0 0
        %578 = vmatprep.subr.bf16.mxu0 0
        %579 = vmatpush1.bf16.msra.mxu0 0
        %580 = vmatprep.subr.bf16.mxu0 0
        %581 = vmatpush1.bf16.msra.mxu0 0
        %582 = vmatprep.subr.bf16.mxu0 0
        %583 = vmatpush1.bf16.msra.mxu0 0
        %584 = vmatprep.subr.bf16.mxu0 0
        %585 = vmatpush1.bf16.msra.mxu0 0
        %586 = vmatprep.subr.bf16.mxu0 0
        %587 = vmatpush1.bf16.msra.mxu0 0
        %588 = vmatprep.subr.bf16.mxu0 0
        %589 = vmatpush1.bf16.msra.mxu0 0
        %590 = vmatprep.subr.bf16.mxu0 0
        %591 = vmatpush1.bf16.msra.mxu0 0
        %592 = vmatprep.subr.bf16.mxu0 0
        %593 = vmatpush1.bf16.msra.mxu0 0
        %594 = vmatprep.subr.bf16.mxu0 0
        %595 = vmatpush1.bf16.msra.mxu0 0
        %596 = vmatprep.subr.bf16.mxu0 0
        %597 = vmatpush1.bf16.msra.mxu0 0
        %598 = vmatprep.subr.bf16.mxu0 0
        %599 = vmatpush1.bf16.msra.mxu0 0
        %600 = vmatprep.subr.bf16.mxu0 0
        %601 = vmatpush1.bf16.msra.mxu0 0
        %602 = vmatprep.subr.bf16.mxu0 0
        %603 = vmatpush1.bf16.msra.mxu0 0
        %604 = vmatprep.subr.bf16.mxu0 0
        %605 = vmatpush1.bf16.msra.mxu0 0
        %606 = vmatprep.mubr.bf16.mxu0 0
        %607 = vmatmul.mubr.bf16.gmra.mrb[0].mxu0 %v572
        %v608 = vpop.f32.mrb[0].mxu0
        %v609 = vadd.f32 %v395, %v608
        %v610 = vpop.f32.mrb[0].mxu0
        %v611 = vpop.f32.mrb[0].mxu0
        %v612 = vpop.f32.mrb[0].mxu0
        %613 = vdwg.mxu0
        %v614 = vadd.f32 %v566, %v609
        %v615 = vxor.u32 %v614, 2147483648
        %v616 = vmul.f32 %v615, 1.442695
        %v617 = vpow.pop %v616
        %v618 = vadd.f32 %v617, 1.0
        %v619 = vrcp.pop %v618
        %v620 = vmul.f32 1.0, %v619
        %622 = vrot.lane.b32.xlu0 %v609, 96
        %v623 = vpop.permute.xlu0 %622
        %v625 = vmul.f32 %v620, %v623
        %627 = vrot.lane.b32.xlu0 %v625, 32
        %v628 = vpop.permute.xlu0 %627
        %v630 = vadd.f32 %v566, %v628
        %v631 = vtanh.pop %v630
        %v632 = vsub.f32 1.0, %v620
        %634 = vrot.lane.b32.xlu0 %v631, 112
        %v635 = vpop.permute.xlu0 %634
        %v637 = vmul.f32 %v632, %v635
        %v638 = vmul.f32 %v620, %v565
        %v639 = vadd.f32 %v637, %v638
        %vm640 = vcmp.gt.s32.totalorder %v385, 2
        %v641 = vsel %vm640, 1, 0
        %642 = vset.pattern.permute.xlu0 0
        %643 = vperm.xlu0 %642, %v641
        %v644 = vpop.permute.xlu0 %643
        %vm645 = vcmp.eq.s32.totalorder %v644, 1
        %v646 = vsel %vm645, %v639, 0.0
        %648 = vrot.lane.b32.xlu0 %v646, 112
        %v649 = vpop.permute.xlu0 %648
        %651 = vst.msk [vmem:[%s299 + $0x10] sm:$0xff] %vm397, %v649
        %v652 = vsel %vm645, %v639, %v565
        %v653 = vld [vmem:[#allocation2 + $0x18] sm:$0xff]
        %v654 = vpack.c.bf16 %v652, %v652
        %656 = vrot.lane.b32.xlu0 %v654, 112
        %v657 = vpop.permute.xlu0 %656
        %v659 = vsel %vm397, %v657, 0
        %661 = vmatprep.subr.bf16.mxu0 0
        %662 = vmatpush1.bf16.msra.mxu0 %v383
        %663 = vmatprep.subr.bf16.mxu0 0
        %664 = vmatpush1.bf16.msra.mxu0 0
        %665 = vmatprep.subr.bf16.mxu0 0
        %666 = vmatpush1.bf16.msra.mxu0 0
        %667 = vmatprep.subr.bf16.mxu0 0
        %668 = vmatpush1.bf16.msra.mxu0 0
        %669 = vmatprep.subr.bf16.mxu0 0
        %670 = vmatpush1.bf16.msra.mxu0 0
        %671 = vmatprep.subr.bf16.mxu0 0
        %672 = vmatpush1.bf16.msra.mxu0 0
        %673 = vmatprep.subr.bf16.mxu0 0
        %674 = vmatpush1.bf16.msra.mxu0 0
        %675 = vmatprep.subr.bf16.mxu0 0
        %676 = vmatpush1.bf16.msra.mxu0 0
        %677 = vmatprep.subr.bf16.mxu0 0
        %678 = vmatpush1.bf16.msra.mxu0 0
        %679 = vmatprep.subr.bf16.mxu0 0
        %680 = vmatpush1.bf16.msra.mxu0 0
        %681 = vmatprep.subr.bf16.mxu0 0
        %682 = vmatpush1.bf16.msra.mxu0 0
        %683 = vmatprep.subr.bf16.mxu0 0
        %684 = vmatpush1.bf16.msra.mxu0 0
        %685 = vmatprep.subr.bf16.mxu0 0
        %686 = vmatpush1.bf16.msra.mxu0 0
        %687 = vmatprep.subr.bf16.mxu0 0
        %688 = vmatpush1.bf16.msra.mxu0 0
        %689 = vmatprep.subr.bf16.mxu0 0
        %690 = vmatpush1.bf16.msra.mxu0 0
        %691 = vmatprep.subr.bf16.mxu0 0
        %692 = vmatpush1.bf16.msra.mxu0 0
        %693 = vmatprep.mubr.bf16.mxu0 0
        %694 = vmatmul.mubr.bf16.gmra.mrb[0].mxu0 %v659
        %v695 = vpop.f32.mrb[0].mxu0
        %v696 = vadd.f32 %v395, %v695
        %v697 = vpop.f32.mrb[0].mxu0
        %v698 = vpop.f32.mrb[0].mxu0
        %v699 = vpop.f32.mrb[0].mxu0
        %700 = vdwg.mxu0
        %v701 = vadd.f32 %v653, %v696
        %v702 = vxor.u32 %v701, 2147483648
        %v703 = vmul.f32 %v702, 1.442695
        %v704 = vpow.pop %v703
        %v705 = vadd.f32 %v704, 1.0
        %v706 = vrcp.pop %v705
        %v707 = vmul.f32 1.0, %v706
        %709 = vrot.lane.b32.xlu0 %v696, 96
        %v710 = vpop.permute.xlu0 %709
        %v712 = vmul.f32 %v707, %v710
        %714 = vrot.lane.b32.xlu0 %v712, 32
        %v715 = vpop.permute.xlu0 %714
        %v717 = vadd.f32 %v653, %v715
        %v718 = vtanh.pop %v717
        %v719 = vsub.f32 1.0, %v707
        %721 = vrot.lane.b32.xlu0 %v718, 112
        %v722 = vpop.permute.xlu0 %721
        %v724 = vmul.f32 %v719, %v722
        %v725 = vmul.f32 %v707, %v652
        %v726 = vadd.f32 %v724, %v725
        %vm727 = vcmp.gt.s32.totalorder %v385, 3
        %v728 = vsel %vm727, 1, 0
        %729 = vset.pattern.permute.xlu0 0
        %730 = vperm.xlu0 %729, %v728
        %v731 = vpop.permute.xlu0 %730
        %vm732 = vcmp.eq.s32.totalorder %v731, 1
        %v733 = vsel %vm732, %v726, 0.0
        %735 = vrot.lane.b32.xlu0 %v733, 112
        %v736 = vpop.permute.xlu0 %735
        %738 = vst.msk [vmem:[%s299 + $0x18] sm:$0xff] %vm397, %v736
      $region48: #{review_han_forward.6} parent=43 // pred_fallthru
        _
      %p739 = scmp.eq.s32.totalorder %s17, 1
      // Predicated region
      $region49: #{review_han_forward.6} parent=43 // pred_check
        %p740 = pneg %p739
      $region50: #{review_han_forward.6} parent=43 // pred_check_branch
        %742 = sbr.rel (%p740) target = $region52
      $region51: #{review_han_forward.6} parent=43 // pred_region
        %v743 = vld [vmem:[#allocation2 + $0x18] sm:$0xff]
        %v745 = vlaneseq
        %v746 = vshrl.u32 %v745, 7
        %v747 = vsub.s32 0, %v746
        %v748 = vrot.slane %v384, %v747
        %vm750 = vcmask 130048
        %v752 = vsel %vm750, 0, 0
        %754 = vmatprep.subr.bf16.mxu0 0
        %755 = vmatpush1.bf16.msra.mxu0 %v383
        %756 = vmatprep.subr.bf16.mxu0 0
        %757 = vmatpush1.bf16.msra.mxu0 0
        %758 = vmatprep.subr.bf16.mxu0 0
        %759 = vmatpush1.bf16.msra.mxu0 0
        %760 = vmatprep.subr.bf16.mxu0 0
        %761 = vmatpush1.bf16.msra.mxu0 0
        %762 = vmatprep.subr.bf16.mxu0 0
        %763 = vmatpush1.bf16.msra.mxu0 0
        %764 = vmatprep.subr.bf16.mxu0 0
        %765 = vmatpush1.bf16.msra.mxu0 0
        %766 = vmatprep.subr.bf16.mxu0 0
        %767 = vmatpush1.bf16.msra.mxu0 0
        %768 = vmatprep.subr.bf16.mxu0 0
        %769 = vmatpush1.bf16.msra.mxu0 0
        %770 = vmatprep.subr.bf16.mxu0 0
        %771 = vmatpush1.bf16.msra.mxu0 0
        %772 = vmatprep.subr.bf16.mxu0 0
        %773 = vmatpush1.bf16.msra.mxu0 0
        %774 = vmatprep.subr.bf16.mxu0 0
        %775 = vmatpush1.bf16.msra.mxu0 0
        %776 = vmatprep.subr.bf16.mxu0 0
        %777 = vmatpush1.bf16.msra.mxu0 0
        %778 = vmatprep.subr.bf16.mxu0 0
        %779 = vmatpush1.bf16.msra.mxu0 0
        %780 = vmatprep.subr.bf16.mxu0 0
        %781 = vmatpush1.bf16.msra.mxu0 0
        %782 = vmatprep.subr.bf16.mxu0 0
        %783 = vmatpush1.bf16.msra.mxu0 0
        %784 = vmatprep.subr.bf16.mxu0 0
        %785 = vmatpush1.bf16.msra.mxu0 0
        %786 = vmatprep.mubr.bf16.mxu0 0
        %787 = vmatmul.mubr.bf16.gmra.mrb[0].mxu0 %v752
        %v788 = vpop.f32.mrb[0].mxu0
        %v789 = vadd.f32 %v748, %v788
        %v790 = vpop.f32.mrb[0].mxu0
        %v791 = vpop.f32.mrb[0].mxu0
        %v792 = vpop.f32.mrb[0].mxu0
        %793 = vdwg.mxu0
        %v794 = vadd.f32 %v743, %v789
        %v795 = vxor.u32 %v794, 2147483648
        %v796 = vmul.f32 %v795, 1.442695
        %v797 = vpow.pop %v796
        %v798 = vadd.f32 %v797, 1.0
        %v799 = vrcp.pop %v798
        %v800 = vmul.f32 1.0, %v799
        %802 = vrot.lane.b32.xlu0 %v789, 96
        %v803 = vpop.permute.xlu0 %802
        %v805 = vmul.f32 %v800, %v803
        %807 = vrot.lane.b32.xlu0 %v805, 32
        %v808 = vpop.permute.xlu0 %807
        %v810 = vadd.f32 %v743, %v808
        %v811 = vtanh.pop %v810
        %v812 = vsub.f32 1.0, %v800
        %814 = vrot.lane.b32.xlu0 %v811, 112
        %v815 = vpop.permute.xlu0 %814
        %v817 = vmul.f32 %v812, %v815
        %v818 = vmul.f32 %v800, 0.0
        %v819 = vadd.f32 %v817, %v818
        %vm820 = vcmp.gt.s32.totalorder %v385, 3
        %v821 = vsel %vm820, 1, 0
        %822 = vset.pattern.permute.xlu0 0
        %823 = vperm.xlu0 %822, %v821
        %v824 = vpop.permute.xlu0 %823
        %vm825 = vcmp.eq.s32.totalorder %v824, 1
        %v826 = vsel %vm825, %v819, 0.0
        %828 = vrot.lane.b32.xlu0 %v826, 112
        %v829 = vpop.permute.xlu0 %828
        %831 = vst.msk [vmem:[%s299 + $0x18] sm:$0xff] %vm750, %v829
        %v832 = vld [vmem:[#allocation2 + $0x10] sm:$0xff]
        %v833 = vpack.c.bf16 %v826, %v826
        %835 = vrot.lane.b32.xlu0 %v833, 112
        %v836 = vpop.permute.xlu0 %835
        %v838 = vsel %vm750, %v836, 0
        %840 = vmatprep.subr.bf16.mxu0 0
        %841 = vmatpush1.bf16.msra.mxu0 %v383
        %842 = vmatprep.subr.bf16.mxu0 0
        %843 = vmatpush1.bf16.msra.mxu0 0
        %844 = vmatprep.subr.bf16.mxu0 0
        %845 = vmatpush1.bf16.msra.mxu0 0
        %846 = vmatprep.subr.bf16.mxu0 0
        %847 = vmatpush1.bf16.msra.mxu0 0
        %848 = vmatprep.subr.bf16.mxu0 0
        %849 = vmatpush1.bf16.msra.mxu0 0
        %850 = vmatprep.subr.bf16.mxu0 0
        %851 = vmatpush1.bf16.msra.mxu0 0
        %852 = vmatprep.subr.bf16.mxu0 0
        %853 = vmatpush1.bf16.msra.mxu0 0
        %854 = vmatprep.subr.bf16.mxu0 0
        %855 = vmatpush1.bf16.msra.mxu0 0
        %856 = vmatprep.subr.bf16.mxu0 0
        %857 = vmatpush1.bf16.msra.mxu0 0
        %858 = vmatprep.subr.bf16.mxu0 0
        %859 = vmatpush1.bf16.msra.mxu0 0
        %860 = vmatprep.subr.bf16.mxu0 0
        %861 = vmatpush1.bf16.msra.mxu0 0
        %862 = vmatprep.subr.bf16.mxu0 0
        %863 = vmatpush1.bf16.msra.mxu0 0
        %864 = vmatprep.subr.bf16.mxu0 0
        %865 = vmatpush1.bf16.msra.mxu0 0
        %866 = vmatprep.subr.bf16.mxu0 0
        %867 = vmatpush1.bf16.msra.mxu0 0
        %868 = vmatprep.subr.bf16.mxu0 0
        %869 = vmatpush1.bf16.msra.mxu0 0
        %870 = vmatprep.subr.bf16.mxu0 0
        %871 = vmatpush1.bf16.msra.mxu0 0
        %872 = vmatprep.mubr.bf16.mxu0 0
        %873 = vmatmul.mubr.bf16.gmra.mrb[0].mxu0 %v838
        %v874 = vpop.f32.mrb[0].mxu0
        %v875 = vadd.f32 %v748, %v874
        %v876 = vpop.f32.mrb[0].mxu0
        %v877 = vpop.f32.mrb[0].mxu0
        %v878 = vpop.f32.mrb[0].mxu0
        %879 = vdwg.mxu0
        %v880 = vadd.f32 %v832, %v875
        %v881 = vxor.u32 %v880, 2147483648
        %v882 = vmul.f32 %v881, 1.442695
        %v883 = vpow.pop %v882
        %v884 = vadd.f32 %v883, 1.0
        %v885 = vrcp.pop %v884
        %v886 = vmul.f32 1.0, %v885
        %888 = vrot.lane.b32.xlu0 %v875, 96
        %v889 = vpop.permute.xlu0 %888
        %v891 = vmul.f32 %v886, %v889
        %893 = vrot.lane.b32.xlu0 %v891, 32
        %v894 = vpop.permute.xlu0 %893
        %v896 = vadd.f32 %v832, %v894
        %v897 = vtanh.pop %v896
        %v898 = vsub.f32 1.0, %v886
        %900 = vrot.lane.b32.xlu0 %v897, 112
        %v901 = vpop.permute.xlu0 %900
        %v903 = vmul.f32 %v898, %v901
        %v904 = vmul.f32 %v886, %v826
        %v905 = vadd.f32 %v903, %v904
        %vm906 = vcmp.gt.s32.totalorder %v385, 2
        %v907 = vsel %vm906, 1, 0
        %908 = vset.pattern.permute.xlu0 0
        %909 = vperm.xlu0 %908, %v907
        %v910 = vpop.permute.xlu0 %909
        %vm911 = vcmp.eq.s32.totalorder %v910, 1
        %v912 = vsel %vm911, %v905, 0.0
        %914 = vrot.lane.b32.xlu0 %v912, 112
        %v915 = vpop.permute.xlu0 %914
        %917 = vst.msk [vmem:[%s299 + $0x10] sm:$0xff] %vm750, %v915
        %v918 = vsel %vm911, %v905, %v826
        %v919 = vld [vmem:[#allocation2 + $0x8] sm:$0xff]
        %v920 = vpack.c.bf16 %v918, %v918
        %922 = vrot.lane.b32.xlu0 %v920, 112
        %v923 = vpop.permute.xlu0 %922
        %v925 = vsel %vm750, %v923, 0
        %927 = vmatprep.subr.bf16.mxu0 0
        %928 = vmatpush1.bf16.msra.mxu0 %v383
        %929 = vmatprep.subr.bf16.mxu0 0
        %930 = vmatpush1.bf16.msra.mxu0 0
        %931 = vmatprep.subr.bf16.mxu0 0
        %932 = vmatpush1.bf16.msra.mxu0 0
        %933 = vmatprep.subr.bf16.mxu0 0
        %934 = vmatpush1.bf16.msra.mxu0 0
        %935 = vmatprep.subr.bf16.mxu0 0
        %936 = vmatpush1.bf16.msra.mxu0 0
        %937 = vmatprep.subr.bf16.mxu0 0
        %938 = vmatpush1.bf16.msra.mxu0 0
        %939 = vmatprep.subr.bf16.mxu0 0
        %940 = vmatpush1.bf16.msra.mxu0 0
        %941 = vmatprep.subr.bf16.mxu0 0
        %942 = vmatpush1.bf16.msra.mxu0 0
        %943 = vmatprep.subr.bf16.mxu0 0
        %944 = vmatpush1.bf16.msra.mxu0 0
        %945 = vmatprep.subr.bf16.mxu0 0
        %946 = vmatpush1.bf16.msra.mxu0 0
        %947 = vmatprep.subr.bf16.mxu0 0
        %948 = vmatpush1.bf16.msra.mxu0 0
        %949 = vmatprep.subr.bf16.mxu0 0
        %950 = vmatpush1.bf16.msra.mxu0 0
        %951 = vmatprep.subr.bf16.mxu0 0
        %952 = vmatpush1.bf16.msra.mxu0 0
        %953 = vmatprep.subr.bf16.mxu0 0
        %954 = vmatpush1.bf16.msra.mxu0 0
        %955 = vmatprep.subr.bf16.mxu0 0
        %956 = vmatpush1.bf16.msra.mxu0 0
        %957 = vmatprep.subr.bf16.mxu0 0
        %958 = vmatpush1.bf16.msra.mxu0 0
        %959 = vmatprep.mubr.bf16.mxu0 0
        %960 = vmatmul.mubr.bf16.gmra.mrb[0].mxu0 %v925
        %v961 = vpop.f32.mrb[0].mxu0
        %v962 = vadd.f32 %v748, %v961
        %v963 = vpop.f32.mrb[0].mxu0
        %v964 = vpop.f32.mrb[0].mxu0
        %v965 = vpop.f32.mrb[0].mxu0
        %966 = vdwg.mxu0
        %v967 = vadd.f32 %v919, %v962
        %v968 = vxor.u32 %v967, 2147483648
        %v969 = vmul.f32 %v968, 1.442695
        %v970 = vpow.pop %v969
        %v971 = vadd.f32 %v970, 1.0
        %v972 = vrcp.pop %v971
        %v973 = vmul.f32 1.0, %v972
        %975 = vrot.lane.b32.xlu0 %v962, 96
        %v976 = vpop.permute.xlu0 %975
        %v978 = vmul.f32 %v973, %v976
        %980 = vrot.lane.b32.xlu0 %v978, 32
        %v981 = vpop.permute.xlu0 %980
        %v983 = vadd.f32 %v919, %v981
        %v984 = vtanh.pop %v983
        %v985 = vsub.f32 1.0, %v973
        %987 = vrot.lane.b32.xlu0 %v984, 112
        %v988 = vpop.permute.xlu0 %987
        %v990 = vmul.f32 %v985, %v988
        %v991 = vmul.f32 %v973, %v918
        %v992 = vadd.f32 %v990, %v991
        %vm993 = vcmp.gt.s32.totalorder %v385, 1
        %v994 = vsel %vm993, 1, 0
        %995 = vset.pattern.permute.xlu0 0
        %996 = vperm.xlu0 %995, %v994
        %v997 = vpop.permute.xlu0 %996
        %vm998 = vcmp.eq.s32.totalorder %v997, 1
        %v999 = vsel %vm998, %v992, 0.0
        %1001 = vrot.lane.b32.xlu0 %v999, 112
        %v1002 = vpop.permute.xlu0 %1001
        %1004 = vst.msk [vmem:[%s299 + $0x8] sm:$0xff] %vm750, %v1002
        %v1005 = vsel %vm998, %v992, %v918
        %v1006 = vld [vmem:[#allocation2] sm:$0xff]
        %v1007 = vpack.c.bf16 %v1005, %v1005
        %1009 = vrot.lane.b32.xlu0 %v1007, 112
        %v1010 = vpop.permute.xlu0 %1009
        %v1012 = vsel %vm750, %v1010, 0
        %1014 = vmatprep.subr.bf16.mxu0 0
        %1015 = vmatpush1.bf16.msra.mxu0 %v383
        %1016 = vmatprep.subr.bf16.mxu0 0
        %1017 = vmatpush1.bf16.msra.mxu0 0
        %1018 = vmatprep.subr.bf16.mxu0 0
        %1019 = vmatpush1.bf16.msra.mxu0 0
        %1020 = vmatprep.subr.bf16.mxu0 0
        %1021 = vmatpush1.bf16.msra.mxu0 0
        %1022 = vmatprep.subr.bf16.mxu0 0
        %1023 = vmatpush1.bf16.msra.mxu0 0
        %1024 = vmatprep.subr.bf16.mxu0 0
        %1025 = vmatpush1.bf16.msra.mxu0 0
        %1026 = vmatprep.subr.bf16.mxu0 0
        %1027 = vmatpush1.bf16.msra.mxu0 0
        %1028 = vmatprep.subr.bf16.mxu0 0
        %1029 = vmatpush1.bf16.msra.mxu0 0
        %1030 = vmatprep.subr.bf16.mxu0 0
        %1031 = vmatpush1.bf16.msra.mxu0 0
        %1032 = vmatprep.subr.bf16.mxu0 0
        %1033 = vmatpush1.bf16.msra.mxu0 0
        %1034 = vmatprep.subr.bf16.mxu0 0
        %1035 = vmatpush1.bf16.msra.mxu0 0
        %1036 = vmatprep.subr.bf16.mxu0 0
        %1037 = vmatpush1.bf16.msra.mxu0 0
        %1038 = vmatprep.subr.bf16.mxu0 0
        %1039 = vmatpush1.bf16.msra.mxu0 0
        %1040 = vmatprep.subr.bf16.mxu0 0
        %1041 = vmatpush1.bf16.msra.mxu0 0
        %1042 = vmatprep.subr.bf16.mxu0 0
        %1043 = vmatpush1.bf16.msra.mxu0 0
        %1044 = vmatprep.subr.bf16.mxu0 0
        %1045 = vmatpush1.bf16.msra.mxu0 0
        %1046 = vmatprep.mubr.bf16.mxu0 0
        %1047 = vmatmul.mubr.bf16.gmra.mrb[0].mxu0 %v1012
        %v1048 = vpop.f32.mrb[0].mxu0
        %v1049 = vadd.f32 %v748, %v1048
        %v1050 = vpop.f32.mrb[0].mxu0
        %v1051 = vpop.f32.mrb[0].mxu0
        %v1052 = vpop.f32.mrb[0].mxu0
        %1053 = vdwg.mxu0
        %v1054 = vadd.f32 %v1006, %v1049
        %v1055 = vxor.u32 %v1054, 2147483648
        %v1056 = vmul.f32 %v1055, 1.442695
        %v1057 = vpow.pop %v1056
        %v1058 = vadd.f32 %v1057, 1.0
        %v1059 = vrcp.pop %v1058
        %v1060 = vmul.f32 1.0, %v1059
        %1062 = vrot.lane.b32.xlu0 %v1049, 96
        %v1063 = vpop.permute.xlu0 %1062
        %v1065 = vmul.f32 %v1060, %v1063
        %1067 = vrot.lane.b32.xlu0 %v1065, 32
        %v1068 = vpop.permute.xlu0 %1067
        %v1070 = vadd.f32 %v1006, %v1068
        %v1071 = vtanh.pop %v1070
        %v1072 = vsub.f32 1.0, %v1060
        %1074 = vrot.lane.b32.xlu0 %v1071, 112
        %v1075 = vpop.permute.xlu0 %1074
        %v1077 = vmul.f32 %v1072, %v1075
        %v1078 = vmul.f32 %v1060, %v1005
        %v1079 = vadd.f32 %v1077, %v1078
        %vm1080 = vcmp.gt.s32.totalorder %v385, 0
        %v1081 = vsel %vm1080, 1, 0
        %1082 = vset.pattern.permute.xlu0 0
        %1083 = vperm.xlu0 %1082, %v1081
        %v1084 = vpop.permute.xlu0 %1083
        %vm1085 = vcmp.eq.s32.totalorder %v1084, 1
        %v1086 = vsel %vm1085, %v1079, 0.0
        %1088 = vrot.lane.b32.xlu0 %v1086, 112
        %v1089 = vpop.permute.xlu0 %1088
        %1091 = vst.msk [vmem:[%s299] sm:$0xff] %vm750, %v1089
      $region52: #{review_han_forward.6} parent=43 // pred_fallthru
        _
      %p1092 = scmp.lt.s32.totalorder %s17, 1
      %s1093 = scalar_select %p1092, %s17, 1
      %s1094 = smul.addr %s1093, 4
      %s1095 = smul.addr %s1094, 8
      %s1096 = scalar_lea.vmem %s6, %s1095
      // Predicated region
      $region53: #{review_han_forward.6} parent=43 // pred_check
        %p1097 = pneg %p181
      $region54: #{review_han_forward.6} parent=43 // pred_check_branch
        %1099 = sbr.rel (%p1097) target = $region56
      $region55: #{review_han_forward.6} parent=43 // pred_region
        _
      $region56: #{review_han_forward.6} parent=43 // pred_fallthru
        _
    $region44: #{review_han_forward.6} parent=5 // pred_fallthru
      _
    %p1100 = scmp.le.s32.totalorder 2, %s12
    // Predicated region
    $region57: #{review_han_forward.6} parent=5 // pred_check
      %p1101 = pneg %p1100
    $region58: #{review_han_forward.6} parent=5 // pred_check_branch
      %1103 = sbr.rel (%p1101) target = $region60
    $region59: #{review_han_forward.6} parent=5 // pred_region
      %s1104 = ssub.s32 %s12, 2
      // Predicated region
      $region61: #{review_han_forward.6} parent=59 // pred_check
        %p1105 = pneg %p187
      $region62: #{review_han_forward.6} parent=59 // pred_check_branch
        %1107 = sbr.rel (%p1105) target = $region64
      $region63: #{review_han_forward.6} parent=59 // pred_region
        %p1108 = scmp.lt.s32.totalorder %s18, 1
        %s1109 = scalar_select %p1108, %s18, 1
        %s1110 = smul.addr %s1109, 4
        %s1111 = smul.addr %s1110, 8
        %s1112 = scalar_lea.vmem %s6, %s1111
      $region64: #{review_han_forward.6} parent=59 // pred_fallthru
        _
    $region60: #{review_han_forward.6} parent=5 // pred_fallthru
      _
  $region6: #{review_han_forward.6} parent=0 // loop_footer
    %s16 = sadd.s32 1, %s12
  $region7: #{review_han_forward.6} parent=0 // loop_footer_branch
    %11 = sbr.rel target = $region3
  $region8: #{review_han_forward.6} parent=0 // loop_exit
    _

</llo_original>
